<compile_context>
chip_gen: v7x
topology: tpu7x:2x2x1
jax: 0.10.0
libtpu: 0.0.40
codegen_flags: <defaults>
</compile_context>

<pallas_src>
import functools

import jax
import jax.numpy as jnp
from jax.experimental import pallas as pl
from jax.experimental.pallas import tpu as pltpu


_MXU_CONV_DTYPE = jnp.bfloat16   # conv GEMM operands; accumulation stays f32


# ---------------------------------------------------------------------------
# Fused forward kernel (one grid step == one batch element)
# ---------------------------------------------------------------------------
def _actor_fused_kernel(
        img_ref, val_ref,
        w1_ref, b1_ref, w2_ref, b2_ref, w3_ref, b3_ref, w4_ref, b4_ref,
        w5_ref, b5_ref, w6_ref,
        f1g_ref, f1v_ref, f1b_ref, f2w_ref, f2b_ref, f3w_ref, f3b_ref,
        out_ref, acta_ref, actb_ref, *, H, W, max_action):
    f32 = jnp.float32
    HW = H * W
    n1 = HW - 2 * W - 2            # conv1 output columns (valid data in prefix)

    # --- conv1 (Cin=1): 9 shifted VPU FMAs; BN1 scale folded into w1 ---------
    w1 = w1_ref[...]                                   # (16, 9) f32
    acc = jnp.zeros((16, n1), f32)
    for ky in range(3):
        for kx in range(3):
            t = ky * 3 + kx
            s = ky * W + kx
            acc = acc + w1[:, t:t + 1] * img_ref[0, :, s:s + n1]
    acta_ref[...] = jnp.maximum(acc + b1_ref[...], 0.0)        # BN bias + ReLU

    # --- generic 3x3 valid conv: in-kernel im2col + one MXU GEMM ------------
    # Activation columns are indexed p = sy*y + sx*x; a tap (ky,kx) is the
    # static column shift ky*sy + kx*sx.  Only the "valid" columns are ever
    # read downstream, so the out-of-window columns are harmless filler.
    def conv_gemm(src_ref, n_in, w_ref, b_ref, sy, sx, relu, dst_ref):
        n_out = n_in - 2 * sy - 2 * sx
        cols = jnp.concatenate(
            [src_ref[:, ky * sy + kx * sx: ky * sy + kx * sx + n_out]
             for ky in range(3) for kx in range(3)], axis=0)    # (9*C, n_out)
        w = w_ref[...]                                          # (16, 9*C) bf16
        y = jnp.dot(w, cols.astype(w.dtype), preferred_element_type=f32)
        if b_ref is not None:
            y = y + b_ref[...]                                  # folded BN bias
        if relu:
            y = jnp.maximum(y, 0.0)
        dst_ref[:, :n_out] = y
        return n_out

    n2 = conv_gemm(acta_ref, n1, w2_ref, b2_ref, W, 1, True, actb_ref)

    # --- fused 2x2/2 MaxPool: pooled (y,x) lives at column 2*W*y + 2*x -------
    n_pool = n2 - (W + 1)
    pooled = jnp.maximum(
        jnp.maximum(actb_ref[:, 0:n_pool], actb_ref[:, 1:1 + n_pool]),
        jnp.maximum(actb_ref[:, W:W + n_pool], actb_ref[:, W + 1:W + 1 + n_pool]))
    acta_ref[:, :n_pool] = pooled

    # --- conv3..conv5 (column stride 2*W / 2 after pooling), conv6 ----------
    src, dst, n = acta_ref, actb_ref, n_pool
    for w_ref, b_ref in ((w3_ref, b3_ref), (w4_ref, b4_ref), (w5_ref, b5_ref)):
        n = conv_gemm(src, n, w_ref, b_ref, 2 * W, 2, True, dst)
        src, dst = dst, src
    n = conv_gemm(src, n, w6_ref, None, 2 * W, 2, False, dst)   # no BN / no act
    x6 = dst

    # --- global average pool over the valid conv6 grid ----------------------
    hc = (H - 4) // 2 - 8
    wc = (W - 4) // 2 - 8
    gap = jnp.zeros((16, 1), f32)
    for y in range(hc):
        for x in range(wc):
            c = 2 * W * y + 2 * x
            gap = gap + x6[:, c:c + 1]
    gap = gap * (1.0 / float(hc * wc))                           # (16, 1)

    # --- MLP head, column orientation (everything stays in VMEM/vregs) ------
    val_col = val_ref[0]                                         # (D, 1) f32
    h = (jnp.dot(f1g_ref[...], gap, preferred_element_type=f32)
         + jnp.dot(f1v_ref[...], val_col, preferred_element_type=f32)
         + f1b_ref[...])
    h = jnp.maximum(h, 0.0)
    h = jnp.dot(f2w_ref[...], h, preferred_element_type=f32) + f2b_ref[...]
    h = jnp.maximum(h, 0.0)
    h = jnp.dot(f3w_ref[...], h, preferred_element_type=f32) + f3b_ref[...]
    out_ref[0] = (max_action * jnp.tanh(h)).astype(out_ref.dtype)


# ---------------------------------------------------------------------------
# One-time parameter preprocessing (hoisted out of the per-call path)
# ---------------------------------------------------------------------------
def fold_bn(gamma, beta, mean, var, eps=1e-5):
    scale = gamma / jnp.sqrt(var + eps)
    return scale, beta - mean * scale


def prepare_params(params):
    p = {}
    s1, bb1 = fold_bn(params["bn1_gamma"], params["bn1_beta"],
                      params["bn1_mean"], params["bn1_var"])
    p["w1"] = (params["conv1_w"].reshape(16, 9) * s1[:, None]).astype(jnp.float32)
    p["b1"] = bb1.reshape(16, 1).astype(jnp.float32)
    for l in range(2, 7):
        w = params[f"conv{l}_w"]                                   # (16, 16, 3, 3) OIHW
        wmat = jnp.transpose(w, (0, 2, 3, 1)).reshape(16, -1)      # (O, (ky,kx,Cin))
        if l <= 5:                                                 # conv6 has no BN
            s, b = fold_bn(params[f"bn{l}_gamma"], params[f"bn{l}_beta"],
                           params[f"bn{l}_mean"], params[f"bn{l}_var"])
            wmat = wmat * s[:, None]
            p[f"b{l}"] = b.reshape(16, 1).astype(jnp.float32)
        p[f"w{l}"] = wmat.astype(_MXU_CONV_DTYPE)
    # fc1 split into GAP-feature part and state_val part (input order: [gap, val])
    p["f1g"] = params["fc1_w"][:, :16].astype(jnp.float32)
    p["f1v"] = params["fc1_w"][:, 16:].astype(jnp.float32)
    p["f1b"] = params["fc1_b"].reshape(-1, 1).astype(jnp.float32)
    p["f2w"] = params["fc2_w"].astype(jnp.float32)
    p["f2b"] = params["fc2_b"].reshape(-1, 1).astype(jnp.float32)
    p["f3w"] = params["fc3_w"].astype(jnp.float32)
    p["f3b"] = params["fc3_b"].reshape(-1, 1).astype(jnp.float32)
    return p


# ---------------------------------------------------------------------------
# Forward wrapper (single pallas_call)
# ---------------------------------------------------------------------------
def actor_forward(prepped, state_img_nchw, state_val, max_action):
    N, Cin, H, W = state_img_nchw.shape
    assert Cin == 1 and H >= 22 and W >= 22
    HW = H * W
    D = state_val.shape[1]
    A = prepped["f3b"].shape[0]

    # layout glue only (pure view reshapes)
    img = state_img_nchw.reshape(N, 1, HW).astype(jnp.float32)
    val = state_val.reshape(N, D, 1).astype(jnp.float32)

    names = ("w1", "b1", "w2", "b2", "w3", "b3", "w4", "b4", "w5", "b5",
             "w6", "f1g", "f1v", "f1b", "f2w", "f2b", "f3w", "f3b")
    weights = [prepped[k] for k in names]

    def _const(ndim):
        return lambda i: (0,) * ndim

    n1 = HW - 2 * W - 2
    kern = functools.partial(_actor_fused_kernel, H=H, W=W,
                             max_action=float(max_action))
    out = pl.pallas_call(
        kern,
        out_shape=jax.ShapeDtypeStruct((N, A, 1), jnp.float32),
        grid=(N,),
        in_specs=[pl.BlockSpec((1, 1, HW), lambda i: (i, 0, 0)),
                  pl.BlockSpec((1, D, 1), lambda i: (i, 0, 0))]
                 + [pl.BlockSpec(w.shape, _const(w.ndim)) for w in weights],
        out_specs=pl.BlockSpec((1, A, 1), lambda i: (i, 0, 0)),
        scratch_shapes=[pltpu.VMEM((16, n1), jnp.float32),     # ping-pong activation
                        pltpu.VMEM((16, n1), jnp.float32)],    # buffers (all layers)
        compiler_params=pltpu.CompilerParams(
            dimension_semantics=("parallel",)),                # v7x: 2 TCs share batch
    )(img, val, *weights)
    return out.reshape(N, A)


# ---------------------------------------------------------------------------
# Deterministic synthetic parameters (shapes from Actor.__init__)
# ---------------------------------------------------------------------------
def init_params(key, state_dim, action_dim):
    keys = jax.random.split(key, 40)
    ki = iter(keys)
    p = {}
    cins = [1, 16, 16, 16, 16, 16]
    for li, cin in enumerate(cins, start=1):
        p[f"conv{li}_w"] = 0.1 * jax.random.normal(next(ki), (16, cin, 3, 3), jnp.float32)
    for li in range(1, 6):  # conv6 has no BatchNorm
        p[f"bn{li}_gamma"] = 1.0 + 0.1 * jax.random.normal(next(ki), (16,), jnp.float32)
        p[f"bn{li}_beta"] = 0.1 * jax.random.normal(next(ki), (16,), jnp.float32)
        p[f"bn{li}_mean"] = 0.05 * jax.random.normal(next(ki), (16,), jnp.float32)
        p[f"bn{li}_var"] = 1.0 + 0.1 * jnp.abs(jax.random.normal(next(ki), (16,), jnp.float32))
    fin = state_dim - 1 + 16
    dims = [(fin, 400), (400, 300), (300, action_dim)]
    for li, (din, dout) in enumerate(dims, start=1):
        p[f"fc{li}_w"] = (1.0 / jnp.sqrt(din)) * jax.random.normal(next(ki), (dout, din), jnp.float32)
        p[f"fc{li}_b"] = 0.01 * jax.random.normal(next(ki), (dout,), jnp.float32)
    return p


# ---------------------------------------------------------------------------
# Pure-JAX (XLA) reference of Actor.forward in eval mode, for validation
# ---------------------------------------------------------------------------
def actor_reference(params, img_nchw, state_val, max_action, eps=1e-5):
    def conv(x, w):
        return jax.lax.conv_general_dilated(
            x, w, (1, 1), "VALID", dimension_numbers=("NCHW", "OIHW", "NCHW"))

    def bn(x, l):
        s = params[f"bn{l}_gamma"] / jnp.sqrt(params[f"bn{l}_var"] + eps)
        b = params[f"bn{l}_beta"] - params[f"bn{l}_mean"] * s
        return x * s[None, :, None, None] + b[None, :, None, None]

    x = jax.nn.relu(bn(conv(img_nchw, params["conv1_w"]), 1))
    x = jax.nn.relu(bn(conv(x, params["conv2_w"]), 2))
    x = jax.lax.reduce_window(x, -jnp.inf, jax.lax.max,
                              (1, 1, 2, 2), (1, 1, 2, 2), "VALID")
    x = jax.nn.relu(bn(conv(x, params["conv3_w"]), 3))
    x = jax.nn.relu(bn(conv(x, params["conv4_w"]), 4))
    x = jax.nn.relu(bn(conv(x, params["conv5_w"]), 5))
    x = conv(x, params["conv6_w"])
    x = jnp.mean(x, axis=(2, 3))                              # GAP -> (N, 16)
    x = jnp.concatenate([x, state_val], axis=1)
    x = jax.nn.relu(x @ params["fc1_w"].T + params["fc1_b"])
    x = jax.nn.relu(x @ params["fc2_w"].T + params["fc2_b"])
    return max_action * jnp.tanh(x @ params["fc3_w"].T + params["fc3_b"])


if __name__ == "__main__":
    key = jax.random.PRNGKey(0)
    state_dim, action_dim, max_action = 5, 2, 2.0
    N, H, W = 2, 24, 24          # 24 -> 22 -> 20 -> pool 10 -> 8 -> 6 -> 4 -> 2

    kp, kimg, kval = jax.random.split(key, 3)
    params = init_params(kp, state_dim, action_dim)
    state_img = jax.random.normal(kimg, (N, 1, H, W), jnp.float32)        # NCHW
    state_val = jax.random.normal(kval, (N, state_dim - 1), jnp.float32)  # (N, state_dim-1)

    prepped = prepare_params(params)     # one-time BN fold / weight repack / casts

    fwd = jax.jit(lambda p, a, b: actor_forward(p, a, b, max_action))
    out = jax.block_until_ready(fwd(prepped, state_img, state_val))

    assert out.shape == (N, action_dim), out.shape
    assert bool(jnp.all(jnp.isfinite(out)))
    assert bool(jnp.all(jnp.abs(out) <= max_action + 1e-5))

    ref = actor_reference(params, state_img, state_val, max_action)
    err = float(jnp.max(jnp.abs(out - ref)))
    # bf16 conv-GEMM operands (f32 accumulation) give ~1e-2 worst-case error here
    assert err < 0.15, f"mismatch vs pure-JAX reference: max abs err {err}"

    print("KERNEL_OK")
</pallas_src>

<mosaic_0001>
module attributes {stable_mosaic.version = 11 : i64} {
  func.func @_actor_fused_kernel(%arg0: i32, %arg1: memref<1x1x576xf32, #tpu.memory_space<vmem>>, %arg2: memref<1x4x1xf32, #tpu.memory_space<vmem>>, %arg3: memref<16x9xf32, #tpu.memory_space<vmem>>, %arg4: memref<16x1xf32, #tpu.memory_space<vmem>>, %arg5: memref<16x144xbf16, #tpu.memory_space<vmem>>, %arg6: memref<16x1xf32, #tpu.memory_space<vmem>>, %arg7: memref<16x144xbf16, #tpu.memory_space<vmem>>, %arg8: memref<16x1xf32, #tpu.memory_space<vmem>>, %arg9: memref<16x144xbf16, #tpu.memory_space<vmem>>, %arg10: memref<16x1xf32, #tpu.memory_space<vmem>>, %arg11: memref<16x144xbf16, #tpu.memory_space<vmem>>, %arg12: memref<16x1xf32, #tpu.memory_space<vmem>>, %arg13: memref<16x144xbf16, #tpu.memory_space<vmem>>, %arg14: memref<400x16xf32, #tpu.memory_space<vmem>>, %arg15: memref<400x4xf32, #tpu.memory_space<vmem>>, %arg16: memref<400x1xf32, #tpu.memory_space<vmem>>, %arg17: memref<300x400xf32, #tpu.memory_space<vmem>>, %arg18: memref<300x1xf32, #tpu.memory_space<vmem>>, %arg19: memref<2x300xf32, #tpu.memory_space<vmem>>, %arg20: memref<2x1xf32, #tpu.memory_space<vmem>>, %arg21: memref<1x2x1xf32, #tpu.memory_space<vmem>>, %arg22: memref<16x526xf32, #tpu.memory_space<vmem>>, %arg23: memref<16x526xf32, #tpu.memory_space<vmem>>) attributes {dimension_semantics = [#tpu.dimension_semantics<parallel>], iteration_bounds = array<i64: 2>, scalar_prefetch = 0 : i64, scratch_operands = 2 : i64, tpu.core_type = #tpu.core_type<tc>, window_params = [{transform_indices = @transform_0, window_bounds = array<i64: 1, 1, 576>}, {transform_indices = @transform_1, window_bounds = array<i64: 1, 4, 1>}, {pipeline_mode = #tpu.pipeline_mode<synchronous>, transform_indices = @transform_2, window_bounds = array<i64: 16, 9>}, {pipeline_mode = #tpu.pipeline_mode<synchronous>, transform_indices = @transform_3, window_bounds = array<i64: 16, 1>}, {pipeline_mode = #tpu.pipeline_mode<synchronous>, transform_indices = @transform_4, window_bounds = array<i64: 16, 144>}, {pipeline_mode = #tpu.pipeline_mode<synchronous>, transform_indices = @transform_5, window_bounds = array<i64: 16, 1>}, {pipeline_mode = #tpu.pipeline_mode<synchronous>, transform_indices = @transform_6, window_bounds = array<i64: 16, 144>}, {pipeline_mode = #tpu.pipeline_mode<synchronous>, transform_indices = @transform_7, window_bounds = array<i64: 16, 1>}, {pipeline_mode = #tpu.pipeline_mode<synchronous>, transform_indices = @transform_8, window_bounds = array<i64: 16, 144>}, {pipeline_mode = #tpu.pipeline_mode<synchronous>, transform_indices = @transform_9, window_bounds = array<i64: 16, 1>}, {pipeline_mode = #tpu.pipeline_mode<synchronous>, transform_indices = @transform_10, window_bounds = array<i64: 16, 144>}, {pipeline_mode = #tpu.pipeline_mode<synchronous>, transform_indices = @transform_11, window_bounds = array<i64: 16, 1>}, {pipeline_mode = #tpu.pipeline_mode<synchronous>, transform_indices = @transform_12, window_bounds = array<i64: 16, 144>}, {pipeline_mode = #tpu.pipeline_mode<synchronous>, transform_indices = @transform_13, window_bounds = array<i64: 400, 16>}, {pipeline_mode = #tpu.pipeline_mode<synchronous>, transform_indices = @transform_14, window_bounds = array<i64: 400, 4>}, {pipeline_mode = #tpu.pipeline_mode<synchronous>, transform_indices = @transform_15, window_bounds = array<i64: 400, 1>}, {pipeline_mode = #tpu.pipeline_mode<synchronous>, transform_indices = @transform_16, window_bounds = array<i64: 300, 400>}, {pipeline_mode = #tpu.pipeline_mode<synchronous>, transform_indices = @transform_17, window_bounds = array<i64: 300, 1>}, {pipeline_mode = #tpu.pipeline_mode<synchronous>, transform_indices = @transform_18, window_bounds = array<i64: 2, 300>}, {pipeline_mode = #tpu.pipeline_mode<synchronous>, transform_indices = @transform_19, window_bounds = array<i64: 2, 1>}, {transform_indices = @transform_20, window_bounds = array<i64: 1, 2, 1>}]} {
    %c0 = arith.constant 0 : index
    %c0_0 = arith.constant 0 : index
    %0 = vector.load %arg3[%c0, %c0_0] : memref<16x9xf32, #tpu.memory_space<vmem>>, vector<16x9xf32>
    %cst = arith.constant 0.000000e+00 : f32
    %1 = vector.broadcast %cst : f32 to vector<16x526xf32>
    %2 = vector.extract_strided_slice %0 {offsets = [0, 0], sizes = [16, 1], strides = [1, 1]} : vector<16x9xf32> to vector<16x1xf32>
    %c0_1 = arith.constant 0 : index
    %c0_2 = arith.constant 0 : index
    %c0_3 = arith.constant 0 : index
    %3 = vector.load %arg1[%c0_1, %c0_2, %c0_3] : memref<1x1x576xf32, #tpu.memory_space<vmem>>, vector<1x1x526xf32>
    %4 = vector.shape_cast %3 : vector<1x1x526xf32> to vector<1x526xf32>
    %5 = vector.broadcast %2 : vector<16x1xf32> to vector<16x526xf32>
    %6 = vector.broadcast %4 : vector<1x526xf32> to vector<16x526xf32>
    %7 = arith.mulf %5, %6 : vector<16x526xf32>
    %8 = arith.addf %1, %7 : vector<16x526xf32>
    %9 = vector.extract_strided_slice %0 {offsets = [0, 1], sizes = [16, 1], strides = [1, 1]} : vector<16x9xf32> to vector<16x1xf32>
    %c0_4 = arith.constant 0 : index
    %c0_5 = arith.constant 0 : index
    %c1 = arith.constant 1 : index
    %10 = vector.load %arg1[%c0_4, %c0_5, %c1] : memref<1x1x576xf32, #tpu.memory_space<vmem>>, vector<1x1x526xf32>
    %11 = vector.shape_cast %10 : vector<1x1x526xf32> to vector<1x526xf32>
    %12 = vector.broadcast %9 : vector<16x1xf32> to vector<16x526xf32>
    %13 = vector.broadcast %11 : vector<1x526xf32> to vector<16x526xf32>
    %14 = arith.mulf %12, %13 : vector<16x526xf32>
    %15 = arith.addf %8, %14 : vector<16x526xf32>
    %16 = vector.extract_strided_slice %0 {offsets = [0, 2], sizes = [16, 1], strides = [1, 1]} : vector<16x9xf32> to vector<16x1xf32>
    %c0_6 = arith.constant 0 : index
    %c0_7 = arith.constant 0 : index
    %c2 = arith.constant 2 : index
    %17 = vector.load %arg1[%c0_6, %c0_7, %c2] : memref<1x1x576xf32, #tpu.memory_space<vmem>>, vector<1x1x526xf32>
    %18 = vector.shape_cast %17 : vector<1x1x526xf32> to vector<1x526xf32>
    %19 = vector.broadcast %16 : vector<16x1xf32> to vector<16x526xf32>
    %20 = vector.broadcast %18 : vector<1x526xf32> to vector<16x526xf32>
    %21 = arith.mulf %19, %20 : vector<16x526xf32>
    %22 = arith.addf %15, %21 : vector<16x526xf32>
    %23 = vector.extract_strided_slice %0 {offsets = [0, 3], sizes = [16, 1], strides = [1, 1]} : vector<16x9xf32> to vector<16x1xf32>
    %c0_8 = arith.constant 0 : index
    %c0_9 = arith.constant 0 : index
    %c24 = arith.constant 24 : index
    %24 = vector.load %arg1[%c0_8, %c0_9, %c24] : memref<1x1x576xf32, #tpu.memory_space<vmem>>, vector<1x1x526xf32>
    %25 = vector.shape_cast %24 : vector<1x1x526xf32> to vector<1x526xf32>
    %26 = vector.broadcast %23 : vector<16x1xf32> to vector<16x526xf32>
    %27 = vector.broadcast %25 : vector<1x526xf32> to vector<16x526xf32>
    %28 = arith.mulf %26, %27 : vector<16x526xf32>
    %29 = arith.addf %22, %28 : vector<16x526xf32>
    %30 = vector.extract_strided_slice %0 {offsets = [0, 4], sizes = [16, 1], strides = [1, 1]} : vector<16x9xf32> to vector<16x1xf32>
    %c0_10 = arith.constant 0 : index
    %c0_11 = arith.constant 0 : index
    %c25 = arith.constant 25 : index
    %31 = vector.load %arg1[%c0_10, %c0_11, %c25] : memref<1x1x576xf32, #tpu.memory_space<vmem>>, vector<1x1x526xf32>
    %32 = vector.shape_cast %31 : vector<1x1x526xf32> to vector<1x526xf32>
    %33 = vector.broadcast %30 : vector<16x1xf32> to vector<16x526xf32>
    %34 = vector.broadcast %32 : vector<1x526xf32> to vector<16x526xf32>
    %35 = arith.mulf %33, %34 : vector<16x526xf32>
    %36 = arith.addf %29, %35 : vector<16x526xf32>
    %37 = vector.extract_strided_slice %0 {offsets = [0, 5], sizes = [16, 1], strides = [1, 1]} : vector<16x9xf32> to vector<16x1xf32>
    %c0_12 = arith.constant 0 : index
    %c0_13 = arith.constant 0 : index
    %c26 = arith.constant 26 : index
    %38 = vector.load %arg1[%c0_12, %c0_13, %c26] : memref<1x1x576xf32, #tpu.memory_space<vmem>>, vector<1x1x526xf32>
    %39 = vector.shape_cast %38 : vector<1x1x526xf32> to vector<1x526xf32>
    %40 = vector.broadcast %37 : vector<16x1xf32> to vector<16x526xf32>
    %41 = vector.broadcast %39 : vector<1x526xf32> to vector<16x526xf32>
    %42 = arith.mulf %40, %41 : vector<16x526xf32>
    %43 = arith.addf %36, %42 : vector<16x526xf32>
    %44 = vector.extract_strided_slice %0 {offsets = [0, 6], sizes = [16, 1], strides = [1, 1]} : vector<16x9xf32> to vector<16x1xf32>
    %c0_14 = arith.constant 0 : index
    %c0_15 = arith.constant 0 : index
    %c48 = arith.constant 48 : index
    %45 = vector.load %arg1[%c0_14, %c0_15, %c48] : memref<1x1x576xf32, #tpu.memory_space<vmem>>, vector<1x1x526xf32>
    %46 = vector.shape_cast %45 : vector<1x1x526xf32> to vector<1x526xf32>
    %47 = vector.broadcast %44 : vector<16x1xf32> to vector<16x526xf32>
    %48 = vector.broadcast %46 : vector<1x526xf32> to vector<16x526xf32>
    %49 = arith.mulf %47, %48 : vector<16x526xf32>
    %50 = arith.addf %43, %49 : vector<16x526xf32>
    %51 = vector.extract_strided_slice %0 {offsets = [0, 7], sizes = [16, 1], strides = [1, 1]} : vector<16x9xf32> to vector<16x1xf32>
    %c0_16 = arith.constant 0 : index
    %c0_17 = arith.constant 0 : index
    %c49 = arith.constant 49 : index
    %52 = vector.load %arg1[%c0_16, %c0_17, %c49] : memref<1x1x576xf32, #tpu.memory_space<vmem>>, vector<1x1x526xf32>
    %53 = vector.shape_cast %52 : vector<1x1x526xf32> to vector<1x526xf32>
    %54 = vector.broadcast %51 : vector<16x1xf32> to vector<16x526xf32>
    %55 = vector.broadcast %53 : vector<1x526xf32> to vector<16x526xf32>
    %56 = arith.mulf %54, %55 : vector<16x526xf32>
    %57 = arith.addf %50, %56 : vector<16x526xf32>
    %58 = vector.extract_strided_slice %0 {offsets = [0, 8], sizes = [16, 1], strides = [1, 1]} : vector<16x9xf32> to vector<16x1xf32>
    %c0_18 = arith.constant 0 : index
    %c0_19 = arith.constant 0 : index
    %c50 = arith.constant 50 : index
    %59 = vector.load %arg1[%c0_18, %c0_19, %c50] : memref<1x1x576xf32, #tpu.memory_space<vmem>>, vector<1x1x526xf32>
    %60 = vector.shape_cast %59 : vector<1x1x526xf32> to vector<1x526xf32>
    %61 = vector.broadcast %58 : vector<16x1xf32> to vector<16x526xf32>
    %62 = vector.broadcast %60 : vector<1x526xf32> to vector<16x526xf32>
    %63 = arith.mulf %61, %62 : vector<16x526xf32>
    %64 = arith.addf %57, %63 : vector<16x526xf32>
    %c0_20 = arith.constant 0 : index
    %c0_21 = arith.constant 0 : index
    %65 = vector.load %arg4[%c0_20, %c0_21] : memref<16x1xf32, #tpu.memory_space<vmem>>, vector<16x1xf32>
    %66 = vector.broadcast %65 : vector<16x1xf32> to vector<16x526xf32>
    %67 = arith.addf %64, %66 : vector<16x526xf32>
    %cst_22 = arith.constant 0.000000e+00 : f32
    %68 = vector.broadcast %cst_22 : f32 to vector<16x526xf32>
    %69 = arith.maximumf %67, %68 : vector<16x526xf32>
    %c0_23 = arith.constant 0 : index
    %c0_24 = arith.constant 0 : index
    %70 = vector.load %arg22[%c0_23, %c0_24] : memref<16x526xf32, #tpu.memory_space<vmem>>, vector<16x526xf32>
    tpu.vector_store %arg22[%c0_23, %c0_24], %69 {strides = array<i32>} : memref<16x526xf32, #tpu.memory_space<vmem>>, vector<16x526xf32>,
    %c0_25 = arith.constant 0 : index
    %c0_26 = arith.constant 0 : index
    %71 = vector.load %arg22[%c0_25, %c0_26] : memref<16x526xf32, #tpu.memory_space<vmem>>, vector<16x476xf32>
    %c0_27 = arith.constant 0 : index
    %c1_28 = arith.constant 1 : index
    %72 = vector.load %arg22[%c0_27, %c1_28] : memref<16x526xf32, #tpu.memory_space<vmem>>, vector<16x476xf32>
    %c0_29 = arith.constant 0 : index
    %c2_30 = arith.constant 2 : index
    %73 = vector.load %arg22[%c0_29, %c2_30] : memref<16x526xf32, #tpu.memory_space<vmem>>, vector<16x476xf32>
    %c0_31 = arith.constant 0 : index
    %c24_32 = arith.constant 24 : index
    %74 = vector.load %arg22[%c0_31, %c24_32] : memref<16x526xf32, #tpu.memory_space<vmem>>, vector<16x476xf32>
    %c0_33 = arith.constant 0 : index
    %c25_34 = arith.constant 25 : index
    %75 = vector.load %arg22[%c0_33, %c25_34] : memref<16x526xf32, #tpu.memory_space<vmem>>, vector<16x476xf32>
    %c0_35 = arith.constant 0 : index
    %c26_36 = arith.constant 26 : index
    %76 = vector.load %arg22[%c0_35, %c26_36] : memref<16x526xf32, #tpu.memory_space<vmem>>, vector<16x476xf32>
    %c0_37 = arith.constant 0 : index
    %c48_38 = arith.constant 48 : index
    %77 = vector.load %arg22[%c0_37, %c48_38] : memref<16x526xf32, #tpu.memory_space<vmem>>, vector<16x476xf32>
    %c0_39 = arith.constant 0 : index
    %c49_40 = arith.constant 49 : index
    %78 = vector.load %arg22[%c0_39, %c49_40] : memref<16x526xf32, #tpu.memory_space<vmem>>, vector<16x476xf32>
    %c0_41 = arith.constant 0 : index
    %c50_42 = arith.constant 50 : index
    %79 = vector.load %arg22[%c0_41, %c50_42] : memref<16x526xf32, #tpu.memory_space<vmem>>, vector<16x476xf32>
    %80 = tpu.concatenate %71, %72, %73, %74, %75, %76, %77, %78, %79 in 0 : vector<16x476xf32>, vector<16x476xf32>, vector<16x476xf32>, vector<16x476xf32>, vector<16x476xf32>, vector<16x476xf32>, vector<16x476xf32>, vector<16x476xf32>, vector<16x476xf32> -> vector<144x476xf32>
    %c0_43 = arith.constant 0 : index
    %c0_44 = arith.constant 0 : index
    %81 = vector.load %arg5[%c0_43, %c0_44] : memref<16x144xbf16, #tpu.memory_space<vmem>>, vector<16x144xbf16>
    %82 = arith.truncf %80 : vector<144x476xf32> to vector<144x476xbf16>
    %cst_45 = arith.constant dense<0.000000e+00> : vector<16x476xf32>
    %83 = tpu.matmul %81, %82, %cst_45 {dimension_numbers = #tpu.dot_dimension_numbers<[1], [0], [0], [1], [0, 0, 1, 1], [], []>} : vector<16x144xbf16>, vector<144x476xbf16>, vector<16x476xf32> -> vector<16x476xf32>
    %c0_46 = arith.constant 0 : index
    %c0_47 = arith.constant 0 : index
    %84 = vector.load %arg6[%c0_46, %c0_47] : memref<16x1xf32, #tpu.memory_space<vmem>>, vector<16x1xf32>
    %85 = vector.broadcast %84 : vector<16x1xf32> to vector<16x476xf32>
    %86 = arith.addf %83, %85 : vector<16x476xf32>
    %cst_48 = arith.constant 0.000000e+00 : f32
    %87 = vector.broadcast %cst_48 : f32 to vector<16x476xf32>
    %88 = arith.maximumf %86, %87 : vector<16x476xf32>
    %c0_49 = arith.constant 0 : index
    %c0_50 = arith.constant 0 : index
    %89 = vector.load %arg23[%c0_49, %c0_50] : memref<16x526xf32, #tpu.memory_space<vmem>>, vector<16x476xf32>
    tpu.vector_store %arg23[%c0_49, %c0_50], %88 {strides = array<i32>} : memref<16x526xf32, #tpu.memory_space<vmem>>, vector<16x476xf32>,
    %c0_51 = arith.constant 0 : index
    %c0_52 = arith.constant 0 : index
    %90 = vector.load %arg23[%c0_51, %c0_52] : memref<16x526xf32, #tpu.memory_space<vmem>>, vector<16x451xf32>
    %c0_53 = arith.constant 0 : index
    %c1_54 = arith.constant 1 : index
    %91 = vector.load %arg23[%c0_53, %c1_54] : memref<16x526xf32, #tpu.memory_space<vmem>>, vector<16x451xf32>
    %92 = arith.maximumf %90, %91 : vector<16x451xf32>
    %c0_55 = arith.constant 0 : index
    %c24_56 = arith.constant 24 : index
    %93 = vector.load %arg23[%c0_55, %c24_56] : memref<16x526xf32, #tpu.memory_space<vmem>>, vector<16x451xf32>
    %c0_57 = arith.constant 0 : index
    %c25_58 = arith.constant 25 : index
    %94 = vector.load %arg23[%c0_57, %c25_58] : memref<16x526xf32, #tpu.memory_space<vmem>>, vector<16x451xf32>
    %95 = arith.maximumf %93, %94 : vector<16x451xf32>
    %96 = arith.maximumf %92, %95 : vector<16x451xf32>
    %c0_59 = arith.constant 0 : index
    %c0_60 = arith.constant 0 : index
    %97 = vector.load %arg22[%c0_59, %c0_60] : memref<16x526xf32, #tpu.memory_space<vmem>>, vector<16x451xf32>
    tpu.vector_store %arg22[%c0_59, %c0_60], %96 {strides = array<i32>} : memref<16x526xf32, #tpu.memory_space<vmem>>, vector<16x451xf32>,
    %c0_61 = arith.constant 0 : index
    %c0_62 = arith.constant 0 : index
    %98 = vector.load %arg22[%c0_61, %c0_62] : memref<16x526xf32, #tpu.memory_space<vmem>>, vector<16x351xf32>
    %c0_63 = arith.constant 0 : index
    %c2_64 = arith.constant 2 : index
    %99 = vector.load %arg22[%c0_63, %c2_64] : memref<16x526xf32, #tpu.memory_space<vmem>>, vector<16x351xf32>
    %c0_65 = arith.constant 0 : index
    %c4 = arith.constant 4 : index
    %100 = vector.load %arg22[%c0_65, %c4] : memref<16x526xf32, #tpu.memory_space<vmem>>, vector<16x351xf32>
    %c0_66 = arith.constant 0 : index
    %c48_67 = arith.constant 48 : index
    %101 = vector.load %arg22[%c0_66, %c48_67] : memref<16x526xf32, #tpu.memory_space<vmem>>, vector<16x351xf32>
    %c0_68 = arith.constant 0 : index
    %c50_69 = arith.constant 50 : index
    %102 = vector.load %arg22[%c0_68, %c50_69] : memref<16x526xf32, #tpu.memory_space<vmem>>, vector<16x351xf32>
    %c0_70 = arith.constant 0 : index
    %c52 = arith.constant 52 : index
    %103 = vector.load %arg22[%c0_70, %c52] : memref<16x526xf32, #tpu.memory_space<vmem>>, vector<16x351xf32>
    %c0_71 = arith.constant 0 : index
    %c96 = arith.constant 96 : index
    %104 = vector.load %arg22[%c0_71, %c96] : memref<16x526xf32, #tpu.memory_space<vmem>>, vector<16x351xf32>
    %c0_72 = arith.constant 0 : index
    %c98 = arith.constant 98 : index
    %105 = vector.load %arg22[%c0_72, %c98] : memref<16x526xf32, #tpu.memory_space<vmem>>, vector<16x351xf32>
    %c0_73 = arith.constant 0 : index
    %c100 = arith.constant 100 : index
    %106 = vector.load %arg22[%c0_73, %c100] : memref<16x526xf32, #tpu.memory_space<vmem>>, vector<16x351xf32>
    %107 = tpu.concatenate %98, %99, %100, %101, %102, %103, %104, %105, %106 in 0 : vector<16x351xf32>, vector<16x351xf32>, vector<16x351xf32>, vector<16x351xf32>, vector<16x351xf32>, vector<16x351xf32>, vector<16x351xf32>, vector<16x351xf32>, vector<16x351xf32> -> vector<144x351xf32>
    %c0_74 = arith.constant 0 : index
    %c0_75 = arith.constant 0 : index
    %108 = vector.load %arg7[%c0_74, %c0_75] : memref<16x144xbf16, #tpu.memory_space<vmem>>, vector<16x144xbf16>
    %109 = arith.truncf %107 : vector<144x351xf32> to vector<144x351xbf16>
    %cst_76 = arith.constant dense<0.000000e+00> : vector<16x351xf32>
    %110 = tpu.matmul %108, %109, %cst_76 {dimension_numbers = #tpu.dot_dimension_numbers<[1], [0], [0], [1], [0, 0, 1, 1], [], []>} : vector<16x144xbf16>, vector<144x351xbf16>, vector<16x351xf32> -> vector<16x351xf32>
    %c0_77 = arith.constant 0 : index
    %c0_78 = arith.constant 0 : index
    %111 = vector.load %arg8[%c0_77, %c0_78] : memref<16x1xf32, #tpu.memory_space<vmem>>, vector<16x1xf32>
    %112 = vector.broadcast %111 : vector<16x1xf32> to vector<16x351xf32>
    %113 = arith.addf %110, %112 : vector<16x351xf32>
    %cst_79 = arith.constant 0.000000e+00 : f32
    %114 = vector.broadcast %cst_79 : f32 to vector<16x351xf32>
    %115 = arith.maximumf %113, %114 : vector<16x351xf32>
    %c0_80 = arith.constant 0 : index
    %c0_81 = arith.constant 0 : index
    %116 = vector.load %arg23[%c0_80, %c0_81] : memref<16x526xf32, #tpu.memory_space<vmem>>, vector<16x351xf32>
    tpu.vector_store %arg23[%c0_80, %c0_81], %115 {strides = array<i32>} : memref<16x526xf32, #tpu.memory_space<vmem>>, vector<16x351xf32>,
    %c0_82 = arith.constant 0 : index
    %c0_83 = arith.constant 0 : index
    %117 = vector.load %arg23[%c0_82, %c0_83] : memref<16x526xf32, #tpu.memory_space<vmem>>, vector<16x251xf32>
    %c0_84 = arith.constant 0 : index
    %c2_85 = arith.constant 2 : index
    %118 = vector.load %arg23[%c0_84, %c2_85] : memref<16x526xf32, #tpu.memory_space<vmem>>, vector<16x251xf32>
    %c0_86 = arith.constant 0 : index
    %c4_87 = arith.constant 4 : index
    %119 = vector.load %arg23[%c0_86, %c4_87] : memref<16x526xf32, #tpu.memory_space<vmem>>, vector<16x251xf32>
    %c0_88 = arith.constant 0 : index
    %c48_89 = arith.constant 48 : index
    %120 = vector.load %arg23[%c0_88, %c48_89] : memref<16x526xf32, #tpu.memory_space<vmem>>, vector<16x251xf32>
    %c0_90 = arith.constant 0 : index
    %c50_91 = arith.constant 50 : index
    %121 = vector.load %arg23[%c0_90, %c50_91] : memref<16x526xf32, #tpu.memory_space<vmem>>, vector<16x251xf32>
    %c0_92 = arith.constant 0 : index
    %c52_93 = arith.constant 52 : index
    %122 = vector.load %arg23[%c0_92, %c52_93] : memref<16x526xf32, #tpu.memory_space<vmem>>, vector<16x251xf32>
    %c0_94 = arith.constant 0 : index
    %c96_95 = arith.constant 96 : index
    %123 = vector.load %arg23[%c0_94, %c96_95] : memref<16x526xf32, #tpu.memory_space<vmem>>, vector<16x251xf32>
    %c0_96 = arith.constant 0 : index
    %c98_97 = arith.constant 98 : index
    %124 = vector.load %arg23[%c0_96, %c98_97] : memref<16x526xf32, #tpu.memory_space<vmem>>, vector<16x251xf32>
    %c0_98 = arith.constant 0 : index
    %c100_99 = arith.constant 100 : index
    %125 = vector.load %arg23[%c0_98, %c100_99] : memref<16x526xf32, #tpu.memory_space<vmem>>, vector<16x251xf32>
    %126 = tpu.concatenate %117, %118, %119, %120, %121, %122, %123, %124, %125 in 0 : vector<16x251xf32>, vector<16x251xf32>, vector<16x251xf32>, vector<16x251xf32>, vector<16x251xf32>, vector<16x251xf32>, vector<16x251xf32>, vector<16x251xf32>, vector<16x251xf32> -> vector<144x251xf32>
    %c0_100 = arith.constant 0 : index
    %c0_101 = arith.constant 0 : index
    %127 = vector.load %arg9[%c0_100, %c0_101] : memref<16x144xbf16, #tpu.memory_space<vmem>>, vector<16x144xbf16>
    %128 = arith.truncf %126 : vector<144x251xf32> to vector<144x251xbf16>
    %cst_102 = arith.constant dense<0.000000e+00> : vector<16x251xf32>
    %129 = tpu.matmul %127, %128, %cst_102 {dimension_numbers = #tpu.dot_dimension_numbers<[1], [0], [0], [1], [0, 0, 1, 1], [], []>} : vector<16x144xbf16>, vector<144x251xbf16>, vector<16x251xf32> -> vector<16x251xf32>
    %c0_103 = arith.constant 0 : index
    %c0_104 = arith.constant 0 : index
    %130 = vector.load %arg10[%c0_103, %c0_104] : memref<16x1xf32, #tpu.memory_space<vmem>>, vector<16x1xf32>
    %131 = vector.broadcast %130 : vector<16x1xf32> to vector<16x251xf32>
    %132 = arith.addf %129, %131 : vector<16x251xf32>
    %cst_105 = arith.constant 0.000000e+00 : f32
    %133 = vector.broadcast %cst_105 : f32 to vector<16x251xf32>
    %134 = arith.maximumf %132, %133 : vector<16x251xf32>
    %c0_106 = arith.constant 0 : index
    %c0_107 = arith.constant 0 : index
    %135 = vector.load %arg22[%c0_106, %c0_107] : memref<16x526xf32, #tpu.memory_space<vmem>>, vector<16x251xf32>
    tpu.vector_store %arg22[%c0_106, %c0_107], %134 {strides = array<i32>} : memref<16x526xf32, #tpu.memory_space<vmem>>, vector<16x251xf32>,
    %c0_108 = arith.constant 0 : index
    %c0_109 = arith.constant 0 : index
    %136 = vector.load %arg22[%c0_108, %c0_109] : memref<16x526xf32, #tpu.memory_space<vmem>>, vector<16x151xf32>
    %c0_110 = arith.constant 0 : index
    %c2_111 = arith.constant 2 : index
    %137 = vector.load %arg22[%c0_110, %c2_111] : memref<16x526xf32, #tpu.memory_space<vmem>>, vector<16x151xf32>
    %c0_112 = arith.constant 0 : index
    %c4_113 = arith.constant 4 : index
    %138 = vector.load %arg22[%c0_112, %c4_113] : memref<16x526xf32, #tpu.memory_space<vmem>>, vector<16x151xf32>
    %c0_114 = arith.constant 0 : index
    %c48_115 = arith.constant 48 : index
    %139 = vector.load %arg22[%c0_114, %c48_115] : memref<16x526xf32, #tpu.memory_space<vmem>>, vector<16x151xf32>
    %c0_116 = arith.constant 0 : index
    %c50_117 = arith.constant 50 : index
    %140 = vector.load %arg22[%c0_116, %c50_117] : memref<16x526xf32, #tpu.memory_space<vmem>>, vector<16x151xf32>
    %c0_118 = arith.constant 0 : index
    %c52_119 = arith.constant 52 : index
    %141 = vector.load %arg22[%c0_118, %c52_119] : memref<16x526xf32, #tpu.memory_space<vmem>>, vector<16x151xf32>
    %c0_120 = arith.constant 0 : index
    %c96_121 = arith.constant 96 : index
    %142 = vector.load %arg22[%c0_120, %c96_121] : memref<16x526xf32, #tpu.memory_space<vmem>>, vector<16x151xf32>
    %c0_122 = arith.constant 0 : index
    %c98_123 = arith.constant 98 : index
    %143 = vector.load %arg22[%c0_122, %c98_123] : memref<16x526xf32, #tpu.memory_space<vmem>>, vector<16x151xf32>
    %c0_124 = arith.constant 0 : index
    %c100_125 = arith.constant 100 : index
    %144 = vector.load %arg22[%c0_124, %c100_125] : memref<16x526xf32, #tpu.memory_space<vmem>>, vector<16x151xf32>
    %145 = tpu.concatenate %136, %137, %138, %139, %140, %141, %142, %143, %144 in 0 : vector<16x151xf32>, vector<16x151xf32>, vector<16x151xf32>, vector<16x151xf32>, vector<16x151xf32>, vector<16x151xf32>, vector<16x151xf32>, vector<16x151xf32>, vector<16x151xf32> -> vector<144x151xf32>
    %c0_126 = arith.constant 0 : index
    %c0_127 = arith.constant 0 : index
    %146 = vector.load %arg11[%c0_126, %c0_127] : memref<16x144xbf16, #tpu.memory_space<vmem>>, vector<16x144xbf16>
    %147 = arith.truncf %145 : vector<144x151xf32> to vector<144x151xbf16>
    %cst_128 = arith.constant dense<0.000000e+00> : vector<16x151xf32>
    %148 = tpu.matmul %146, %147, %cst_128 {dimension_numbers = #tpu.dot_dimension_numbers<[1], [0], [0], [1], [0, 0, 1, 1], [], []>} : vector<16x144xbf16>, vector<144x151xbf16>, vector<16x151xf32> -> vector<16x151xf32>
    %c0_129 = arith.constant 0 : index
    %c0_130 = arith.constant 0 : index
    %149 = vector.load %arg12[%c0_129, %c0_130] : memref<16x1xf32, #tpu.memory_space<vmem>>, vector<16x1xf32>
    %150 = vector.broadcast %149 : vector<16x1xf32> to vector<16x151xf32>
    %151 = arith.addf %148, %150 : vector<16x151xf32>
    %cst_131 = arith.constant 0.000000e+00 : f32
    %152 = vector.broadcast %cst_131 : f32 to vector<16x151xf32>
    %153 = arith.maximumf %151, %152 : vector<16x151xf32>
    %c0_132 = arith.constant 0 : index
    %c0_133 = arith.constant 0 : index
    %154 = vector.load %arg23[%c0_132, %c0_133] : memref<16x526xf32, #tpu.memory_space<vmem>>, vector<16x151xf32>
    tpu.vector_store %arg23[%c0_132, %c0_133], %153 {strides = array<i32>} : memref<16x526xf32, #tpu.memory_space<vmem>>, vector<16x151xf32>,
    %c0_134 = arith.constant 0 : index
    %c0_135 = arith.constant 0 : index
    %155 = vector.load %arg23[%c0_134, %c0_135] : memref<16x526xf32, #tpu.memory_space<vmem>>, vector<16x51xf32>
    %c0_136 = arith.constant 0 : index
    %c2_137 = arith.constant 2 : index
    %156 = vector.load %arg23[%c0_136, %c2_137] : memref<16x526xf32, #tpu.memory_space<vmem>>, vector<16x51xf32>
    %c0_138 = arith.constant 0 : index
    %c4_139 = arith.constant 4 : index
    %157 = vector.load %arg23[%c0_138, %c4_139] : memref<16x526xf32, #tpu.memory_space<vmem>>, vector<16x51xf32>
    %c0_140 = arith.constant 0 : index
    %c48_141 = arith.constant 48 : index
    %158 = vector.load %arg23[%c0_140, %c48_141] : memref<16x526xf32, #tpu.memory_space<vmem>>, vector<16x51xf32>
    %c0_142 = arith.constant 0 : index
    %c50_143 = arith.constant 50 : index
    %159 = vector.load %arg23[%c0_142, %c50_143] : memref<16x526xf32, #tpu.memory_space<vmem>>, vector<16x51xf32>
    %c0_144 = arith.constant 0 : index
    %c52_145 = arith.constant 52 : index
    %160 = vector.load %arg23[%c0_144, %c52_145] : memref<16x526xf32, #tpu.memory_space<vmem>>, vector<16x51xf32>
    %c0_146 = arith.constant 0 : index
    %c96_147 = arith.constant 96 : index
    %161 = vector.load %arg23[%c0_146, %c96_147] : memref<16x526xf32, #tpu.memory_space<vmem>>, vector<16x51xf32>
    %c0_148 = arith.constant 0 : index
    %c98_149 = arith.constant 98 : index
    %162 = vector.load %arg23[%c0_148, %c98_149] : memref<16x526xf32, #tpu.memory_space<vmem>>, vector<16x51xf32>
    %c0_150 = arith.constant 0 : index
    %c100_151 = arith.constant 100 : index
    %163 = vector.load %arg23[%c0_150, %c100_151] : memref<16x526xf32, #tpu.memory_space<vmem>>, vector<16x51xf32>
    %164 = tpu.concatenate %155, %156, %157, %158, %159, %160, %161, %162, %163 in 0 : vector<16x51xf32>, vector<16x51xf32>, vector<16x51xf32>, vector<16x51xf32>, vector<16x51xf32>, vector<16x51xf32>, vector<16x51xf32>, vector<16x51xf32>, vector<16x51xf32> -> vector<144x51xf32>
    %c0_152 = arith.constant 0 : index
    %c0_153 = arith.constant 0 : index
    %165 = vector.load %arg13[%c0_152, %c0_153] : memref<16x144xbf16, #tpu.memory_space<vmem>>, vector<16x144xbf16>
    %166 = arith.truncf %164 : vector<144x51xf32> to vector<144x51xbf16>
    %cst_154 = arith.constant dense<0.000000e+00> : vector<16x51xf32>
    %167 = tpu.matmul %165, %166, %cst_154 {dimension_numbers = #tpu.dot_dimension_numbers<[1], [0], [0], [1], [0, 0, 1, 1], [], []>} : vector<16x144xbf16>, vector<144x51xbf16>, vector<16x51xf32> -> vector<16x51xf32>
    %c0_155 = arith.constant 0 : index
    %c0_156 = arith.constant 0 : index
    %168 = vector.load %arg22[%c0_155, %c0_156] : memref<16x526xf32, #tpu.memory_space<vmem>>, vector<16x51xf32>
    tpu.vector_store %arg22[%c0_155, %c0_156], %167 {strides = array<i32>} : memref<16x526xf32, #tpu.memory_space<vmem>>, vector<16x51xf32>,
    %cst_157 = arith.constant 0.000000e+00 : f32
    %169 = vector.broadcast %cst_157 : f32 to vector<16x1xf32>
    %c0_158 = arith.constant 0 : index
    %c0_159 = arith.constant 0 : index
    %170 = vector.load %arg22[%c0_158, %c0_159] : memref<16x526xf32, #tpu.memory_space<vmem>>, vector<16x1xf32>
    %171 = arith.addf %169, %170 : vector<16x1xf32>
    %c0_160 = arith.constant 0 : index
    %c2_161 = arith.constant 2 : index
    %172 = vector.load %arg22[%c0_160, %c2_161] : memref<16x526xf32, #tpu.memory_space<vmem>>, vector<16x1xf32>
    %173 = arith.addf %171, %172 : vector<16x1xf32>
    %c0_162 = arith.constant 0 : index
    %c48_163 = arith.constant 48 : index
    %174 = vector.load %arg22[%c0_162, %c48_163] : memref<16x526xf32, #tpu.memory_space<vmem>>, vector<16x1xf32>
    %175 = arith.addf %173, %174 : vector<16x1xf32>
    %c0_164 = arith.constant 0 : index
    %c50_165 = arith.constant 50 : index
    %176 = vector.load %arg22[%c0_164, %c50_165] : memref<16x526xf32, #tpu.memory_space<vmem>>, vector<16x1xf32>
    %177 = arith.addf %175, %176 : vector<16x1xf32>
    %cst_166 = arith.constant 2.500000e-01 : f32
    %178 = vector.broadcast %cst_166 : f32 to vector<16x1xf32>
    %179 = arith.mulf %177, %178 : vector<16x1xf32>
    %c0_167 = arith.constant 0 : index
    %c0_168 = arith.constant 0 : index
    %c0_169 = arith.constant 0 : index
    %180 = vector.load %arg2[%c0_167, %c0_168, %c0_169] : memref<1x4x1xf32, #tpu.memory_space<vmem>>, vector<1x4x1xf32>
    %181 = vector.shape_cast %180 : vector<1x4x1xf32> to vector<4x1xf32>
    %c0_170 = arith.constant 0 : index
    %c0_171 = arith.constant 0 : index
    %182 = vector.load %arg14[%c0_170, %c0_171] : memref<400x16xf32, #tpu.memory_space<vmem>>, vector<400x16xf32>
    %cst_172 = arith.constant dense<0.000000e+00> : vector<400x1xf32>
    %183 = tpu.matmul %182, %179, %cst_172 {dimension_numbers = #tpu.dot_dimension_numbers<[1], [0], [0], [1], [0, 0, 1, 1], [], []>} : vector<400x16xf32>, vector<16x1xf32>, vector<400x1xf32> -> vector<400x1xf32>
    %c0_173 = arith.constant 0 : index
    %c0_174 = arith.constant 0 : index
    %184 = vector.load %arg15[%c0_173, %c0_174] : memref<400x4xf32, #tpu.memory_space<vmem>>, vector<400x4xf32>
    %cst_175 = arith.constant dense<0.000000e+00> : vector<400x1xf32>
    %185 = tpu.matmul %184, %181, %cst_175 {dimension_numbers = #tpu.dot_dimension_numbers<[1], [0], [0], [1], [0, 0, 1, 1], [], []>} : vector<400x4xf32>, vector<4x1xf32>, vector<400x1xf32> -> vector<400x1xf32>
    %186 = arith.addf %183, %185 : vector<400x1xf32>
    %c0_176 = arith.constant 0 : index
    %c0_177 = arith.constant 0 : index
    %187 = vector.load %arg16[%c0_176, %c0_177] : memref<400x1xf32, #tpu.memory_space<vmem>>, vector<400x1xf32>
    %188 = arith.addf %186, %187 : vector<400x1xf32>
    %cst_178 = arith.constant 0.000000e+00 : f32
    %189 = vector.broadcast %cst_178 : f32 to vector<400x1xf32>
    %190 = arith.maximumf %188, %189 : vector<400x1xf32>
    %c0_179 = arith.constant 0 : index
    %c0_180 = arith.constant 0 : index
    %191 = vector.load %arg17[%c0_179, %c0_180] : memref<300x400xf32, #tpu.memory_space<vmem>>, vector<300x400xf32>
    %cst_181 = arith.constant dense<0.000000e+00> : vector<300x1xf32>
    %192 = tpu.matmul %191, %190, %cst_181 {dimension_numbers = #tpu.dot_dimension_numbers<[1], [0], [0], [1], [0, 0, 1, 1], [], []>} : vector<300x400xf32>, vector<400x1xf32>, vector<300x1xf32> -> vector<300x1xf32>
    %c0_182 = arith.constant 0 : index
    %c0_183 = arith.constant 0 : index
    %193 = vector.load %arg18[%c0_182, %c0_183] : memref<300x1xf32, #tpu.memory_space<vmem>>, vector<300x1xf32>
    %194 = arith.addf %192, %193 : vector<300x1xf32>
    %cst_184 = arith.constant 0.000000e+00 : f32
    %195 = vector.broadcast %cst_184 : f32 to vector<300x1xf32>
    %196 = arith.maximumf %194, %195 : vector<300x1xf32>
    %c0_185 = arith.constant 0 : index
    %c0_186 = arith.constant 0 : index
    %197 = vector.load %arg19[%c0_185, %c0_186] : memref<2x300xf32, #tpu.memory_space<vmem>>, vector<2x300xf32>
    %cst_187 = arith.constant dense<0.000000e+00> : vector<2x1xf32>
    %198 = tpu.matmul %197, %196, %cst_187 {dimension_numbers = #tpu.dot_dimension_numbers<[1], [0], [0], [1], [0, 0, 1, 1], [], []>} : vector<2x300xf32>, vector<300x1xf32>, vector<2x1xf32> -> vector<2x1xf32>
    %c0_188 = arith.constant 0 : index
    %c0_189 = arith.constant 0 : index
    %199 = vector.load %arg20[%c0_188, %c0_189] : memref<2x1xf32, #tpu.memory_space<vmem>>, vector<2x1xf32>
    %200 = arith.addf %198, %199 : vector<2x1xf32>
    %201 = math.tanh %200 : vector<2x1xf32>
    %cst_190 = arith.constant 2.000000e+00 : f32
    %202 = vector.broadcast %cst_190 : f32 to vector<2x1xf32>
    %203 = arith.mulf %202, %201 : vector<2x1xf32>
    %c0_191 = arith.constant 0 : index
    %c0_192 = arith.constant 0 : index
    %c0_193 = arith.constant 0 : index
    %204 = vector.load %arg21[%c0_191, %c0_192, %c0_193] : memref<1x2x1xf32, #tpu.memory_space<vmem>>, vector<1x2x1xf32>
    %205 = vector.shape_cast %204 : vector<1x2x1xf32> to vector<2x1xf32>
    %206 = vector.shape_cast %203 : vector<2x1xf32> to vector<1x2x1xf32>
    tpu.vector_store %arg21[%c0_191, %c0_192, %c0_193], %206 {strides = array<i32>} : memref<1x2x1xf32, #tpu.memory_space<vmem>>, vector<1x2x1xf32>,
    return
  }
  func.func @transform_0(%arg0: i32) -> (i32, i32, i32) {
    %c0_i32 = arith.constant 0 : i32
    %c0_i32_0 = arith.constant 0 : i32
    %c0_i32_1 = arith.constant 0 : i32
    return %arg0, %c0_i32, %c0_i32_0 : i32, i32, i32
  }
  func.func @transform_1(%arg0: i32) -> (i32, i32, i32) {
    %c0_i32 = arith.constant 0 : i32
    %c0_i32_0 = arith.constant 0 : i32
    %c0_i32_1 = arith.constant 0 : i32
    return %arg0, %c0_i32, %c0_i32_0 : i32, i32, i32
  }
  func.func @transform_2(%arg0: i32) -> (i32, i32) {
    %c0_i32 = arith.constant 0 : i32
    %c0_i32_0 = arith.constant 0 : i32
    %c0_i32_1 = arith.constant 0 : i32
    return %c0_i32, %c0_i32_0 : i32, i32
  }
  func.func @transform_3(%arg0: i32) -> (i32, i32) {
    %c0_i32 = arith.constant 0 : i32
    %c0_i32_0 = arith.constant 0 : i32
    %c0_i32_1 = arith.constant 0 : i32
    return %c0_i32, %c0_i32_0 : i32, i32
  }
  func.func @transform_4(%arg0: i32) -> (i32, i32) {
    %c0_i32 = arith.constant 0 : i32
    %c0_i32_0 = arith.constant 0 : i32
    %c0_i32_1 = arith.constant 0 : i32
    return %c0_i32, %c0_i32_0 : i32, i32
  }
  func.func @transform_5(%arg0: i32) -> (i32, i32) {
    %c0_i32 = arith.constant 0 : i32
    %c0_i32_0 = arith.constant 0 : i32
    %c0_i32_1 = arith.constant 0 : i32
    return %c0_i32, %c0_i32_0 : i32, i32
  }
  func.func @transform_6(%arg0: i32) -> (i32, i32) {
    %c0_i32 = arith.constant 0 : i32
    %c0_i32_0 = arith.constant 0 : i32
    %c0_i32_1 = arith.constant 0 : i32
    return %c0_i32, %c0_i32_0 : i32, i32
  }
  func.func @transform_7(%arg0: i32) -> (i32, i32) {
    %c0_i32 = arith.constant 0 : i32
    %c0_i32_0 = arith.constant 0 : i32
    %c0_i32_1 = arith.constant 0 : i32
    return %c0_i32, %c0_i32_0 : i32, i32
  }
  func.func @transform_8(%arg0: i32) -> (i32, i32) {
    %c0_i32 = arith.constant 0 : i32
    %c0_i32_0 = arith.constant 0 : i32
    %c0_i32_1 = arith.constant 0 : i32
    return %c0_i32, %c0_i32_0 : i32, i32
  }
  func.func @transform_9(%arg0: i32) -> (i32, i32) {
    %c0_i32 = arith.constant 0 : i32
    %c0_i32_0 = arith.constant 0 : i32
    %c0_i32_1 = arith.constant 0 : i32
    return %c0_i32, %c0_i32_0 : i32, i32
  }
  func.func @transform_10(%arg0: i32) -> (i32, i32) {
    %c0_i32 = arith.constant 0 : i32
    %c0_i32_0 = arith.constant 0 : i32
    %c0_i32_1 = arith.constant 0 : i32
    return %c0_i32, %c0_i32_0 : i32, i32
  }
  func.func @transform_11(%arg0: i32) -> (i32, i32) {
    %c0_i32 = arith.constant 0 : i32
    %c0_i32_0 = arith.constant 0 : i32
    %c0_i32_1 = arith.constant 0 : i32
    return %c0_i32, %c0_i32_0 : i32, i32
  }
  func.func @transform_12(%arg0: i32) -> (i32, i32) {
    %c0_i32 = arith.constant 0 : i32
    %c0_i32_0 = arith.constant 0 : i32
    %c0_i32_1 = arith.constant 0 : i32
    return %c0_i32, %c0_i32_0 : i32, i32
  }
  func.func @transform_13(%arg0: i32) -> (i32, i32) {
    %c0_i32 = arith.constant 0 : i32
    %c0_i32_0 = arith.constant 0 : i32
    %c0_i32_1 = arith.constant 0 : i32
    return %c0_i32, %c0_i32_0 : i32, i32
  }
  func.func @transform_14(%arg0: i32) -> (i32, i32) {
    %c0_i32 = arith.constant 0 : i32
    %c0_i32_0 = arith.constant 0 : i32
    %c0_i32_1 = arith.constant 0 : i32
    return %c0_i32, %c0_i32_0 : i32, i32
  }
  func.func @transform_15(%arg0: i32) -> (i32, i32) {
    %c0_i32 = arith.constant 0 : i32
    %c0_i32_0 = arith.constant 0 : i32
    %c0_i32_1 = arith.constant 0 : i32
    return %c0_i32, %c0_i32_0 : i32, i32
  }
  func.func @transform_16(%arg0: i32) -> (i32, i32) {
    %c0_i32 = arith.constant 0 : i32
    %c0_i32_0 = arith.constant 0 : i32
    %c0_i32_1 = arith.constant 0 : i32
    return %c0_i32, %c0_i32_0 : i32, i32
  }
  func.func @transform_17(%arg0: i32) -> (i32, i32) {
    %c0_i32 = arith.constant 0 : i32
    %c0_i32_0 = arith.constant 0 : i32
    %c0_i32_1 = arith.constant 0 : i32
    return %c0_i32, %c0_i32_0 : i32, i32
  }
  func.func @transform_18(%arg0: i32) -> (i32, i32) {
    %c0_i32 = arith.constant 0 : i32
    %c0_i32_0 = arith.constant 0 : i32
    %c0_i32_1 = arith.constant 0 : i32
    return %c0_i32, %c0_i32_0 : i32, i32
  }
  func.func @transform_19(%arg0: i32) -> (i32, i32) {
    %c0_i32 = arith.constant 0 : i32
    %c0_i32_0 = arith.constant 0 : i32
    %c0_i32_1 = arith.constant 0 : i32
    return %c0_i32, %c0_i32_0 : i32, i32
  }
  func.func @transform_20(%arg0: i32) -> (i32, i32, i32) {
    %c0_i32 = arith.constant 0 : i32
    %c0_i32_0 = arith.constant 0 : i32
    %c0_i32_1 = arith.constant 0 : i32
    return %arg0, %c0_i32, %c0_i32_0 : i32, i32, i32
  }
}

</mosaic_0001>

<llo_original>
// kernel: _lambda_.1
$region0: #{_lambda_.1}
  #allocation0 [shape = 'u32[]', space=smem, size = 0x4, offset = 0x4, fixed_abs, tag = 'smem constant byte address 0x4 - core index']
  #allocation1 [shape = 'u32[144,128]{1,0:T(1,128)}', space=vmem, size = 0x12000, scoped, tag = 'internal scratch']
  #allocation2 [shape = 'f32[16,526]{1,0:T(8,128)}', space=vmem, size = 0xa000, scoped, tag = 'scratch operand']
  #allocation3 [shape = 'f32[16,526]{1,0:T(8,128)}', space=vmem, size = 0xa000, scoped, tag = 'scratch operand']
  %s0 = inlined_call_operand.vmem [shape: f32[2,1,576], index: 0, kind: input, shape index: {}]
  %s1 = inlined_call_operand.vmem [shape: f32[2,4,1], index: 1, kind: input, shape index: {}]
  %s2 = inlined_call_operand.vmem [shape: f32[16,9], index: 2, kind: input, shape index: {}]
  %s3 = inlined_call_operand.vmem [shape: f32[16,1], index: 3, kind: input, shape index: {}]
  %s4 = inlined_call_operand.vmem [shape: bf16[16,144], index: 4, kind: input, shape index: {}]
  %s5 = inlined_call_operand.vmem [shape: f32[16,1], index: 5, kind: input, shape index: {}]
  %s6 = inlined_call_operand.vmem [shape: bf16[16,144], index: 6, kind: input, shape index: {}]
  %s7 = inlined_call_operand.vmem [shape: f32[16,1], index: 7, kind: input, shape index: {}]
  %s8 = inlined_call_operand.vmem [shape: bf16[16,144], index: 8, kind: input, shape index: {}]
  %s9 = inlined_call_operand.vmem [shape: f32[16,1], index: 9, kind: input, shape index: {}]
  %s10 = inlined_call_operand.vmem [shape: bf16[16,144], index: 10, kind: input, shape index: {}]
  %s11 = inlined_call_operand.vmem [shape: f32[16,1], index: 11, kind: input, shape index: {}]
  %s12 = inlined_call_operand.vmem [shape: bf16[16,144], index: 12, kind: input, shape index: {}]
  %s13 = inlined_call_operand.vmem [shape: f32[400,16], index: 13, kind: input, shape index: {}]
  %s14 = inlined_call_operand.vmem [shape: f32[400,4], index: 14, kind: input, shape index: {}]
  %s15 = inlined_call_operand.vmem [shape: f32[400,1], index: 15, kind: input, shape index: {}]
  %s16 = inlined_call_operand.vmem [shape: f32[300,400], index: 16, kind: input, shape index: {}]
  %s17 = inlined_call_operand.vmem [shape: f32[300,1], index: 17, kind: input, shape index: {}]
  %s18 = inlined_call_operand.vmem [shape: f32[2,300], index: 18, kind: input, shape index: {}]
  %s19 = inlined_call_operand.vmem [shape: f32[2,1], index: 19, kind: input, shape index: {}]
  %s20 = inlined_call_operand.vmem [shape: f32[2,2,1], index: 20, kind: output, shape index: {}]
  %s21 = sld [smem:[#allocation0]]
  $region113: #{_lambda_.1} parent=0
    _
  %s23 = ssub.s32 1, %s21
  %s24 = scalar_select 0, %s23, %s21
  loop: start=0, step=1, limit=4
  $region2: #{_lambda_.1} parent=0 // loop_pre_header
    _
  $region3: #{_lambda_.1} parent=0 // loop_header
    %s26 = sphi 0, %s30
    %p27 = scmp.ge.s32.totalorder %s26, 4
    %s36 = sphi 0, %s38
    %s39 = sphi 0, %s36
    %s40 = sphi 0, %s39
    %s56 = sphi 0, %s40
    %s62 = sphi 0, %s64
    %s65 = sphi 0, %s62
    %s66 = sphi 0, %s65
    %s82 = sphi 0, %s66
    %s86 = sphi 0, %s86
    %s88 = sphi 0, %s86
    %s89 = sphi 0, %s88
    %s103 = sphi 0, %s89
    %s107 = sphi 0, %s107
    %s109 = sphi 0, %s107
    %s110 = sphi 0, %s109
    %s124 = sphi 0, %s110
    %s128 = sphi 0, %s128
    %s130 = sphi 0, %s128
    %s131 = sphi 0, %s130
    %s145 = sphi 0, %s131
    %s149 = sphi 0, %s149
    %s151 = sphi 0, %s149
    %s152 = sphi 0, %s151
    %s166 = sphi 0, %s152
    %s170 = sphi 0, %s170
    %s172 = sphi 0, %s170
    %s173 = sphi 0, %s172
    %s187 = sphi 0, %s173
    %s191 = sphi 0, %s191
    %s193 = sphi 0, %s191
    %s194 = sphi 0, %s193
    %s208 = sphi 0, %s194
    %s212 = sphi 0, %s212
    %s214 = sphi 0, %s212
    %s215 = sphi 0, %s214
    %s229 = sphi 0, %s215
    %s233 = sphi 0, %s233
    %s235 = sphi 0, %s233
    %s236 = sphi 0, %s235
    %s250 = sphi 0, %s236
    %s254 = sphi 0, %s254
    %s256 = sphi 0, %s254
    %s257 = sphi 0, %s256
    %s271 = sphi 0, %s257
    %s275 = sphi 0, %s275
    %s277 = sphi 0, %s275
    %s278 = sphi 0, %s277
    %s292 = sphi 0, %s278
    %s296 = sphi 0, %s296
    %s298 = sphi 0, %s296
    %s299 = sphi 0, %s298
    %s313 = sphi 0, %s299
    %s317 = sphi 0, %s317
    %s319 = sphi 0, %s317
    %s320 = sphi 0, %s319
    %s334 = sphi 0, %s320
    %s338 = sphi 0, %s338
    %s340 = sphi 0, %s338
    %s341 = sphi 0, %s340
    %s355 = sphi 0, %s341
    %s359 = sphi 0, %s359
    %s361 = sphi 0, %s359
    %s362 = sphi 0, %s361
    %s376 = sphi 0, %s362
    %s380 = sphi 0, %s380
    %s382 = sphi 0, %s380
    %s383 = sphi 0, %s382
    %s397 = sphi 0, %s383
    %s401 = sphi 0, %s401
    %s403 = sphi 0, %s401
    %s404 = sphi 0, %s403
    %s418 = sphi 0, %s404
    %s422 = sphi 0, %s422
    %s424 = sphi 0, %s422
    %s425 = sphi 0, %s424
    %s439 = sphi 0, %s425
    %s443 = sphi 0, %s443
    %s445 = sphi 0, %s443
    %s446 = sphi 0, %s445
    %s460 = sphi 0, %s446
    %s466 = sphi 0, %s468
    %s469 = sphi 0, %s466
    %s470 = sphi 0, %s469
    %s486 = sphi 0, %s470
  $region4: #{_lambda_.1} parent=0 // loop_header_branch
    %29 = sbr.rel (%p27) target = $region8
  $region5: #{_lambda_.1} parent=0 // loop_body
    %s31 = ssub.s32 %s26, 1
    %s32 = ssub.s32 %s26, 2
    %s33 = sadd.s32 %s26, 1
    %s34 = ssub.s32 %s26, %s33
    %p35 = scmp.eq.s32.totalorder %s34, 0
    %s37 = sadd.s32 %s36, 1
    %s38 = scalar_select %p35, %s36, %s37
    %p41 = pneg %p35
    %p42 = scmp.eq.s32.totalorder %s26, 1
    %p43 = por %p41, %p42
    %p44 = scmp.ne.s32.totalorder %s36, %s39
    %p45 = scmp.eq.s32.totalorder %s26, 0
    %p46 = por %p44, %p45
    %p47 = scmp.ne.s32.totalorder %s36, %s39
    %p48 = scmp.eq.s32.totalorder %s31, 1
    %p49 = por %p47, %p48
    %p50 = scmp.ne.s32.totalorder %s39, %s40
    %p51 = scmp.eq.s32.totalorder %s31, 0
    %p52 = por %p50, %p51
    %p53 = scmp.ne.s32.totalorder %s39, %s40
    %p54 = scmp.eq.s32.totalorder %s32, 1
    %p55 = por %p53, %p54
    %p57 = scmp.ne.s32.totalorder %s40, %s56
    %p58 = scmp.eq.s32.totalorder %s32, 0
    %p59 = por %p57, %p58
    %s60 = ssub.s32 %s26, %s33
    %p61 = scmp.eq.s32.totalorder %s60, 0
    %s63 = sadd.s32 %s62, 1
    %s64 = scalar_select %p61, %s62, %s63
    %p67 = pneg %p61
    %p68 = scmp.eq.s32.totalorder %s26, 1
    %p69 = por %p67, %p68
    %p70 = scmp.ne.s32.totalorder %s62, %s65
    %p71 = scmp.eq.s32.totalorder %s26, 0
    %p72 = por %p70, %p71
    %p73 = scmp.ne.s32.totalorder %s62, %s65
    %p74 = scmp.eq.s32.totalorder %s31, 1
    %p75 = por %p73, %p74
    %p76 = scmp.ne.s32.totalorder %s65, %s66
    %p77 = scmp.eq.s32.totalorder %s31, 0
    %p78 = por %p76, %p77
    %p79 = scmp.ne.s32.totalorder %s65, %s66
    %p80 = scmp.eq.s32.totalorder %s32, 1
    %p81 = por %p79, %p80
    %p83 = scmp.ne.s32.totalorder %s66, %s82
    %p84 = scmp.eq.s32.totalorder %s32, 0
    %p85 = por %p83, %p84
    %s87 = sadd.s32 %s86, 1
    %p90 = scmp.eq.s32.totalorder %s26, 1
    %p91 = scmp.ne.s32.totalorder %s86, %s88
    %p92 = scmp.eq.s32.totalorder %s26, 0
    %p93 = por %p91, %p92
    %p94 = scmp.ne.s32.totalorder %s86, %s88
    %p95 = scmp.eq.s32.totalorder %s31, 1
    %p96 = por %p94, %p95
    %p97 = scmp.ne.s32.totalorder %s88, %s89
    %p98 = scmp.eq.s32.totalorder %s31, 0
    %p99 = por %p97, %p98
    %p100 = scmp.ne.s32.totalorder %s88, %s89
    %p101 = scmp.eq.s32.totalorder %s32, 1
    %p102 = por %p100, %p101
    %p104 = scmp.ne.s32.totalorder %s89, %s103
    %p105 = scmp.eq.s32.totalorder %s32, 0
    %p106 = por %p104, %p105
    %s108 = sadd.s32 %s107, 1
    %p111 = scmp.eq.s32.totalorder %s26, 1
    %p112 = scmp.ne.s32.totalorder %s107, %s109
    %p113 = scmp.eq.s32.totalorder %s26, 0
    %p114 = por %p112, %p113
    %p115 = scmp.ne.s32.totalorder %s107, %s109
    %p116 = scmp.eq.s32.totalorder %s31, 1
    %p117 = por %p115, %p116
    %p118 = scmp.ne.s32.totalorder %s109, %s110
    %p119 = scmp.eq.s32.totalorder %s31, 0
    %p120 = por %p118, %p119
    %p121 = scmp.ne.s32.totalorder %s109, %s110
    %p122 = scmp.eq.s32.totalorder %s32, 1
    %p123 = por %p121, %p122
    %p125 = scmp.ne.s32.totalorder %s110, %s124
    %p126 = scmp.eq.s32.totalorder %s32, 0
    %p127 = por %p125, %p126
    %s129 = sadd.s32 %s128, 1
    %p132 = scmp.eq.s32.totalorder %s26, 1
    %p133 = scmp.ne.s32.totalorder %s128, %s130
    %p134 = scmp.eq.s32.totalorder %s26, 0
    %p135 = por %p133, %p134
    %p136 = scmp.ne.s32.totalorder %s128, %s130
    %p137 = scmp.eq.s32.totalorder %s31, 1
    %p138 = por %p136, %p137
    %p139 = scmp.ne.s32.totalorder %s130, %s131
    %p140 = scmp.eq.s32.totalorder %s31, 0
    %p141 = por %p139, %p140
    %p142 = scmp.ne.s32.totalorder %s130, %s131
    %p143 = scmp.eq.s32.totalorder %s32, 1
    %p144 = por %p142, %p143
    %p146 = scmp.ne.s32.totalorder %s131, %s145
    %p147 = scmp.eq.s32.totalorder %s32, 0
    %p148 = por %p146, %p147
    %s150 = sadd.s32 %s149, 1
    %p153 = scmp.eq.s32.totalorder %s26, 1
    %p154 = scmp.ne.s32.totalorder %s149, %s151
    %p155 = scmp.eq.s32.totalorder %s26, 0
    %p156 = por %p154, %p155
    %p157 = scmp.ne.s32.totalorder %s149, %s151
    %p158 = scmp.eq.s32.totalorder %s31, 1
    %p159 = por %p157, %p158
    %p160 = scmp.ne.s32.totalorder %s151, %s152
    %p161 = scmp.eq.s32.totalorder %s31, 0
    %p162 = por %p160, %p161
    %p163 = scmp.ne.s32.totalorder %s151, %s152
    %p164 = scmp.eq.s32.totalorder %s32, 1
    %p165 = por %p163, %p164
    %p167 = scmp.ne.s32.totalorder %s152, %s166
    %p168 = scmp.eq.s32.totalorder %s32, 0
    %p169 = por %p167, %p168
    %s171 = sadd.s32 %s170, 1
    %p174 = scmp.eq.s32.totalorder %s26, 1
    %p175 = scmp.ne.s32.totalorder %s170, %s172
    %p176 = scmp.eq.s32.totalorder %s26, 0
    %p177 = por %p175, %p176
    %p178 = scmp.ne.s32.totalorder %s170, %s172
    %p179 = scmp.eq.s32.totalorder %s31, 1
    %p180 = por %p178, %p179
    %p181 = scmp.ne.s32.totalorder %s172, %s173
    %p182 = scmp.eq.s32.totalorder %s31, 0
    %p183 = por %p181, %p182
    %p184 = scmp.ne.s32.totalorder %s172, %s173
    %p185 = scmp.eq.s32.totalorder %s32, 1
    %p186 = por %p184, %p185
    %p188 = scmp.ne.s32.totalorder %s173, %s187
    %p189 = scmp.eq.s32.totalorder %s32, 0
    %p190 = por %p188, %p189
    %s192 = sadd.s32 %s191, 1
    %p195 = scmp.eq.s32.totalorder %s26, 1
    %p196 = scmp.ne.s32.totalorder %s191, %s193
    %p197 = scmp.eq.s32.totalorder %s26, 0
    %p198 = por %p196, %p197
    %p199 = scmp.ne.s32.totalorder %s191, %s193
    %p200 = scmp.eq.s32.totalorder %s31, 1
    %p201 = por %p199, %p200
    %p202 = scmp.ne.s32.totalorder %s193, %s194
    %p203 = scmp.eq.s32.totalorder %s31, 0
    %p204 = por %p202, %p203
    %p205 = scmp.ne.s32.totalorder %s193, %s194
    %p206 = scmp.eq.s32.totalorder %s32, 1
    %p207 = por %p205, %p206
    %p209 = scmp.ne.s32.totalorder %s194, %s208
    %p210 = scmp.eq.s32.totalorder %s32, 0
    %p211 = por %p209, %p210
    %s213 = sadd.s32 %s212, 1
    %p216 = scmp.eq.s32.totalorder %s26, 1
    %p217 = scmp.ne.s32.totalorder %s212, %s214
    %p218 = scmp.eq.s32.totalorder %s26, 0
    %p219 = por %p217, %p218
    %p220 = scmp.ne.s32.totalorder %s212, %s214
    %p221 = scmp.eq.s32.totalorder %s31, 1
    %p222 = por %p220, %p221
    %p223 = scmp.ne.s32.totalorder %s214, %s215
    %p224 = scmp.eq.s32.totalorder %s31, 0
    %p225 = por %p223, %p224
    %p226 = scmp.ne.s32.totalorder %s214, %s215
    %p227 = scmp.eq.s32.totalorder %s32, 1
    %p228 = por %p226, %p227
    %p230 = scmp.ne.s32.totalorder %s215, %s229
    %p231 = scmp.eq.s32.totalorder %s32, 0
    %p232 = por %p230, %p231
    %s234 = sadd.s32 %s233, 1
    %p237 = scmp.eq.s32.totalorder %s26, 1
    %p238 = scmp.ne.s32.totalorder %s233, %s235
    %p239 = scmp.eq.s32.totalorder %s26, 0
    %p240 = por %p238, %p239
    %p241 = scmp.ne.s32.totalorder %s233, %s235
    %p242 = scmp.eq.s32.totalorder %s31, 1
    %p243 = por %p241, %p242
    %p244 = scmp.ne.s32.totalorder %s235, %s236
    %p245 = scmp.eq.s32.totalorder %s31, 0
    %p246 = por %p244, %p245
    %p247 = scmp.ne.s32.totalorder %s235, %s236
    %p248 = scmp.eq.s32.totalorder %s32, 1
    %p249 = por %p247, %p248
    %p251 = scmp.ne.s32.totalorder %s236, %s250
    %p252 = scmp.eq.s32.totalorder %s32, 0
    %p253 = por %p251, %p252
    %s255 = sadd.s32 %s254, 1
    %p258 = scmp.eq.s32.totalorder %s26, 1
    %p259 = scmp.ne.s32.totalorder %s254, %s256
    %p260 = scmp.eq.s32.totalorder %s26, 0
    %p261 = por %p259, %p260
    %p262 = scmp.ne.s32.totalorder %s254, %s256
    %p263 = scmp.eq.s32.totalorder %s31, 1
    %p264 = por %p262, %p263
    %p265 = scmp.ne.s32.totalorder %s256, %s257
    %p266 = scmp.eq.s32.totalorder %s31, 0
    %p267 = por %p265, %p266
    %p268 = scmp.ne.s32.totalorder %s256, %s257
    %p269 = scmp.eq.s32.totalorder %s32, 1
    %p270 = por %p268, %p269
    %p272 = scmp.ne.s32.totalorder %s257, %s271
    %p273 = scmp.eq.s32.totalorder %s32, 0
    %p274 = por %p272, %p273
    %s276 = sadd.s32 %s275, 1
    %p279 = scmp.eq.s32.totalorder %s26, 1
    %p280 = scmp.ne.s32.totalorder %s275, %s277
    %p281 = scmp.eq.s32.totalorder %s26, 0
    %p282 = por %p280, %p281
    %p283 = scmp.ne.s32.totalorder %s275, %s277
    %p284 = scmp.eq.s32.totalorder %s31, 1
    %p285 = por %p283, %p284
    %p286 = scmp.ne.s32.totalorder %s277, %s278
    %p287 = scmp.eq.s32.totalorder %s31, 0
    %p288 = por %p286, %p287
    %p289 = scmp.ne.s32.totalorder %s277, %s278
    %p290 = scmp.eq.s32.totalorder %s32, 1
    %p291 = por %p289, %p290
    %p293 = scmp.ne.s32.totalorder %s278, %s292
    %p294 = scmp.eq.s32.totalorder %s32, 0
    %p295 = por %p293, %p294
    %s297 = sadd.s32 %s296, 1
    %p300 = scmp.eq.s32.totalorder %s26, 1
    %p301 = scmp.ne.s32.totalorder %s296, %s298
    %p302 = scmp.eq.s32.totalorder %s26, 0
    %p303 = por %p301, %p302
    %p304 = scmp.ne.s32.totalorder %s296, %s298
    %p305 = scmp.eq.s32.totalorder %s31, 1
    %p306 = por %p304, %p305
    %p307 = scmp.ne.s32.totalorder %s298, %s299
    %p308 = scmp.eq.s32.totalorder %s31, 0
    %p309 = por %p307, %p308
    %p310 = scmp.ne.s32.totalorder %s298, %s299
    %p311 = scmp.eq.s32.totalorder %s32, 1
    %p312 = por %p310, %p311
    %p314 = scmp.ne.s32.totalorder %s299, %s313
    %p315 = scmp.eq.s32.totalorder %s32, 0
    %p316 = por %p314, %p315
    %s318 = sadd.s32 %s317, 1
    %p321 = scmp.eq.s32.totalorder %s26, 1
    %p322 = scmp.ne.s32.totalorder %s317, %s319
    %p323 = scmp.eq.s32.totalorder %s26, 0
    %p324 = por %p322, %p323
    %p325 = scmp.ne.s32.totalorder %s317, %s319
    %p326 = scmp.eq.s32.totalorder %s31, 1
    %p327 = por %p325, %p326
    %p328 = scmp.ne.s32.totalorder %s319, %s320
    %p329 = scmp.eq.s32.totalorder %s31, 0
    %p330 = por %p328, %p329
    %p331 = scmp.ne.s32.totalorder %s319, %s320
    %p332 = scmp.eq.s32.totalorder %s32, 1
    %p333 = por %p331, %p332
    %p335 = scmp.ne.s32.totalorder %s320, %s334
    %p336 = scmp.eq.s32.totalorder %s32, 0
    %p337 = por %p335, %p336
    %s339 = sadd.s32 %s338, 1
    %p342 = scmp.eq.s32.totalorder %s26, 1
    %p343 = scmp.ne.s32.totalorder %s338, %s340
    %p344 = scmp.eq.s32.totalorder %s26, 0
    %p345 = por %p343, %p344
    %p346 = scmp.ne.s32.totalorder %s338, %s340
    %p347 = scmp.eq.s32.totalorder %s31, 1
    %p348 = por %p346, %p347
    %p349 = scmp.ne.s32.totalorder %s340, %s341
    %p350 = scmp.eq.s32.totalorder %s31, 0
    %p351 = por %p349, %p350
    %p352 = scmp.ne.s32.totalorder %s340, %s341
    %p353 = scmp.eq.s32.totalorder %s32, 1
    %p354 = por %p352, %p353
    %p356 = scmp.ne.s32.totalorder %s341, %s355
    %p357 = scmp.eq.s32.totalorder %s32, 0
    %p358 = por %p356, %p357
    %s360 = sadd.s32 %s359, 1
    %p363 = scmp.eq.s32.totalorder %s26, 1
    %p364 = scmp.ne.s32.totalorder %s359, %s361
    %p365 = scmp.eq.s32.totalorder %s26, 0
    %p366 = por %p364, %p365
    %p367 = scmp.ne.s32.totalorder %s359, %s361
    %p368 = scmp.eq.s32.totalorder %s31, 1
    %p369 = por %p367, %p368
    %p370 = scmp.ne.s32.totalorder %s361, %s362
    %p371 = scmp.eq.s32.totalorder %s31, 0
    %p372 = por %p370, %p371
    %p373 = scmp.ne.s32.totalorder %s361, %s362
    %p374 = scmp.eq.s32.totalorder %s32, 1
    %p375 = por %p373, %p374
    %p377 = scmp.ne.s32.totalorder %s362, %s376
    %p378 = scmp.eq.s32.totalorder %s32, 0
    %p379 = por %p377, %p378
    %s381 = sadd.s32 %s380, 1
    %p384 = scmp.eq.s32.totalorder %s26, 1
    %p385 = scmp.ne.s32.totalorder %s380, %s382
    %p386 = scmp.eq.s32.totalorder %s26, 0
    %p387 = por %p385, %p386
    %p388 = scmp.ne.s32.totalorder %s380, %s382
    %p389 = scmp.eq.s32.totalorder %s31, 1
    %p390 = por %p388, %p389
    %p391 = scmp.ne.s32.totalorder %s382, %s383
    %p392 = scmp.eq.s32.totalorder %s31, 0
    %p393 = por %p391, %p392
    %p394 = scmp.ne.s32.totalorder %s382, %s383
    %p395 = scmp.eq.s32.totalorder %s32, 1
    %p396 = por %p394, %p395
    %p398 = scmp.ne.s32.totalorder %s383, %s397
    %p399 = scmp.eq.s32.totalorder %s32, 0
    %p400 = por %p398, %p399
    %s402 = sadd.s32 %s401, 1
    %p405 = scmp.eq.s32.totalorder %s26, 1
    %p406 = scmp.ne.s32.totalorder %s401, %s403
    %p407 = scmp.eq.s32.totalorder %s26, 0
    %p408 = por %p406, %p407
    %p409 = scmp.ne.s32.totalorder %s401, %s403
    %p410 = scmp.eq.s32.totalorder %s31, 1
    %p411 = por %p409, %p410
    %p412 = scmp.ne.s32.totalorder %s403, %s404
    %p413 = scmp.eq.s32.totalorder %s31, 0
    %p414 = por %p412, %p413
    %p415 = scmp.ne.s32.totalorder %s403, %s404
    %p416 = scmp.eq.s32.totalorder %s32, 1
    %p417 = por %p415, %p416
    %p419 = scmp.ne.s32.totalorder %s404, %s418
    %p420 = scmp.eq.s32.totalorder %s32, 0
    %p421 = por %p419, %p420
    %s423 = sadd.s32 %s422, 1
    %p426 = scmp.eq.s32.totalorder %s26, 1
    %p427 = scmp.ne.s32.totalorder %s422, %s424
    %p428 = scmp.eq.s32.totalorder %s26, 0
    %p429 = por %p427, %p428
    %p430 = scmp.ne.s32.totalorder %s422, %s424
    %p431 = scmp.eq.s32.totalorder %s31, 1
    %p432 = por %p430, %p431
    %p433 = scmp.ne.s32.totalorder %s424, %s425
    %p434 = scmp.eq.s32.totalorder %s31, 0
    %p435 = por %p433, %p434
    %p436 = scmp.ne.s32.totalorder %s424, %s425
    %p437 = scmp.eq.s32.totalorder %s32, 1
    %p438 = por %p436, %p437
    %p440 = scmp.ne.s32.totalorder %s425, %s439
    %p441 = scmp.eq.s32.totalorder %s32, 0
    %p442 = por %p440, %p441
    %s444 = sadd.s32 %s443, 1
    %p447 = scmp.eq.s32.totalorder %s26, 1
    %p448 = scmp.ne.s32.totalorder %s443, %s445
    %p449 = scmp.eq.s32.totalorder %s26, 0
    %p450 = por %p448, %p449
    %p451 = scmp.ne.s32.totalorder %s443, %s445
    %p452 = scmp.eq.s32.totalorder %s31, 1
    %p453 = por %p451, %p452
    %p454 = scmp.ne.s32.totalorder %s445, %s446
    %p455 = scmp.eq.s32.totalorder %s31, 0
    %p456 = por %p454, %p455
    %p457 = scmp.ne.s32.totalorder %s445, %s446
    %p458 = scmp.eq.s32.totalorder %s32, 1
    %p459 = por %p457, %p458
    %p461 = scmp.ne.s32.totalorder %s446, %s460
    %p462 = scmp.eq.s32.totalorder %s32, 0
    %p463 = por %p461, %p462
    %s464 = ssub.s32 %s26, %s33
    %p465 = scmp.eq.s32.totalorder %s464, 0
    %s467 = sadd.s32 %s466, 1
    %s468 = scalar_select %p465, %s466, %s467
    %p471 = pneg %p465
    %p472 = scmp.eq.s32.totalorder %s26, 1
    %p473 = por %p471, %p472
    %p474 = scmp.ne.s32.totalorder %s466, %s469
    %p475 = scmp.eq.s32.totalorder %s26, 0
    %p476 = por %p474, %p475
    %p477 = scmp.ne.s32.totalorder %s466, %s469
    %p478 = scmp.eq.s32.totalorder %s31, 1
    %p479 = por %p477, %p478
    %p480 = scmp.ne.s32.totalorder %s469, %s470
    %p481 = scmp.eq.s32.totalorder %s31, 0
    %p482 = por %p480, %p481
    %p483 = scmp.ne.s32.totalorder %s469, %s470
    %p484 = scmp.eq.s32.totalorder %s32, 1
    %p485 = por %p483, %p484
    %p487 = scmp.ne.s32.totalorder %s470, %s486
    %p488 = scmp.eq.s32.totalorder %s32, 0
    %p489 = por %p487, %p488
    %p490 = scmp.le.s32.totalorder 1, %s26
    %p491 = scmp.lt.s32.totalorder %s26, 3
    %p492 = pnand %p490, %p491
    %p493 = pneg %p492
    // Predicated region
    $region9: #{_lambda_.1} parent=5 // pred_check
      _
    $region10: #{_lambda_.1} parent=5 // pred_check_branch
      %495 = sbr.rel (%p492) target = $region12
    $region11: #{_lambda_.1} parent=5 // pred_region
      %s496 = ssub.s32 %s26, 1
      // Predicated region
      $region13: #{_lambda_.1} parent=11 // pred_check
        %p497 = pneg %p99
      $region14: #{_lambda_.1} parent=11 // pred_check_branch
        %499 = sbr.rel (%p497) target = $region16
      $region15: #{_lambda_.1} parent=11 // pred_region
        _
      $region16: #{_lambda_.1} parent=11 // pred_fallthru
        _
      // Predicated region
      $region17: #{_lambda_.1} parent=11 // pred_check
        %p500 = pneg %p120
      $region18: #{_lambda_.1} parent=11 // pred_check_branch
        %502 = sbr.rel (%p500) target = $region20
      $region19: #{_lambda_.1} parent=11 // pred_region
        _
      $region20: #{_lambda_.1} parent=11 // pred_fallthru
        _
      // Predicated region
      $region21: #{_lambda_.1} parent=11 // pred_check
        %p503 = pneg %p141
      $region22: #{_lambda_.1} parent=11 // pred_check_branch
        %505 = sbr.rel (%p503) target = $region24
      $region23: #{_lambda_.1} parent=11 // pred_region
        _
      $region24: #{_lambda_.1} parent=11 // pred_fallthru
        _
      // Predicated region
      $region25: #{_lambda_.1} parent=11 // pred_check
        %p506 = pneg %p162
      $region26: #{_lambda_.1} parent=11 // pred_check_branch
        %508 = sbr.rel (%p506) target = $region28
      $region27: #{_lambda_.1} parent=11 // pred_region
        _
      $region28: #{_lambda_.1} parent=11 // pred_fallthru
        _
      // Predicated region
      $region29: #{_lambda_.1} parent=11 // pred_check
        %p509 = pneg %p183
      $region30: #{_lambda_.1} parent=11 // pred_check_branch
        %511 = sbr.rel (%p509) target = $region32
      $region31: #{_lambda_.1} parent=11 // pred_region
        _
      $region32: #{_lambda_.1} parent=11 // pred_fallthru
        _
      // Predicated region
      $region33: #{_lambda_.1} parent=11 // pred_check
        %p512 = pneg %p204
      $region34: #{_lambda_.1} parent=11 // pred_check_branch
        %514 = sbr.rel (%p512) target = $region36
      $region35: #{_lambda_.1} parent=11 // pred_region
        _
      $region36: #{_lambda_.1} parent=11 // pred_fallthru
        _
      // Predicated region
      $region37: #{_lambda_.1} parent=11 // pred_check
        %p515 = pneg %p225
      $region38: #{_lambda_.1} parent=11 // pred_check_branch
        %517 = sbr.rel (%p515) target = $region40
      $region39: #{_lambda_.1} parent=11 // pred_region
        _
      $region40: #{_lambda_.1} parent=11 // pred_fallthru
        _
      // Predicated region
      $region41: #{_lambda_.1} parent=11 // pred_check
        %p518 = pneg %p246
      $region42: #{_lambda_.1} parent=11 // pred_check_branch
        %520 = sbr.rel (%p518) target = $region44
      $region43: #{_lambda_.1} parent=11 // pred_region
        _
      $region44: #{_lambda_.1} parent=11 // pred_fallthru
        _
      // Predicated region
      $region45: #{_lambda_.1} parent=11 // pred_check
        %p521 = pneg %p267
      $region46: #{_lambda_.1} parent=11 // pred_check_branch
        %523 = sbr.rel (%p521) target = $region48
      $region47: #{_lambda_.1} parent=11 // pred_region
        _
      $region48: #{_lambda_.1} parent=11 // pred_fallthru
        _
      // Predicated region
      $region49: #{_lambda_.1} parent=11 // pred_check
        %p524 = pneg %p288
      $region50: #{_lambda_.1} parent=11 // pred_check_branch
        %526 = sbr.rel (%p524) target = $region52
      $region51: #{_lambda_.1} parent=11 // pred_region
        _
      $region52: #{_lambda_.1} parent=11 // pred_fallthru
        _
      // Predicated region
      $region53: #{_lambda_.1} parent=11 // pred_check
        %p527 = pneg %p309
      $region54: #{_lambda_.1} parent=11 // pred_check_branch
        %529 = sbr.rel (%p527) target = $region56
      $region55: #{_lambda_.1} parent=11 // pred_region
        _
      $region56: #{_lambda_.1} parent=11 // pred_fallthru
        _
      // Predicated region
      $region57: #{_lambda_.1} parent=11 // pred_check
        %p530 = pneg %p330
      $region58: #{_lambda_.1} parent=11 // pred_check_branch
        %532 = sbr.rel (%p530) target = $region60
      $region59: #{_lambda_.1} parent=11 // pred_region
        _
      $region60: #{_lambda_.1} parent=11 // pred_fallthru
        _
      // Predicated region
      $region61: #{_lambda_.1} parent=11 // pred_check
        %p533 = pneg %p351
      $region62: #{_lambda_.1} parent=11 // pred_check_branch
        %535 = sbr.rel (%p533) target = $region64
      $region63: #{_lambda_.1} parent=11 // pred_region
        _
      $region64: #{_lambda_.1} parent=11 // pred_fallthru
        _
      // Predicated region
      $region65: #{_lambda_.1} parent=11 // pred_check
        %p536 = pneg %p372
      $region66: #{_lambda_.1} parent=11 // pred_check_branch
        %538 = sbr.rel (%p536) target = $region68
      $region67: #{_lambda_.1} parent=11 // pred_region
        _
      $region68: #{_lambda_.1} parent=11 // pred_fallthru
        _
      // Predicated region
      $region69: #{_lambda_.1} parent=11 // pred_check
        %p539 = pneg %p393
      $region70: #{_lambda_.1} parent=11 // pred_check_branch
        %541 = sbr.rel (%p539) target = $region72
      $region71: #{_lambda_.1} parent=11 // pred_region
        _
      $region72: #{_lambda_.1} parent=11 // pred_fallthru
        _
      // Predicated region
      $region73: #{_lambda_.1} parent=11 // pred_check
        %p542 = pneg %p414
      $region74: #{_lambda_.1} parent=11 // pred_check_branch
        %544 = sbr.rel (%p542) target = $region76
      $region75: #{_lambda_.1} parent=11 // pred_region
        _
      $region76: #{_lambda_.1} parent=11 // pred_fallthru
        _
      // Predicated region
      $region77: #{_lambda_.1} parent=11 // pred_check
        %p545 = pneg %p435
      $region78: #{_lambda_.1} parent=11 // pred_check_branch
        %547 = sbr.rel (%p545) target = $region80
      $region79: #{_lambda_.1} parent=11 // pred_region
        _
      $region80: #{_lambda_.1} parent=11 // pred_fallthru
        _
      // Predicated region
      $region81: #{_lambda_.1} parent=11 // pred_check
        %p548 = pneg %p456
      $region82: #{_lambda_.1} parent=11 // pred_check_branch
        %550 = sbr.rel (%p548) target = $region84
      $region83: #{_lambda_.1} parent=11 // pred_region
        _
      $region84: #{_lambda_.1} parent=11 // pred_fallthru
        _
    $region12: #{_lambda_.1} parent=5 // pred_fallthru
      _
    %p551 = scmp.lt.s32.totalorder %s26, 2
    // Predicated region
    $region85: #{_lambda_.1} parent=5 // pred_check
      %p552 = pneg %p551
    $region86: #{_lambda_.1} parent=5 // pred_check_branch
      %554 = sbr.rel (%p552) target = $region88
    $region87: #{_lambda_.1} parent=5 // pred_region
      // Predicated region
      $region89: #{_lambda_.1} parent=87 // pred_check
        %p555 = pneg %p46
      $region90: #{_lambda_.1} parent=87 // pred_check_branch
        %557 = sbr.rel (%p555) target = $region92
      $region91: #{_lambda_.1} parent=87 // pred_region
        %p558 = scmp.lt.s32.totalorder %s26, 1
        %s559 = scalar_select %p558, %s26, 1
        %s560 = smul.addr %s559, 5
        %s561 = scalar_lea.vmem %s0, %s560
      $region92: #{_lambda_.1} parent=87 // pred_fallthru
        _
      // Predicated region
      $region93: #{_lambda_.1} parent=87 // pred_check
        %p562 = pneg %p72
      $region94: #{_lambda_.1} parent=87 // pred_check_branch
        %564 = sbr.rel (%p562) target = $region96
      $region95: #{_lambda_.1} parent=87 // pred_region
        %p565 = scmp.lt.s32.totalorder %s26, 1
        %s566 = scalar_select %p565, %s26, 1
        %s567 = smul.addr %s566, 4
        %s568 = scalar_lea.vmem %s1, %s567
      $region96: #{_lambda_.1} parent=87 // pred_fallthru
        _
    $region88: #{_lambda_.1} parent=5 // pred_fallthru
      _
    %p569 = scmp.le.s32.totalorder 1, %s26
    %p570 = scmp.lt.s32.totalorder %s26, 3
    %p571 = pnand %p569, %p570
    %p572 = pneg %p571
    // Predicated region
    $region97: #{_lambda_.1} parent=5 // pred_check
      _
    $region98: #{_lambda_.1} parent=5 // pred_check_branch
      %574 = sbr.rel (%p571) target = $region100
    $region99: #{_lambda_.1} parent=5 // pred_region
      %s575 = ssub.s32 %s26, 1
      %p576 = scmp.lt.s32.totalorder %s31, 1
      %s577 = scalar_select %p576, %s31, 1
      %s578 = smul.addr %s577, 5
      %s579 = scalar_lea.vmem %s0, %s578
      %p580 = pneg %p52
      %p581 = pneg %p49
      %p582 = scmp.lt.s32.totalorder %s31, 1
      %s583 = scalar_select %p582, %s31, 1
      %s584 = smul.addr %s583, 4
      %s585 = scalar_lea.vmem %s1, %s584
      %p586 = pneg %p78
      %p587 = pneg %p75
      %p588 = pneg %p99
      %p589 = pneg %p96
      %p590 = pneg %p120
      %p591 = pneg %p117
      %p592 = pneg %p141
      %p593 = pneg %p138
      %p594 = pneg %p162
      %p595 = pneg %p159
      %p596 = pneg %p183
      %p597 = pneg %p180
      %p598 = pneg %p204
      %p599 = pneg %p201
      %p600 = pneg %p225
      %p601 = pneg %p222
      %p602 = pneg %p246
      %p603 = pneg %p243
      %p604 = pneg %p267
      %p605 = pneg %p264
      %p606 = pneg %p288
      %p607 = pneg %p285
      %p608 = pneg %p309
      %p609 = pneg %p306
      %p610 = pneg %p330
      %p611 = pneg %p327
      %p612 = pneg %p351
      %p613 = pneg %p348
      %p614 = pneg %p372
      %p615 = pneg %p369
      %p616 = pneg %p393
      %p617 = pneg %p390
      %p618 = pneg %p414
      %p619 = pneg %p411
      %p620 = pneg %p435
      %p621 = pneg %p432
      %p622 = pneg %p456
      %p623 = pneg %p453
      %p624 = pneg %p482
      %p625 = pneg %p479
      %p626 = scmp.lt.s32.totalorder %s31, 1
      %s627 = scalar_select %p626, %s31, 1
      %s628 = smul.addr %s627, 2
      %s629 = scalar_lea.vmem %s20, %s628
      %p630 = scmp.lt.s32.totalorder %s31, 1
      %s631 = scalar_select %p630, %s31, 1
      %s632 = smul.addr %s631, 5
      %s633 = scalar_lea.vmem %s0, %s632
      %p634 = scmp.lt.s32.totalorder %s31, 1
      %s635 = scalar_select %p634, %s31, 1
      %s636 = smul.addr %s635, 4
      %s637 = scalar_lea.vmem %s1, %s636
      %p638 = scmp.lt.s32.totalorder %s31, 1
      %s639 = scalar_select %p638, %s31, 1
      %s640 = smul.addr %s639, 2
      %s641 = scalar_lea.vmem %s20, %s640
      %v643 = vld [vmem:[%s2] sm:$0xff]
      %v644 = vld [vmem:[%s2 + $0x8] sm:$0xff]
      %v645 = vld [vmem:[%s633] sm:$0x1f]
      %647 = vset.pattern.permute.xlu0 0
      %648 = vperm.xlu0 %647, %v643
      %v649 = vpop.permute.xlu0 %648
      %652 = vset.pattern.permute.xlu0 0
      %653 = vperm.xlu0 %652, %v644
      %v654 = vpop.permute.xlu0 %653
      %v657 = vlaneseq
      %v658 = vshrl.u32 %v657, 7
      %v659 = vsub.s32 0, %v658
      %v660 = vrot.slane %v645, %v659
      %v661 = vlaneseq
      %v662 = vshrl.u32 %v661, 7
      %v663 = vsub.s32 1, %v662
      %v664 = vrot.slane %v645, %v663
      %v665 = vlaneseq
      %v666 = vshrl.u32 %v665, 7
      %v667 = vsub.s32 2, %v666
      %v668 = vrot.slane %v645, %v667
      %v669 = vlaneseq
      %v670 = vshrl.u32 %v669, 7
      %v671 = vsub.s32 3, %v670
      %v672 = vrot.slane %v645, %v671
      %v673 = vlaneseq
      %v674 = vshrl.u32 %v673, 7
      %v675 = vsub.s32 4, %v674
      %v676 = vrot.slane %v645, %v675
      %v682 = vmul.f32 %v649, %v660
      %v683 = vmul.f32 %v649, %v664
      %v684 = vmul.f32 %v649, %v668
      %v685 = vmul.f32 %v649, %v672
      %v686 = vmul.f32 %v649, %v676
      %v687 = vmul.f32 %v654, %v660
      %v688 = vmul.f32 %v654, %v664
      %v689 = vmul.f32 %v654, %v668
      %v690 = vmul.f32 %v654, %v672
      %v691 = vmul.f32 %v654, %v676
      %v692 = vadd.f32 %v682, 0.0
      %v693 = vadd.f32 %v683, 0.0
      %v694 = vadd.f32 %v684, 0.0
      %v695 = vadd.f32 %v685, 0.0
      %v696 = vadd.f32 %v686, 0.0
      %v697 = vadd.f32 %v687, 0.0
      %v698 = vadd.f32 %v688, 0.0
      %v699 = vadd.f32 %v689, 0.0
      %v700 = vadd.f32 %v690, 0.0
      %v701 = vadd.f32 %v691, 0.0
      %702 = vset.pattern.permute.xlu0 1
      %703 = vperm.xlu0 %702, %v643
      %v704 = vpop.permute.xlu0 %703
      %706 = vset.pattern.permute.xlu0 1
      %707 = vperm.xlu0 %706, %v644
      %v708 = vpop.permute.xlu0 %707
      %v710 = vmul.f32 %v704, %v660
      %v711 = vmul.f32 %v704, %v664
      %v712 = vmul.f32 %v704, %v668
      %v713 = vmul.f32 %v704, %v672
      %v714 = vmul.f32 %v704, %v676
      %v715 = vmul.f32 %v708, %v660
      %v716 = vmul.f32 %v708, %v664
      %v717 = vmul.f32 %v708, %v668
      %v718 = vmul.f32 %v708, %v672
      %v719 = vmul.f32 %v708, %v676
      %730 = vrot.lane.b32.xlu0 %v710, 127
      %v731 = vpop.permute.xlu0 %730
      %732 = vrot.lane.b32.xlu0 %v711, 127
      %v733 = vpop.permute.xlu0 %732
      %734 = vrot.lane.b32.xlu0 %v712, 127
      %v735 = vpop.permute.xlu0 %734
      %736 = vrot.lane.b32.xlu0 %v713, 127
      %v737 = vpop.permute.xlu0 %736
      %738 = vrot.lane.b32.xlu0 %v714, 127
      %v739 = vpop.permute.xlu0 %738
      %740 = vrot.lane.b32.xlu0 %v715, 127
      %v741 = vpop.permute.xlu0 %740
      %742 = vrot.lane.b32.xlu0 %v716, 127
      %v743 = vpop.permute.xlu0 %742
      %744 = vrot.lane.b32.xlu0 %v717, 127
      %v745 = vpop.permute.xlu0 %744
      %746 = vrot.lane.b32.xlu0 %v718, 127
      %v747 = vpop.permute.xlu0 %746
      %748 = vrot.lane.b32.xlu0 %v719, 127
      %v749 = vpop.permute.xlu0 %748
      %vm750 = vcmask 1039360
      %v751 = vsel %vm750, %v731, %v733
      %v752 = vsel %vm750, %v733, %v735
      %v753 = vsel %vm750, %v735, %v737
      %v754 = vsel %vm750, %v737, %v739
      %v755 = vsel %vm750, %v741, %v743
      %v756 = vsel %vm750, %v743, %v745
      %v757 = vsel %vm750, %v745, %v747
      %v758 = vsel %vm750, %v747, %v749
      %v769 = vadd.f32 %v692, %v751
      %v770 = vadd.f32 %v693, %v752
      %v771 = vadd.f32 %v694, %v753
      %v772 = vadd.f32 %v695, %v754
      %v773 = vadd.f32 %v696, %v739
      %v774 = vadd.f32 %v697, %v755
      %v775 = vadd.f32 %v698, %v756
      %v776 = vadd.f32 %v699, %v757
      %v777 = vadd.f32 %v700, %v758
      %v778 = vadd.f32 %v701, %v749
      %779 = vset.pattern.permute.xlu0 2
      %780 = vperm.xlu0 %779, %v643
      %v781 = vpop.permute.xlu0 %780
      %783 = vset.pattern.permute.xlu0 2
      %784 = vperm.xlu0 %783, %v644
      %v785 = vpop.permute.xlu0 %784
      %v787 = vmul.f32 %v781, %v660
      %v788 = vmul.f32 %v781, %v664
      %v789 = vmul.f32 %v781, %v668
      %v790 = vmul.f32 %v781, %v672
      %v791 = vmul.f32 %v781, %v676
      %v792 = vmul.f32 %v785, %v660
      %v793 = vmul.f32 %v785, %v664
      %v794 = vmul.f32 %v785, %v668
      %v795 = vmul.f32 %v785, %v672
      %v796 = vmul.f32 %v785, %v676
      %807 = vrot.lane.b32.xlu0 %v787, 126
      %v808 = vpop.permute.xlu0 %807
      %809 = vrot.lane.b32.xlu0 %v788, 126
      %v810 = vpop.permute.xlu0 %809
      %811 = vrot.lane.b32.xlu0 %v789, 126
      %v812 = vpop.permute.xlu0 %811
      %813 = vrot.lane.b32.xlu0 %v790, 126
      %v814 = vpop.permute.xlu0 %813
      %815 = vrot.lane.b32.xlu0 %v791, 126
      %v816 = vpop.permute.xlu0 %815
      %817 = vrot.lane.b32.xlu0 %v792, 126
      %v818 = vpop.permute.xlu0 %817
      %819 = vrot.lane.b32.xlu0 %v793, 126
      %v820 = vpop.permute.xlu0 %819
      %821 = vrot.lane.b32.xlu0 %v794, 126
      %v822 = vpop.permute.xlu0 %821
      %823 = vrot.lane.b32.xlu0 %v795, 126
      %v824 = vpop.permute.xlu0 %823
      %825 = vrot.lane.b32.xlu0 %v796, 126
      %v826 = vpop.permute.xlu0 %825
      %vm827 = vcmask 1031168
      %v828 = vsel %vm827, %v808, %v810
      %v829 = vsel %vm827, %v810, %v812
      %v830 = vsel %vm827, %v812, %v814
      %v831 = vsel %vm827, %v814, %v816
      %v832 = vsel %vm827, %v818, %v820
      %v833 = vsel %vm827, %v820, %v822
      %v834 = vsel %vm827, %v822, %v824
      %v835 = vsel %vm827, %v824, %v826
      %v846 = vadd.f32 %v769, %v828
      %v847 = vadd.f32 %v770, %v829
      %v848 = vadd.f32 %v771, %v830
      %v849 = vadd.f32 %v772, %v831
      %v850 = vadd.f32 %v773, %v816
      %v851 = vadd.f32 %v774, %v832
      %v852 = vadd.f32 %v775, %v833
      %v853 = vadd.f32 %v776, %v834
      %v854 = vadd.f32 %v777, %v835
      %v855 = vadd.f32 %v778, %v826
      %856 = vset.pattern.permute.xlu0 3
      %857 = vperm.xlu0 %856, %v643
      %v858 = vpop.permute.xlu0 %857
      %860 = vset.pattern.permute.xlu0 3
      %861 = vperm.xlu0 %860, %v644
      %v862 = vpop.permute.xlu0 %861
      %v864 = vmul.f32 %v858, %v660
      %v865 = vmul.f32 %v858, %v664
      %v866 = vmul.f32 %v858, %v668
      %v867 = vmul.f32 %v858, %v672
      %v868 = vmul.f32 %v858, %v676
      %v869 = vmul.f32 %v862, %v660
      %v870 = vmul.f32 %v862, %v664
      %v871 = vmul.f32 %v862, %v668
      %v872 = vmul.f32 %v862, %v672
      %v873 = vmul.f32 %v862, %v676
      %884 = vrot.lane.b32.xlu0 %v864, 104
      %v885 = vpop.permute.xlu0 %884
      %886 = vrot.lane.b32.xlu0 %v865, 104
      %v887 = vpop.permute.xlu0 %886
      %888 = vrot.lane.b32.xlu0 %v866, 104
      %v889 = vpop.permute.xlu0 %888
      %890 = vrot.lane.b32.xlu0 %v867, 104
      %v891 = vpop.permute.xlu0 %890
      %892 = vrot.lane.b32.xlu0 %v868, 104
      %v893 = vpop.permute.xlu0 %892
      %894 = vrot.lane.b32.xlu0 %v869, 104
      %v895 = vpop.permute.xlu0 %894
      %896 = vrot.lane.b32.xlu0 %v870, 104
      %v897 = vpop.permute.xlu0 %896
      %898 = vrot.lane.b32.xlu0 %v871, 104
      %v899 = vpop.permute.xlu0 %898
      %900 = vrot.lane.b32.xlu0 %v872, 104
      %v901 = vpop.permute.xlu0 %900
      %902 = vrot.lane.b32.xlu0 %v873, 104
      %v903 = vpop.permute.xlu0 %902
      %vm904 = vcmask 850944
      %v905 = vsel %vm904, %v885, %v887
      %v906 = vsel %vm904, %v887, %v889
      %v907 = vsel %vm904, %v889, %v891
      %v908 = vsel %vm904, %v891, %v893
      %v909 = vsel %vm904, %v895, %v897
      %v910 = vsel %vm904, %v897, %v899
      %v911 = vsel %vm904, %v899, %v901
      %v912 = vsel %vm904, %v901, %v903
      %v923 = vadd.f32 %v846, %v905
      %v924 = vadd.f32 %v847, %v906
      %v925 = vadd.f32 %v848, %v907
      %v926 = vadd.f32 %v849, %v908
      %v927 = vadd.f32 %v850, %v893
      %v928 = vadd.f32 %v851, %v909
      %v929 = vadd.f32 %v852, %v910
      %v930 = vadd.f32 %v853, %v911
      %v931 = vadd.f32 %v854, %v912
      %v932 = vadd.f32 %v855, %v903
      %933 = vset.pattern.permute.xlu0 4
      %934 = vperm.xlu0 %933, %v643
      %v935 = vpop.permute.xlu0 %934
      %937 = vset.pattern.permute.xlu0 4
      %938 = vperm.xlu0 %937, %v644
      %v939 = vpop.permute.xlu0 %938
      %v941 = vmul.f32 %v935, %v660
      %v942 = vmul.f32 %v935, %v664
      %v943 = vmul.f32 %v935, %v668
      %v944 = vmul.f32 %v935, %v672
      %v945 = vmul.f32 %v935, %v676
      %v946 = vmul.f32 %v939, %v660
      %v947 = vmul.f32 %v939, %v664
      %v948 = vmul.f32 %v939, %v668
      %v949 = vmul.f32 %v939, %v672
      %v950 = vmul.f32 %v939, %v676
      %961 = vrot.lane.b32.xlu0 %v941, 103
      %v962 = vpop.permute.xlu0 %961
      %963 = vrot.lane.b32.xlu0 %v942, 103
      %v964 = vpop.permute.xlu0 %963
      %965 = vrot.lane.b32.xlu0 %v943, 103
      %v966 = vpop.permute.xlu0 %965
      %967 = vrot.lane.b32.xlu0 %v944, 103
      %v968 = vpop.permute.xlu0 %967
      %969 = vrot.lane.b32.xlu0 %v945, 103
      %v970 = vpop.permute.xlu0 %969
      %971 = vrot.lane.b32.xlu0 %v946, 103
      %v972 = vpop.permute.xlu0 %971
      %973 = vrot.lane.b32.xlu0 %v947, 103
      %v974 = vpop.permute.xlu0 %973
      %975 = vrot.lane.b32.xlu0 %v948, 103
      %v976 = vpop.permute.xlu0 %975
      %977 = vrot.lane.b32.xlu0 %v949, 103
      %v978 = vpop.permute.xlu0 %977
      %979 = vrot.lane.b32.xlu0 %v950, 103
      %v980 = vpop.permute.xlu0 %979
      %vm981 = vcmask 842752
      %v982 = vsel %vm981, %v962, %v964
      %v983 = vsel %vm981, %v964, %v966
      %v984 = vsel %vm981, %v966, %v968
      %v985 = vsel %vm981, %v968, %v970
      %v986 = vsel %vm981, %v972, %v974
      %v987 = vsel %vm981, %v974, %v976
      %v988 = vsel %vm981, %v976, %v978
      %v989 = vsel %vm981, %v978, %v980
      %v1000 = vadd.f32 %v923, %v982
      %v1001 = vadd.f32 %v924, %v983
      %v1002 = vadd.f32 %v925, %v984
      %v1003 = vadd.f32 %v926, %v985
      %v1004 = vadd.f32 %v927, %v970
      %v1005 = vadd.f32 %v928, %v986
      %v1006 = vadd.f32 %v929, %v987
      %v1007 = vadd.f32 %v930, %v988
      %v1008 = vadd.f32 %v931, %v989
      %v1009 = vadd.f32 %v932, %v980
      %1010 = vset.pattern.permute.xlu0 5
      %1011 = vperm.xlu0 %1010, %v643
      %v1012 = vpop.permute.xlu0 %1011
      %1014 = vset.pattern.permute.xlu0 5
      %1015 = vperm.xlu0 %1014, %v644
      %v1016 = vpop.permute.xlu0 %1015
      %v1018 = vmul.f32 %v1012, %v660
      %v1019 = vmul.f32 %v1012, %v664
      %v1020 = vmul.f32 %v1012, %v668
      %v1021 = vmul.f32 %v1012, %v672
      %v1022 = vmul.f32 %v1012, %v676
      %v1023 = vmul.f32 %v1016, %v660
      %v1024 = vmul.f32 %v1016, %v664
      %v1025 = vmul.f32 %v1016, %v668
      %v1026 = vmul.f32 %v1016, %v672
      %v1027 = vmul.f32 %v1016, %v676
      %1038 = vrot.lane.b32.xlu0 %v1018, 102
      %v1039 = vpop.permute.xlu0 %1038
      %1040 = vrot.lane.b32.xlu0 %v1019, 102
      %v1041 = vpop.permute.xlu0 %1040
      %1042 = vrot.lane.b32.xlu0 %v1020, 102
      %v1043 = vpop.permute.xlu0 %1042
      %1044 = vrot.lane.b32.xlu0 %v1021, 102
      %v1045 = vpop.permute.xlu0 %1044
      %1046 = vrot.lane.b32.xlu0 %v1022, 102
      %v1047 = vpop.permute.xlu0 %1046
      %1048 = vrot.lane.b32.xlu0 %v1023, 102
      %v1049 = vpop.permute.xlu0 %1048
      %1050 = vrot.lane.b32.xlu0 %v1024, 102
      %v1051 = vpop.permute.xlu0 %1050
      %1052 = vrot.lane.b32.xlu0 %v1025, 102
      %v1053 = vpop.permute.xlu0 %1052
      %1054 = vrot.lane.b32.xlu0 %v1026, 102
      %v1055 = vpop.permute.xlu0 %1054
      %1056 = vrot.lane.b32.xlu0 %v1027, 102
      %v1057 = vpop.permute.xlu0 %1056
      %vm1058 = vcmask 834560
      %v1059 = vsel %vm1058, %v1039, %v1041
      %v1060 = vsel %vm1058, %v1041, %v1043
      %v1061 = vsel %vm1058, %v1043, %v1045
      %v1062 = vsel %vm1058, %v1045, %v1047
      %v1063 = vsel %vm1058, %v1049, %v1051
      %v1064 = vsel %vm1058, %v1051, %v1053
      %v1065 = vsel %vm1058, %v1053, %v1055
      %v1066 = vsel %vm1058, %v1055, %v1057
      %v1077 = vadd.f32 %v1000, %v1059
      %v1078 = vadd.f32 %v1001, %v1060
      %v1079 = vadd.f32 %v1002, %v1061
      %v1080 = vadd.f32 %v1003, %v1062
      %v1081 = vadd.f32 %v1004, %v1047
      %v1082 = vadd.f32 %v1005, %v1063
      %v1083 = vadd.f32 %v1006, %v1064
      %v1084 = vadd.f32 %v1007, %v1065
      %v1085 = vadd.f32 %v1008, %v1066
      %v1086 = vadd.f32 %v1009, %v1057
      %1087 = vset.pattern.permute.xlu0 6
      %1088 = vperm.xlu0 %1087, %v643
      %v1089 = vpop.permute.xlu0 %1088
      %1091 = vset.pattern.permute.xlu0 6
      %1092 = vperm.xlu0 %1091, %v644
      %v1093 = vpop.permute.xlu0 %1092
      %v1095 = vmul.f32 %v1089, %v660
      %v1096 = vmul.f32 %v1089, %v664
      %v1097 = vmul.f32 %v1089, %v668
      %v1098 = vmul.f32 %v1089, %v672
      %v1099 = vmul.f32 %v1089, %v676
      %v1100 = vmul.f32 %v1093, %v660
      %v1101 = vmul.f32 %v1093, %v664
      %v1102 = vmul.f32 %v1093, %v668
      %v1103 = vmul.f32 %v1093, %v672
      %v1104 = vmul.f32 %v1093, %v676
      %1115 = vrot.lane.b32.xlu0 %v1095, 80
      %v1116 = vpop.permute.xlu0 %1115
      %1117 = vrot.lane.b32.xlu0 %v1096, 80
      %v1118 = vpop.permute.xlu0 %1117
      %1119 = vrot.lane.b32.xlu0 %v1097, 80
      %v1120 = vpop.permute.xlu0 %1119
      %1121 = vrot.lane.b32.xlu0 %v1098, 80
      %v1122 = vpop.permute.xlu0 %1121
      %1123 = vrot.lane.b32.xlu0 %v1099, 80
      %v1124 = vpop.permute.xlu0 %1123
      %1125 = vrot.lane.b32.xlu0 %v1100, 80
      %v1126 = vpop.permute.xlu0 %1125
      %1127 = vrot.lane.b32.xlu0 %v1101, 80
      %v1128 = vpop.permute.xlu0 %1127
      %1129 = vrot.lane.b32.xlu0 %v1102, 80
      %v1130 = vpop.permute.xlu0 %1129
      %1131 = vrot.lane.b32.xlu0 %v1103, 80
      %v1132 = vpop.permute.xlu0 %1131
      %1133 = vrot.lane.b32.xlu0 %v1104, 80
      %v1134 = vpop.permute.xlu0 %1133
      %vm1135 = vcmask 654336
      %v1136 = vsel %vm1135, %v1116, %v1118
      %v1137 = vsel %vm1135, %v1118, %v1120
      %v1138 = vsel %vm1135, %v1120, %v1122
      %v1139 = vsel %vm1135, %v1122, %v1124
      %v1140 = vsel %vm1135, %v1126, %v1128
      %v1141 = vsel %vm1135, %v1128, %v1130
      %v1142 = vsel %vm1135, %v1130, %v1132
      %v1143 = vsel %vm1135, %v1132, %v1134
      %v1154 = vadd.f32 %v1077, %v1136
      %v1155 = vadd.f32 %v1078, %v1137
      %v1156 = vadd.f32 %v1079, %v1138
      %v1157 = vadd.f32 %v1080, %v1139
      %v1158 = vadd.f32 %v1081, %v1124
      %v1159 = vadd.f32 %v1082, %v1140
      %v1160 = vadd.f32 %v1083, %v1141
      %v1161 = vadd.f32 %v1084, %v1142
      %v1162 = vadd.f32 %v1085, %v1143
      %v1163 = vadd.f32 %v1086, %v1134
      %1164 = vset.pattern.permute.xlu0 7
      %1165 = vperm.xlu0 %1164, %v643
      %v1166 = vpop.permute.xlu0 %1165
      %1168 = vset.pattern.permute.xlu0 7
      %1169 = vperm.xlu0 %1168, %v644
      %v1170 = vpop.permute.xlu0 %1169
      %v1172 = vmul.f32 %v1166, %v660
      %v1173 = vmul.f32 %v1166, %v664
      %v1174 = vmul.f32 %v1166, %v668
      %v1175 = vmul.f32 %v1166, %v672
      %v1176 = vmul.f32 %v1166, %v676
      %v1177 = vmul.f32 %v1170, %v660
      %v1178 = vmul.f32 %v1170, %v664
      %v1179 = vmul.f32 %v1170, %v668
      %v1180 = vmul.f32 %v1170, %v672
      %v1181 = vmul.f32 %v1170, %v676
      %1192 = vrot.lane.b32.xlu0 %v1172, 79
      %v1193 = vpop.permute.xlu0 %1192
      %1194 = vrot.lane.b32.xlu0 %v1173, 79
      %v1195 = vpop.permute.xlu0 %1194
      %1196 = vrot.lane.b32.xlu0 %v1174, 79
      %v1197 = vpop.permute.xlu0 %1196
      %1198 = vrot.lane.b32.xlu0 %v1175, 79
      %v1199 = vpop.permute.xlu0 %1198
      %1200 = vrot.lane.b32.xlu0 %v1176, 79
      %v1201 = vpop.permute.xlu0 %1200
      %1202 = vrot.lane.b32.xlu0 %v1177, 79
      %v1203 = vpop.permute.xlu0 %1202
      %1204 = vrot.lane.b32.xlu0 %v1178, 79
      %v1205 = vpop.permute.xlu0 %1204
      %1206 = vrot.lane.b32.xlu0 %v1179, 79
      %v1207 = vpop.permute.xlu0 %1206
      %1208 = vrot.lane.b32.xlu0 %v1180, 79
      %v1209 = vpop.permute.xlu0 %1208
      %1210 = vrot.lane.b32.xlu0 %v1181, 79
      %v1211 = vpop.permute.xlu0 %1210
      %vm1212 = vcmask 646144
      %v1213 = vsel %vm1212, %v1193, %v1195
      %v1214 = vsel %vm1212, %v1195, %v1197
      %v1215 = vsel %vm1212, %v1197, %v1199
      %v1216 = vsel %vm1212, %v1199, %v1201
      %v1217 = vsel %vm1212, %v1203, %v1205
      %v1218 = vsel %vm1212, %v1205, %v1207
      %v1219 = vsel %vm1212, %v1207, %v1209
      %v1220 = vsel %vm1212, %v1209, %v1211
      %v1231 = vadd.f32 %v1154, %v1213
      %v1232 = vadd.f32 %v1155, %v1214
      %v1233 = vadd.f32 %v1156, %v1215
      %v1234 = vadd.f32 %v1157, %v1216
      %v1235 = vadd.f32 %v1158, %v1201
      %v1236 = vadd.f32 %v1159, %v1217
      %v1237 = vadd.f32 %v1160, %v1218
      %v1238 = vadd.f32 %v1161, %v1219
      %v1239 = vadd.f32 %v1162, %v1220
      %v1240 = vadd.f32 %v1163, %v1211
      %1241 = vset.pattern.permute.xlu0 8
      %1242 = vperm.xlu0 %1241, %v643
      %v1243 = vpop.permute.xlu0 %1242
      %1245 = vset.pattern.permute.xlu0 8
      %1246 = vperm.xlu0 %1245, %v644
      %v1247 = vpop.permute.xlu0 %1246
      %v1249 = vmul.f32 %v1243, %v660
      %v1250 = vmul.f32 %v1243, %v664
      %v1251 = vmul.f32 %v1243, %v668
      %v1252 = vmul.f32 %v1243, %v672
      %v1253 = vmul.f32 %v1243, %v676
      %v1254 = vmul.f32 %v1247, %v660
      %v1255 = vmul.f32 %v1247, %v664
      %v1256 = vmul.f32 %v1247, %v668
      %v1257 = vmul.f32 %v1247, %v672
      %v1258 = vmul.f32 %v1247, %v676
      %1269 = vrot.lane.b32.xlu0 %v1249, 78
      %v1270 = vpop.permute.xlu0 %1269
      %1271 = vrot.lane.b32.xlu0 %v1250, 78
      %v1272 = vpop.permute.xlu0 %1271
      %1273 = vrot.lane.b32.xlu0 %v1251, 78
      %v1274 = vpop.permute.xlu0 %1273
      %1275 = vrot.lane.b32.xlu0 %v1252, 78
      %v1276 = vpop.permute.xlu0 %1275
      %1277 = vrot.lane.b32.xlu0 %v1253, 78
      %v1278 = vpop.permute.xlu0 %1277
      %1279 = vrot.lane.b32.xlu0 %v1254, 78
      %v1280 = vpop.permute.xlu0 %1279
      %1281 = vrot.lane.b32.xlu0 %v1255, 78
      %v1282 = vpop.permute.xlu0 %1281
      %1283 = vrot.lane.b32.xlu0 %v1256, 78
      %v1284 = vpop.permute.xlu0 %1283
      %1285 = vrot.lane.b32.xlu0 %v1257, 78
      %v1286 = vpop.permute.xlu0 %1285
      %1287 = vrot.lane.b32.xlu0 %v1258, 78
      %v1288 = vpop.permute.xlu0 %1287
      %vm1289 = vcmask 637952
      %v1290 = vsel %vm1289, %v1270, %v1272
      %v1291 = vsel %vm1289, %v1272, %v1274
      %v1292 = vsel %vm1289, %v1274, %v1276
      %v1293 = vsel %vm1289, %v1276, %v1278
      %v1294 = vsel %vm1289, %v1280, %v1282
      %v1295 = vsel %vm1289, %v1282, %v1284
      %v1296 = vsel %vm1289, %v1284, %v1286
      %v1297 = vsel %vm1289, %v1286, %v1288
      %v1308 = vadd.f32 %v1231, %v1290
      %v1309 = vadd.f32 %v1232, %v1291
      %v1310 = vadd.f32 %v1233, %v1292
      %v1311 = vadd.f32 %v1234, %v1293
      %v1312 = vadd.f32 %v1235, %v1278
      %v1313 = vadd.f32 %v1236, %v1294
      %v1314 = vadd.f32 %v1237, %v1295
      %v1315 = vadd.f32 %v1238, %v1296
      %v1316 = vadd.f32 %v1239, %v1297
      %v1317 = vadd.f32 %v1240, %v1288
      %v1318 = vld [vmem:[%s3] sm:$0xff]
      %v1319 = vld [vmem:[%s3 + $0x8] sm:$0xff]
      %1321 = vset.pattern.permute.xlu0 0
      %1322 = vperm.xlu0 %1321, %v1318
      %v1323 = vpop.permute.xlu0 %1322
      %1326 = vset.pattern.permute.xlu0 0
      %1327 = vperm.xlu0 %1326, %v1319
      %v1328 = vpop.permute.xlu0 %1327
      %v1330 = vadd.f32 %v1308, %v1323
      %v1331 = vadd.f32 %v1309, %v1323
      %v1332 = vadd.f32 %v1310, %v1323
      %v1333 = vadd.f32 %v1311, %v1323
      %v1334 = vadd.f32 %v1312, %v1323
      %v1335 = vadd.f32 %v1313, %v1328
      %v1336 = vadd.f32 %v1314, %v1328
      %v1337 = vadd.f32 %v1315, %v1328
      %v1338 = vadd.f32 %v1316, %v1328
      %v1339 = vadd.f32 %v1317, %v1328
      %v1340 = vmax.f32 %v1330, 0.0
      %v1341 = vmax.f32 %v1331, 0.0
      %v1342 = vmax.f32 %v1332, 0.0
      %v1343 = vmax.f32 %v1333, 0.0
      %v1344 = vmax.f32 %v1334, 0.0
      %v1345 = vmax.f32 %v1335, 0.0
      %v1346 = vmax.f32 %v1336, 0.0
      %v1347 = vmax.f32 %v1337, 0.0
      %v1348 = vmax.f32 %v1338, 0.0
      %v1349 = vmax.f32 %v1339, 0.0
      %1350 = vst [vmem:[#allocation2] sm:$0xff] %v1340
      %1351 = vst [vmem:[#allocation2 + $0x8] sm:$0xff] %v1341
      %1352 = vst [vmem:[#allocation2 + $0x10] sm:$0xff] %v1342
      %1353 = vst [vmem:[#allocation2 + $0x18] sm:$0xff] %v1343
      %vm1354 = vcmask 113664
      %1355 = vst.msk [vmem:[#allocation2 + $0x20] sm:$0xff] %vm1354, %v1344
      %1356 = vst [vmem:[#allocation2 + $0x28] sm:$0xff] %v1345
      %1357 = vst [vmem:[#allocation2 + $0x30] sm:$0xff] %v1346
      %1358 = vst [vmem:[#allocation2 + $0x38] sm:$0xff] %v1347
      %1359 = vst [vmem:[#allocation2 + $0x40] sm:$0xff] %v1348
      %1360 = vst.msk [vmem:[#allocation2 + $0x48] sm:$0xff] %vm1354, %v1349
      %v1361 = vld [vmem:[#allocation2] sm:$0xff]
      %v1362 = vld [vmem:[#allocation2 + $0x8] sm:$0xff]
      %v1363 = vld [vmem:[#allocation2 + $0x10] sm:$0xff]
      %v1364 = vld [vmem:[#allocation2 + $0x18] sm:$0xff]
      %v1365 = vld [vmem:[#allocation2 + $0x28] sm:$0xff]
      %v1366 = vld [vmem:[#allocation2 + $0x30] sm:$0xff]
      %v1367 = vld [vmem:[#allocation2 + $0x38] sm:$0xff]
      %v1368 = vld [vmem:[#allocation2 + $0x40] sm:$0xff]
      %v1369 = vld [vmem:[#allocation2 + $0x20] sm:$0xff]
      %v1370 = vld [vmem:[#allocation2 + $0x48] sm:$0xff]
      %1379 = vrot.lane.b32.xlu0 %v1361, 127
      %v1380 = vpop.permute.xlu0 %1379
      %1381 = vrot.lane.b32.xlu0 %v1362, 127
      %v1382 = vpop.permute.xlu0 %1381
      %1383 = vrot.lane.b32.xlu0 %v1363, 127
      %v1384 = vpop.permute.xlu0 %1383
      %1385 = vrot.lane.b32.xlu0 %v1364, 127
      %v1386 = vpop.permute.xlu0 %1385
      %1387 = vrot.lane.b32.xlu0 %v1365, 127
      %v1388 = vpop.permute.xlu0 %1387
      %1389 = vrot.lane.b32.xlu0 %v1366, 127
      %v1390 = vpop.permute.xlu0 %1389
      %1391 = vrot.lane.b32.xlu0 %v1367, 127
      %v1392 = vpop.permute.xlu0 %1391
      %1393 = vrot.lane.b32.xlu0 %v1368, 127
      %v1394 = vpop.permute.xlu0 %1393
      %v1395 = vsel %vm750, %v1380, %v1382
      %v1396 = vsel %vm750, %v1382, %v1384
      %v1397 = vsel %vm750, %v1384, %v1386
      %v1398 = vsel %vm750, %v1388, %v1390
      %v1399 = vsel %vm750, %v1390, %v1392
      %v1400 = vsel %vm750, %v1392, %v1394
      %1409 = vrot.lane.b32.xlu0 %v1361, 126
      %v1410 = vpop.permute.xlu0 %1409
      %1411 = vrot.lane.b32.xlu0 %v1362, 126
      %v1412 = vpop.permute.xlu0 %1411
      %1413 = vrot.lane.b32.xlu0 %v1363, 126
      %v1414 = vpop.permute.xlu0 %1413
      %1415 = vrot.lane.b32.xlu0 %v1364, 126
      %v1416 = vpop.permute.xlu0 %1415
      %1417 = vrot.lane.b32.xlu0 %v1365, 126
      %v1418 = vpop.permute.xlu0 %1417
      %1419 = vrot.lane.b32.xlu0 %v1366, 126
      %v1420 = vpop.permute.xlu0 %1419
      %1421 = vrot.lane.b32.xlu0 %v1367, 126
      %v1422 = vpop.permute.xlu0 %1421
      %1423 = vrot.lane.b32.xlu0 %v1368, 126
      %v1424 = vpop.permute.xlu0 %1423
      %v1425 = vsel %vm827, %v1410, %v1412
      %v1426 = vsel %vm827, %v1412, %v1414
      %v1427 = vsel %vm827, %v1414, %v1416
      %v1428 = vsel %vm827, %v1418, %v1420
      %v1429 = vsel %vm827, %v1420, %v1422
      %v1430 = vsel %vm827, %v1422, %v1424
      %1439 = vrot.lane.b32.xlu0 %v1361, 104
      %v1440 = vpop.permute.xlu0 %1439
      %1441 = vrot.lane.b32.xlu0 %v1362, 104
      %v1442 = vpop.permute.xlu0 %1441
      %1443 = vrot.lane.b32.xlu0 %v1363, 104
      %v1444 = vpop.permute.xlu0 %1443
      %1445 = vrot.lane.b32.xlu0 %v1364, 104
      %v1446 = vpop.permute.xlu0 %1445
      %1447 = vrot.lane.b32.xlu0 %v1365, 104
      %v1448 = vpop.permute.xlu0 %1447
      %1449 = vrot.lane.b32.xlu0 %v1366, 104
      %v1450 = vpop.permute.xlu0 %1449
      %1451 = vrot.lane.b32.xlu0 %v1367, 104
      %v1452 = vpop.permute.xlu0 %1451
      %1453 = vrot.lane.b32.xlu0 %v1368, 104
      %v1454 = vpop.permute.xlu0 %1453
      %v1455 = vsel %vm904, %v1440, %v1442
      %v1456 = vsel %vm904, %v1442, %v1444
      %v1457 = vsel %vm904, %v1444, %v1446
      %v1458 = vsel %vm904, %v1448, %v1450
      %v1459 = vsel %vm904, %v1450, %v1452
      %v1460 = vsel %vm904, %v1452, %v1454
      %1469 = vrot.lane.b32.xlu0 %v1361, 103
      %v1470 = vpop.permute.xlu0 %1469
      %1471 = vrot.lane.b32.xlu0 %v1362, 103
      %v1472 = vpop.permute.xlu0 %1471
      %1473 = vrot.lane.b32.xlu0 %v1363, 103
      %v1474 = vpop.permute.xlu0 %1473
      %1475 = vrot.lane.b32.xlu0 %v1364, 103
      %v1476 = vpop.permute.xlu0 %1475
      %1477 = vrot.lane.b32.xlu0 %v1365, 103
      %v1478 = vpop.permute.xlu0 %1477
      %1479 = vrot.lane.b32.xlu0 %v1366, 103
      %v1480 = vpop.permute.xlu0 %1479
      %1481 = vrot.lane.b32.xlu0 %v1367, 103
      %v1482 = vpop.permute.xlu0 %1481
      %1483 = vrot.lane.b32.xlu0 %v1368, 103
      %v1484 = vpop.permute.xlu0 %1483
      %v1485 = vsel %vm981, %v1470, %v1472
      %v1486 = vsel %vm981, %v1472, %v1474
      %v1487 = vsel %vm981, %v1474, %v1476
      %v1488 = vsel %vm981, %v1478, %v1480
      %v1489 = vsel %vm981, %v1480, %v1482
      %v1490 = vsel %vm981, %v1482, %v1484
      %1499 = vrot.lane.b32.xlu0 %v1361, 102
      %v1500 = vpop.permute.xlu0 %1499
      %1501 = vrot.lane.b32.xlu0 %v1362, 102
      %v1502 = vpop.permute.xlu0 %1501
      %1503 = vrot.lane.b32.xlu0 %v1363, 102
      %v1504 = vpop.permute.xlu0 %1503
      %1505 = vrot.lane.b32.xlu0 %v1364, 102
      %v1506 = vpop.permute.xlu0 %1505
      %1507 = vrot.lane.b32.xlu0 %v1365, 102
      %v1508 = vpop.permute.xlu0 %1507
      %1509 = vrot.lane.b32.xlu0 %v1366, 102
      %v1510 = vpop.permute.xlu0 %1509
      %1511 = vrot.lane.b32.xlu0 %v1367, 102
      %v1512 = vpop.permute.xlu0 %1511
      %1513 = vrot.lane.b32.xlu0 %v1368, 102
      %v1514 = vpop.permute.xlu0 %1513
      %v1515 = vsel %vm1058, %v1500, %v1502
      %v1516 = vsel %vm1058, %v1502, %v1504
      %v1517 = vsel %vm1058, %v1504, %v1506
      %v1518 = vsel %vm1058, %v1508, %v1510
      %v1519 = vsel %vm1058, %v1510, %v1512
      %v1520 = vsel %vm1058, %v1512, %v1514
      %1531 = vrot.lane.b32.xlu0 %v1361, 80
      %v1532 = vpop.permute.xlu0 %1531
      %1533 = vrot.lane.b32.xlu0 %v1362, 80
      %v1534 = vpop.permute.xlu0 %1533
      %1535 = vrot.lane.b32.xlu0 %v1363, 80
      %v1536 = vpop.permute.xlu0 %1535
      %1537 = vrot.lane.b32.xlu0 %v1364, 80
      %v1538 = vpop.permute.xlu0 %1537
      %1539 = vrot.lane.b32.xlu0 %v1369, 80
      %v1540 = vpop.permute.xlu0 %1539
      %1541 = vrot.lane.b32.xlu0 %v1365, 80
      %v1542 = vpop.permute.xlu0 %1541
      %1543 = vrot.lane.b32.xlu0 %v1366, 80
      %v1544 = vpop.permute.xlu0 %1543
      %1545 = vrot.lane.b32.xlu0 %v1367, 80
      %v1546 = vpop.permute.xlu0 %1545
      %1547 = vrot.lane.b32.xlu0 %v1368, 80
      %v1548 = vpop.permute.xlu0 %1547
      %1549 = vrot.lane.b32.xlu0 %v1370, 80
      %v1550 = vpop.permute.xlu0 %1549
      %v1551 = vsel %vm1135, %v1532, %v1534
      %v1552 = vsel %vm1135, %v1534, %v1536
      %v1553 = vsel %vm1135, %v1536, %v1538
      %v1554 = vsel %vm1135, %v1538, %v1540
      %v1555 = vsel %vm1135, %v1542, %v1544
      %v1556 = vsel %vm1135, %v1544, %v1546
      %v1557 = vsel %vm1135, %v1546, %v1548
      %v1558 = vsel %vm1135, %v1548, %v1550
      %1567 = vrot.lane.b32.xlu0 %v1361, 79
      %v1568 = vpop.permute.xlu0 %1567
      %1569 = vrot.lane.b32.xlu0 %v1362, 79
      %v1570 = vpop.permute.xlu0 %1569
      %1571 = vrot.lane.b32.xlu0 %v1363, 79
      %v1572 = vpop.permute.xlu0 %1571
      %1573 = vrot.lane.b32.xlu0 %v1364, 79
      %v1574 = vpop.permute.xlu0 %1573
      %1575 = vrot.lane.b32.xlu0 %v1369, 79
      %v1576 = vpop.permute.xlu0 %1575
      %1577 = vrot.lane.b32.xlu0 %v1365, 79
      %v1578 = vpop.permute.xlu0 %1577
      %1579 = vrot.lane.b32.xlu0 %v1366, 79
      %v1580 = vpop.permute.xlu0 %1579
      %1581 = vrot.lane.b32.xlu0 %v1367, 79
      %v1582 = vpop.permute.xlu0 %1581
      %1583 = vrot.lane.b32.xlu0 %v1368, 79
      %v1584 = vpop.permute.xlu0 %1583
      %1585 = vrot.lane.b32.xlu0 %v1370, 79
      %v1586 = vpop.permute.xlu0 %1585
      %v1587 = vsel %vm1212, %v1568, %v1570
      %v1588 = vsel %vm1212, %v1570, %v1572
      %v1589 = vsel %vm1212, %v1572, %v1574
      %v1590 = vsel %vm1212, %v1574, %v1576
      %v1591 = vsel %vm1212, %v1578, %v1580
      %v1592 = vsel %vm1212, %v1580, %v1582
      %v1593 = vsel %vm1212, %v1582, %v1584
      %v1594 = vsel %vm1212, %v1584, %v1586
      %1603 = vrot.lane.b32.xlu0 %v1361, 78
      %v1604 = vpop.permute.xlu0 %1603
      %1605 = vrot.lane.b32.xlu0 %v1362, 78
      %v1606 = vpop.permute.xlu0 %1605
      %1607 = vrot.lane.b32.xlu0 %v1363, 78
      %v1608 = vpop.permute.xlu0 %1607
      %1609 = vrot.lane.b32.xlu0 %v1364, 78
      %v1610 = vpop.permute.xlu0 %1609
      %1611 = vrot.lane.b32.xlu0 %v1369, 78
      %v1612 = vpop.permute.xlu0 %1611
      %1613 = vrot.lane.b32.xlu0 %v1365, 78
      %v1614 = vpop.permute.xlu0 %1613
      %1615 = vrot.lane.b32.xlu0 %v1366, 78
      %v1616 = vpop.permute.xlu0 %1615
      %1617 = vrot.lane.b32.xlu0 %v1367, 78
      %v1618 = vpop.permute.xlu0 %1617
      %1619 = vrot.lane.b32.xlu0 %v1368, 78
      %v1620 = vpop.permute.xlu0 %1619
      %1621 = vrot.lane.b32.xlu0 %v1370, 78
      %v1622 = vpop.permute.xlu0 %1621
      %v1623 = vsel %vm1289, %v1604, %v1606
      %v1624 = vsel %vm1289, %v1606, %v1608
      %v1625 = vsel %vm1289, %v1608, %v1610
      %v1626 = vsel %vm1289, %v1610, %v1612
      %v1627 = vsel %vm1289, %v1614, %v1616
      %v1628 = vsel %vm1289, %v1616, %v1618
      %v1629 = vsel %vm1289, %v1618, %v1620
      %v1630 = vsel %vm1289, %v1620, %v1622
      %v1639 = vld [vmem:[%s4] sm:$0xff]
      %v1640 = vld [vmem:[%s4 + $0x8] sm:$0xff]
      %v1641 = vpack.c.bf16 %v1365, %v1361
      %v1642 = vpack.c.bf16 %v1366, %v1362
      %v1643 = vpack.c.bf16 %v1367, %v1363
      %v1644 = vpack.c.bf16 %v1368, %v1364
      %v1645 = vpack.c.bf16 %v1398, %v1395
      %v1646 = vpack.c.bf16 %v1399, %v1396
      %v1647 = vpack.c.bf16 %v1400, %v1397
      %v1648 = vpack.c.bf16 %v1394, %v1386
      %v1649 = vpack.c.bf16 %v1428, %v1425
      %v1650 = vpack.c.bf16 %v1429, %v1426
      %v1651 = vpack.c.bf16 %v1430, %v1427
      %v1652 = vpack.c.bf16 %v1424, %v1416
      %v1653 = vpack.c.bf16 %v1458, %v1455
      %v1654 = vpack.c.bf16 %v1459, %v1456
      %v1655 = vpack.c.bf16 %v1460, %v1457
      %v1656 = vpack.c.bf16 %v1454, %v1446
      %v1657 = vpack.c.bf16 %v1488, %v1485
      %v1658 = vpack.c.bf16 %v1489, %v1486
      %v1659 = vpack.c.bf16 %v1490, %v1487
      %v1660 = vpack.c.bf16 %v1484, %v1476
      %v1661 = vpack.c.bf16 %v1518, %v1515
      %v1662 = vpack.c.bf16 %v1519, %v1516
      %v1663 = vpack.c.bf16 %v1520, %v1517
      %v1664 = vpack.c.bf16 %v1514, %v1506
      %v1665 = vpack.c.bf16 %v1555, %v1551
      %v1666 = vpack.c.bf16 %v1556, %v1552
      %v1667 = vpack.c.bf16 %v1557, %v1553
      %v1668 = vpack.c.bf16 %v1558, %v1554
      %v1669 = vpack.c.bf16 %v1591, %v1587
      %v1670 = vpack.c.bf16 %v1592, %v1588
      %v1671 = vpack.c.bf16 %v1593, %v1589
      %v1672 = vpack.c.bf16 %v1594, %v1590
      %v1673 = vpack.c.bf16 %v1627, %v1623
      %v1674 = vpack.c.bf16 %v1628, %v1624
      %v1675 = vpack.c.bf16 %v1629, %v1625
      %v1676 = vpack.c.bf16 %v1630, %v1626
      %v1677 = vld [vmem:[%s5] sm:$0xff]
      %v1678 = vld [vmem:[%s5 + $0x8] sm:$0xff]
      %1680 = vset.pattern.permute.xlu0 0
      %1681 = vperm.xlu0 %1680, %v1677
      %v1682 = vpop.permute.xlu0 %1681
      %1685 = vset.pattern.permute.xlu0 0
      %1686 = vperm.xlu0 %1685, %v1678
      %v1687 = vpop.permute.xlu0 %1686
      %v1691 = vunpack.c.l.b16 %v1639
      %v1692 = vunpack.c.h.b16 %v1639
      %v1693 = vunpack.c.l.b16 %v1640
      %v1694 = vunpack.c.h.b16 %v1640
      %v1695 = vpack.c.b16 %v1693, %v1691
      %v1696 = vpack.c.b16 %v1694, %v1692
      %vm1698 = vcmask 130048
      %v1700 = vsel %vm1698, %v1696, 0
      %1702 = vmatprep.subr.bf16.mxu0 %v1642
      %1703 = vmatpush1.bf16.msra.mxu0 %v1641
      %1704 = vmatprep.subr.bf16.mxu0 %v1646
      %1705 = vmatpush1.bf16.msra.mxu0 %v1645
      %1706 = vmatprep.subr.bf16.mxu0 %v1650
      %1707 = vmatpush1.bf16.msra.mxu0 %v1649
      %1708 = vmatprep.subr.bf16.mxu0 %v1654
      %1709 = vmatpush1.bf16.msra.mxu0 %v1653
      %1710 = vmatprep.subr.bf16.mxu0 %v1658
      %1711 = vmatpush1.bf16.msra.mxu0 %v1657
      %1712 = vmatprep.subr.bf16.mxu0 %v1662
      %1713 = vmatpush1.bf16.msra.mxu0 %v1661
      %1714 = vmatprep.subr.bf16.mxu0 %v1666
      %1715 = vmatpush1.bf16.msra.mxu0 %v1665
      %1716 = vmatprep.subr.bf16.mxu0 %v1670
      %1717 = vmatpush1.bf16.msra.mxu0 %v1669
      %1718 = vmatprep.subr.bf16.mxu0 %v1674
      %1719 = vmatpush1.bf16.msra.mxu0 %v1673
      %1720 = vmatprep.subr.bf16.mxu0 0
      %1721 = vmatpush1.bf16.msra.mxu0 0
      %1722 = vmatprep.subr.bf16.mxu0 0
      %1723 = vmatpush1.bf16.msra.mxu0 0
      %1724 = vmatprep.subr.bf16.mxu0 0
      %1725 = vmatpush1.bf16.msra.mxu0 0
      %1726 = vmatprep.subr.bf16.mxu0 0
      %1727 = vmatpush1.bf16.msra.mxu0 0
      %1728 = vmatprep.subr.bf16.mxu0 0
      %1729 = vmatpush1.bf16.msra.mxu0 0
      %1730 = vmatprep.subr.bf16.mxu0 0
      %1731 = vmatpush1.bf16.msra.mxu0 0
      %1732 = vmatprep.subr.bf16.mxu0 0
      %1733 = vmatpush1.bf16.msra.mxu0 0
      %1734 = vmatprep.mubr.bf16.mxu0 %v1700
      %1735 = vmatmul.mubr.bf16.gmra.mrb[0].mxu0 %v1695
      %v1736 = vpop.f32.mrb[0].mxu0
      %v1737 = vadd.f32 %v1682, %v1736
      %v1738 = vpop.f32.mrb[0].mxu0
      %v1739 = vadd.f32 %v1682, %v1738
      %v1740 = vpop.f32.mrb[0].mxu0
      %v1741 = vadd.f32 %v1687, %v1740
      %v1742 = vpop.f32.mrb[0].mxu0
      %v1743 = vadd.f32 %v1687, %v1742
      %1744 = vdwg.mxu0
      %1745 = vmatprep.subr.bf16.mxu0 %v1644
      %1746 = vmatpush1.bf16.msra.mxu0 %v1643
      %1747 = vmatprep.subr.bf16.mxu0 %v1648
      %1748 = vmatpush1.bf16.msra.mxu0 %v1647
      %1749 = vmatprep.subr.bf16.mxu0 %v1652
      %1750 = vmatpush1.bf16.msra.mxu0 %v1651
      %1751 = vmatprep.subr.bf16.mxu0 %v1656
      %1752 = vmatpush1.bf16.msra.mxu0 %v1655
      %1753 = vmatprep.subr.bf16.mxu0 %v1660
      %1754 = vmatpush1.bf16.msra.mxu0 %v1659
      %1755 = vmatprep.subr.bf16.mxu0 %v1664
      %1756 = vmatpush1.bf16.msra.mxu0 %v1663
      %1757 = vmatprep.subr.bf16.mxu0 %v1668
      %1758 = vmatpush1.bf16.msra.mxu0 %v1667
      %1759 = vmatprep.subr.bf16.mxu0 %v1672
      %1760 = vmatpush1.bf16.msra.mxu0 %v1671
      %1761 = vmatprep.subr.bf16.mxu0 %v1676
      %1762 = vmatpush1.bf16.msra.mxu0 %v1675
      %1763 = vmatprep.subr.bf16.mxu0 0
      %1764 = vmatpush1.bf16.msra.mxu0 0
      %1765 = vmatprep.subr.bf16.mxu0 0
      %1766 = vmatpush1.bf16.msra.mxu0 0
      %1767 = vmatprep.subr.bf16.mxu0 0
      %1768 = vmatpush1.bf16.msra.mxu0 0
      %1769 = vmatprep.subr.bf16.mxu0 0
      %1770 = vmatpush1.bf16.msra.mxu0 0
      %1771 = vmatprep.subr.bf16.mxu0 0
      %1772 = vmatpush1.bf16.msra.mxu0 0
      %1773 = vmatprep.subr.bf16.mxu0 0
      %1774 = vmatpush1.bf16.msra.mxu0 0
      %1775 = vmatprep.subr.bf16.mxu0 0
      %1776 = vmatpush1.bf16.msra.mxu0 0
      %1777 = vmatprep.mubr.bf16.mxu0 %v1700
      %1778 = vmatmul.mubr.bf16.gmra.mrb[0].mxu0 %v1695
      %v1779 = vpop.f32.mrb[0].mxu0
      %v1780 = vadd.f32 %v1682, %v1779
      %v1781 = vpop.f32.mrb[0].mxu0
      %v1782 = vadd.f32 %v1682, %v1781
      %v1783 = vpop.f32.mrb[0].mxu0
      %v1784 = vadd.f32 %v1687, %v1783
      %v1785 = vpop.f32.mrb[0].mxu0
      %v1786 = vadd.f32 %v1687, %v1785
      %1787 = vdwg.mxu0
      %v1788 = vmax.f32 %v1737, 0.0
      %v1789 = vmax.f32 %v1739, 0.0
      %v1790 = vmax.f32 %v1780, 0.0
      %v1791 = vmax.f32 %v1782, 0.0
      %v1792 = vmax.f32 %v1741, 0.0
      %v1793 = vmax.f32 %v1743, 0.0
      %v1794 = vmax.f32 %v1784, 0.0
      %v1795 = vmax.f32 %v1786, 0.0
      %1796 = vst [vmem:[#allocation3] sm:$0xff] %v1788
      %1797 = vst [vmem:[#allocation3 + $0x8] sm:$0xff] %v1789
      %1798 = vst [vmem:[#allocation3 + $0x10] sm:$0xff] %v1790
      %vm1799 = vcmask 752640
      %1800 = vst.msk [vmem:[#allocation3 + $0x18] sm:$0xff] %vm1799, %v1791
      %1801 = vst [vmem:[#allocation3 + $0x28] sm:$0xff] %v1792
      %1802 = vst [vmem:[#allocation3 + $0x30] sm:$0xff] %v1793
      %1803 = vst [vmem:[#allocation3 + $0x38] sm:$0xff] %v1794
      %1804 = vst.msk [vmem:[#allocation3 + $0x40] sm:$0xff] %vm1799, %v1795
      %v1805 = vld [vmem:[#allocation3] sm:$0xff]
      %v1806 = vld [vmem:[#allocation3 + $0x8] sm:$0xff]
      %v1807 = vld [vmem:[#allocation3 + $0x10] sm:$0xff]
      %v1808 = vld [vmem:[#allocation3 + $0x18] sm:$0xff]
      %v1809 = vld [vmem:[#allocation3 + $0x28] sm:$0xff]
      %v1810 = vld [vmem:[#allocation3 + $0x30] sm:$0xff]
      %v1811 = vld [vmem:[#allocation3 + $0x38] sm:$0xff]
      %v1812 = vld [vmem:[#allocation3 + $0x40] sm:$0xff]
      %1821 = vrot.lane.b32.xlu0 %v1805, 127
      %v1822 = vpop.permute.xlu0 %1821
      %1823 = vrot.lane.b32.xlu0 %v1806, 127
      %v1824 = vpop.permute.xlu0 %1823
      %1825 = vrot.lane.b32.xlu0 %v1807, 127
      %v1826 = vpop.permute.xlu0 %1825
      %1827 = vrot.lane.b32.xlu0 %v1808, 127
      %v1828 = vpop.permute.xlu0 %1827
      %1829 = vrot.lane.b32.xlu0 %v1809, 127
      %v1830 = vpop.permute.xlu0 %1829
      %1831 = vrot.lane.b32.xlu0 %v1810, 127
      %v1832 = vpop.permute.xlu0 %1831
      %1833 = vrot.lane.b32.xlu0 %v1811, 127
      %v1834 = vpop.permute.xlu0 %1833
      %1835 = vrot.lane.b32.xlu0 %v1812, 127
      %v1836 = vpop.permute.xlu0 %1835
      %v1837 = vsel %vm750, %v1822, %v1824
      %v1838 = vsel %vm750, %v1824, %v1826
      %v1839 = vsel %vm750, %v1826, %v1828
      %v1840 = vsel %vm750, %v1830, %v1832
      %v1841 = vsel %vm750, %v1832, %v1834
      %v1842 = vsel %vm750, %v1834, %v1836
      %v1851 = vmax.f32 %v1805, %v1837
      %v1852 = vmax.f32 %v1806, %v1838
      %v1853 = vmax.f32 %v1807, %v1839
      %v1854 = vmax.f32 %v1808, %v1828
      %v1855 = vmax.f32 %v1809, %v1840
      %v1856 = vmax.f32 %v1810, %v1841
      %v1857 = vmax.f32 %v1811, %v1842
      %v1858 = vmax.f32 %v1812, %v1836
      %1867 = vrot.lane.b32.xlu0 %v1851, 104
      %v1868 = vpop.permute.xlu0 %1867
      %1869 = vrot.lane.b32.xlu0 %v1852, 104
      %v1870 = vpop.permute.xlu0 %1869
      %1871 = vrot.lane.b32.xlu0 %v1853, 104
      %v1872 = vpop.permute.xlu0 %1871
      %1873 = vrot.lane.b32.xlu0 %v1854, 104
      %v1874 = vpop.permute.xlu0 %1873
      %1875 = vrot.lane.b32.xlu0 %v1855, 104
      %v1876 = vpop.permute.xlu0 %1875
      %1877 = vrot.lane.b32.xlu0 %v1856, 104
      %v1878 = vpop.permute.xlu0 %1877
      %1879 = vrot.lane.b32.xlu0 %v1857, 104
      %v1880 = vpop.permute.xlu0 %1879
      %1881 = vrot.lane.b32.xlu0 %v1858, 104
      %v1882 = vpop.permute.xlu0 %1881
      %v1883 = vsel %vm904, %v1868, %v1870
      %v1884 = vsel %vm904, %v1870, %v1872
      %v1885 = vsel %vm904, %v1872, %v1874
      %v1886 = vsel %vm904, %v1876, %v1878
      %v1887 = vsel %vm904, %v1878, %v1880
      %v1888 = vsel %vm904, %v1880, %v1882
      %v1897 = vmax.f32 %v1851, %v1883
      %v1898 = vmax.f32 %v1852, %v1884
      %v1899 = vmax.f32 %v1853, %v1885
      %v1900 = vmax.f32 %v1854, %v1874
      %v1901 = vmax.f32 %v1855, %v1886
      %v1902 = vmax.f32 %v1856, %v1887
      %v1903 = vmax.f32 %v1857, %v1888
      %v1904 = vmax.f32 %v1858, %v1882
      %1905 = vst [vmem:[#allocation2] sm:$0xff] %v1897
      %1906 = vst [vmem:[#allocation2 + $0x8] sm:$0xff] %v1898
      %1907 = vst [vmem:[#allocation2 + $0x10] sm:$0xff] %v1899
      %vm1908 = vcmask 547840
      %1909 = vst.msk [vmem:[#allocation2 + $0x18] sm:$0xff] %vm1908, %v1900
      %1910 = vst [vmem:[#allocation2 + $0x28] sm:$0xff] %v1901
      %1911 = vst [vmem:[#allocation2 + $0x30] sm:$0xff] %v1902
      %1912 = vst [vmem:[#allocation2 + $0x38] sm:$0xff] %v1903
      %1913 = vst.msk [vmem:[#allocation2 + $0x40] sm:$0xff] %vm1908, %v1904
      %v1914 = vld [vmem:[#allocation2] sm:$0xff]
      %v1915 = vld [vmem:[#allocation2 + $0x8] sm:$0xff]
      %v1916 = vld [vmem:[#allocation2 + $0x10] sm:$0xff]
      %v1917 = vld [vmem:[#allocation2 + $0x28] sm:$0xff]
      %v1918 = vld [vmem:[#allocation2 + $0x30] sm:$0xff]
      %v1919 = vld [vmem:[#allocation2 + $0x38] sm:$0xff]
      %v1920 = vld [vmem:[#allocation2 + $0x18] sm:$0xff]
      %v1921 = vld [vmem:[#allocation2 + $0x40] sm:$0xff]
      %1928 = vrot.lane.b32.xlu0 %v1914, 126
      %v1929 = vpop.permute.xlu0 %1928
      %1930 = vrot.lane.b32.xlu0 %v1915, 126
      %v1931 = vpop.permute.xlu0 %1930
      %1932 = vrot.lane.b32.xlu0 %v1916, 126
      %v1933 = vpop.permute.xlu0 %1932
      %1934 = vrot.lane.b32.xlu0 %v1917, 126
      %v1935 = vpop.permute.xlu0 %1934
      %1936 = vrot.lane.b32.xlu0 %v1918, 126
      %v1937 = vpop.permute.xlu0 %1936
      %1938 = vrot.lane.b32.xlu0 %v1919, 126
      %v1939 = vpop.permute.xlu0 %1938
      %v1940 = vsel %vm827, %v1929, %v1931
      %v1941 = vsel %vm827, %v1931, %v1933
      %v1942 = vsel %vm827, %v1935, %v1937
      %v1943 = vsel %vm827, %v1937, %v1939
      %1950 = vrot.lane.b32.xlu0 %v1914, 124
      %v1951 = vpop.permute.xlu0 %1950
      %1952 = vrot.lane.b32.xlu0 %v1915, 124
      %v1953 = vpop.permute.xlu0 %1952
      %1954 = vrot.lane.b32.xlu0 %v1916, 124
      %v1955 = vpop.permute.xlu0 %1954
      %1956 = vrot.lane.b32.xlu0 %v1917, 124
      %v1957 = vpop.permute.xlu0 %1956
      %1958 = vrot.lane.b32.xlu0 %v1918, 124
      %v1959 = vpop.permute.xlu0 %1958
      %1960 = vrot.lane.b32.xlu0 %v1919, 124
      %v1961 = vpop.permute.xlu0 %1960
      %vm1962 = vcmask 1014784
      %v1963 = vsel %vm1962, %v1951, %v1953
      %v1964 = vsel %vm1962, %v1953, %v1955
      %v1965 = vsel %vm1962, %v1957, %v1959
      %v1966 = vsel %vm1962, %v1959, %v1961
      %1975 = vrot.lane.b32.xlu0 %v1914, 80
      %v1976 = vpop.permute.xlu0 %1975
      %1977 = vrot.lane.b32.xlu0 %v1915, 80
      %v1978 = vpop.permute.xlu0 %1977
      %1979 = vrot.lane.b32.xlu0 %v1916, 80
      %v1980 = vpop.permute.xlu0 %1979
      %1981 = vrot.lane.b32.xlu0 %v1920, 80
      %v1982 = vpop.permute.xlu0 %1981
      %1983 = vrot.lane.b32.xlu0 %v1917, 80
      %v1984 = vpop.permute.xlu0 %1983
      %1985 = vrot.lane.b32.xlu0 %v1918, 80
      %v1986 = vpop.permute.xlu0 %1985
      %1987 = vrot.lane.b32.xlu0 %v1919, 80
      %v1988 = vpop.permute.xlu0 %1987
      %1989 = vrot.lane.b32.xlu0 %v1921, 80
      %v1990 = vpop.permute.xlu0 %1989
      %v1991 = vsel %vm1135, %v1976, %v1978
      %v1992 = vsel %vm1135, %v1978, %v1980
      %v1993 = vsel %vm1135, %v1980, %v1982
      %v1994 = vsel %vm1135, %v1984, %v1986
      %v1995 = vsel %vm1135, %v1986, %v1988
      %v1996 = vsel %vm1135, %v1988, %v1990
      %2003 = vrot.lane.b32.xlu0 %v1914, 78
      %v2004 = vpop.permute.xlu0 %2003
      %2005 = vrot.lane.b32.xlu0 %v1915, 78
      %v2006 = vpop.permute.xlu0 %2005
      %2007 = vrot.lane.b32.xlu0 %v1916, 78
      %v2008 = vpop.permute.xlu0 %2007
      %2009 = vrot.lane.b32.xlu0 %v1920, 78
      %v2010 = vpop.permute.xlu0 %2009
      %2011 = vrot.lane.b32.xlu0 %v1917, 78
      %v2012 = vpop.permute.xlu0 %2011
      %2013 = vrot.lane.b32.xlu0 %v1918, 78
      %v2014 = vpop.permute.xlu0 %2013
      %2015 = vrot.lane.b32.xlu0 %v1919, 78
      %v2016 = vpop.permute.xlu0 %2015
      %2017 = vrot.lane.b32.xlu0 %v1921, 78
      %v2018 = vpop.permute.xlu0 %2017
      %v2019 = vsel %vm1289, %v2004, %v2006
      %v2020 = vsel %vm1289, %v2006, %v2008
      %v2021 = vsel %vm1289, %v2008, %v2010
      %v2022 = vsel %vm1289, %v2012, %v2014
      %v2023 = vsel %vm1289, %v2014, %v2016
      %v2024 = vsel %vm1289, %v2016, %v2018
      %2031 = vrot.lane.b32.xlu0 %v1914, 76
      %v2032 = vpop.permute.xlu0 %2031
      %2033 = vrot.lane.b32.xlu0 %v1915, 76
      %v2034 = vpop.permute.xlu0 %2033
      %2035 = vrot.lane.b32.xlu0 %v1916, 76
      %v2036 = vpop.permute.xlu0 %2035
      %2037 = vrot.lane.b32.xlu0 %v1920, 76
      %v2038 = vpop.permute.xlu0 %2037
      %2039 = vrot.lane.b32.xlu0 %v1917, 76
      %v2040 = vpop.permute.xlu0 %2039
      %2041 = vrot.lane.b32.xlu0 %v1918, 76
      %v2042 = vpop.permute.xlu0 %2041
      %2043 = vrot.lane.b32.xlu0 %v1919, 76
      %v2044 = vpop.permute.xlu0 %2043
      %2045 = vrot.lane.b32.xlu0 %v1921, 76
      %v2046 = vpop.permute.xlu0 %2045
      %vm2047 = vcmask 621568
      %v2048 = vsel %vm2047, %v2032, %v2034
      %v2049 = vsel %vm2047, %v2034, %v2036
      %v2050 = vsel %vm2047, %v2036, %v2038
      %v2051 = vsel %vm2047, %v2040, %v2042
      %v2052 = vsel %vm2047, %v2042, %v2044
      %v2053 = vsel %vm2047, %v2044, %v2046
      %2060 = vrot.lane.b32.xlu0 %v1914, 32
      %v2061 = vpop.permute.xlu0 %2060
      %2062 = vrot.lane.b32.xlu0 %v1915, 32
      %v2063 = vpop.permute.xlu0 %2062
      %2064 = vrot.lane.b32.xlu0 %v1916, 32
      %v2065 = vpop.permute.xlu0 %2064
      %2066 = vrot.lane.b32.xlu0 %v1920, 32
      %v2067 = vpop.permute.xlu0 %2066
      %2068 = vrot.lane.b32.xlu0 %v1917, 32
      %v2069 = vpop.permute.xlu0 %2068
      %2070 = vrot.lane.b32.xlu0 %v1918, 32
      %v2071 = vpop.permute.xlu0 %2070
      %2072 = vrot.lane.b32.xlu0 %v1919, 32
      %v2073 = vpop.permute.xlu0 %2072
      %2074 = vrot.lane.b32.xlu0 %v1921, 32
      %v2075 = vpop.permute.xlu0 %2074
      %vm2076 = vcmask 261120
      %v2077 = vsel %vm2076, %v2061, %v2063
      %v2078 = vsel %vm2076, %v2063, %v2065
      %v2079 = vsel %vm2076, %v2065, %v2067
      %v2080 = vsel %vm2076, %v2069, %v2071
      %v2081 = vsel %vm2076, %v2071, %v2073
      %v2082 = vsel %vm2076, %v2073, %v2075
      %2089 = vrot.lane.b32.xlu0 %v1914, 30
      %v2090 = vpop.permute.xlu0 %2089
      %2091 = vrot.lane.b32.xlu0 %v1915, 30
      %v2092 = vpop.permute.xlu0 %2091
      %2093 = vrot.lane.b32.xlu0 %v1916, 30
      %v2094 = vpop.permute.xlu0 %2093
      %2095 = vrot.lane.b32.xlu0 %v1920, 30
      %v2096 = vpop.permute.xlu0 %2095
      %2097 = vrot.lane.b32.xlu0 %v1917, 30
      %v2098 = vpop.permute.xlu0 %2097
      %2099 = vrot.lane.b32.xlu0 %v1918, 30
      %v2100 = vpop.permute.xlu0 %2099
      %2101 = vrot.lane.b32.xlu0 %v1919, 30
      %v2102 = vpop.permute.xlu0 %2101
      %2103 = vrot.lane.b32.xlu0 %v1921, 30
      %v2104 = vpop.permute.xlu0 %2103
      %vm2105 = vcmask 244736
      %v2106 = vsel %vm2105, %v2090, %v2092
      %v2107 = vsel %vm2105, %v2092, %v2094
      %v2108 = vsel %vm2105, %v2094, %v2096
      %v2109 = vsel %vm2105, %v2098, %v2100
      %v2110 = vsel %vm2105, %v2100, %v2102
      %v2111 = vsel %vm2105, %v2102, %v2104
      %2118 = vrot.lane.b32.xlu0 %v1914, 28
      %v2119 = vpop.permute.xlu0 %2118
      %2120 = vrot.lane.b32.xlu0 %v1915, 28
      %v2121 = vpop.permute.xlu0 %2120
      %2122 = vrot.lane.b32.xlu0 %v1916, 28
      %v2123 = vpop.permute.xlu0 %2122
      %2124 = vrot.lane.b32.xlu0 %v1920, 28
      %v2125 = vpop.permute.xlu0 %2124
      %2126 = vrot.lane.b32.xlu0 %v1917, 28
      %v2127 = vpop.permute.xlu0 %2126
      %2128 = vrot.lane.b32.xlu0 %v1918, 28
      %v2129 = vpop.permute.xlu0 %2128
      %2130 = vrot.lane.b32.xlu0 %v1919, 28
      %v2131 = vpop.permute.xlu0 %2130
      %2132 = vrot.lane.b32.xlu0 %v1921, 28
      %v2133 = vpop.permute.xlu0 %2132
      %vm2134 = vcmask 228352
      %v2135 = vsel %vm2134, %v2119, %v2121
      %v2136 = vsel %vm2134, %v2121, %v2123
      %v2137 = vsel %vm2134, %v2123, %v2125
      %v2138 = vsel %vm2134, %v2127, %v2129
      %v2139 = vsel %vm2134, %v2129, %v2131
      %v2140 = vsel %vm2134, %v2131, %v2133
      %v2147 = vld [vmem:[%s6] sm:$0xff]
      %v2148 = vld [vmem:[%s6 + $0x8] sm:$0xff]
      %v2149 = vpack.c.bf16 %v1917, %v1914
      %v2150 = vpack.c.bf16 %v1918, %v1915
      %v2151 = vpack.c.bf16 %v1919, %v1916
      %v2152 = vpack.c.bf16 %v1942, %v1940
      %v2153 = vpack.c.bf16 %v1943, %v1941
      %v2154 = vpack.c.bf16 %v1939, %v1933
      %v2155 = vpack.c.bf16 %v1965, %v1963
      %v2156 = vpack.c.bf16 %v1966, %v1964
      %v2157 = vpack.c.bf16 %v1961, %v1955
      %v2158 = vpack.c.bf16 %v1994, %v1991
      %v2159 = vpack.c.bf16 %v1995, %v1992
      %v2160 = vpack.c.bf16 %v1996, %v1993
      %v2161 = vpack.c.bf16 %v2022, %v2019
      %v2162 = vpack.c.bf16 %v2023, %v2020
      %v2163 = vpack.c.bf16 %v2024, %v2021
      %v2164 = vpack.c.bf16 %v2051, %v2048
      %v2165 = vpack.c.bf16 %v2052, %v2049
      %v2166 = vpack.c.bf16 %v2053, %v2050
      %v2167 = vpack.c.bf16 %v2080, %v2077
      %v2168 = vpack.c.bf16 %v2081, %v2078
      %v2169 = vpack.c.bf16 %v2082, %v2079
      %v2170 = vpack.c.bf16 %v2109, %v2106
      %v2171 = vpack.c.bf16 %v2110, %v2107
      %v2172 = vpack.c.bf16 %v2111, %v2108
      %v2173 = vpack.c.bf16 %v2138, %v2135
      %v2174 = vpack.c.bf16 %v2139, %v2136
      %v2175 = vpack.c.bf16 %v2140, %v2137
      %v2176 = vld [vmem:[%s7] sm:$0xff]
      %v2177 = vld [vmem:[%s7 + $0x8] sm:$0xff]
      %2179 = vset.pattern.permute.xlu0 0
      %2180 = vperm.xlu0 %2179, %v2176
      %v2181 = vpop.permute.xlu0 %2180
      %2184 = vset.pattern.permute.xlu0 0
      %2185 = vperm.xlu0 %2184, %v2177
      %v2186 = vpop.permute.xlu0 %2185
      %v2190 = vunpack.c.l.b16 %v2147
      %v2191 = vunpack.c.h.b16 %v2147
      %v2192 = vunpack.c.l.b16 %v2148
      %v2193 = vunpack.c.h.b16 %v2148
      %v2194 = vpack.c.b16 %v2192, %v2190
      %v2195 = vpack.c.b16 %v2193, %v2191
      %v2198 = vsel %vm1698, %v2195, 0
      %2200 = vmatprep.subr.bf16.mxu0 %v2150
      %2201 = vmatpush1.bf16.msra.mxu0 %v2149
      %2202 = vmatprep.subr.bf16.mxu0 %v2153
      %2203 = vmatpush1.bf16.msra.mxu0 %v2152
      %2204 = vmatprep.subr.bf16.mxu0 %v2156
      %2205 = vmatpush1.bf16.msra.mxu0 %v2155
      %2206 = vmatprep.subr.bf16.mxu0 %v2159
      %2207 = vmatpush1.bf16.msra.mxu0 %v2158
      %2208 = vmatprep.subr.bf16.mxu0 %v2162
      %2209 = vmatpush1.bf16.msra.mxu0 %v2161
      %2210 = vmatprep.subr.bf16.mxu0 %v2165
      %2211 = vmatpush1.bf16.msra.mxu0 %v2164
      %2212 = vmatprep.subr.bf16.mxu0 %v2168
      %2213 = vmatpush1.bf16.msra.mxu0 %v2167
      %2214 = vmatprep.subr.bf16.mxu0 %v2171
      %2215 = vmatpush1.bf16.msra.mxu0 %v2170
      %2216 = vmatprep.subr.bf16.mxu0 %v2174
      %2217 = vmatpush1.bf16.msra.mxu0 %v2173
      %2218 = vmatprep.subr.bf16.mxu0 0
      %2219 = vmatpush1.bf16.msra.mxu0 0
      %2220 = vmatprep.subr.bf16.mxu0 0
      %2221 = vmatpush1.bf16.msra.mxu0 0
      %2222 = vmatprep.subr.bf16.mxu0 0
      %2223 = vmatpush1.bf16.msra.mxu0 0
      %2224 = vmatprep.subr.bf16.mxu0 0
      %2225 = vmatpush1.bf16.msra.mxu0 0
      %2226 = vmatprep.subr.bf16.mxu0 0
      %2227 = vmatpush1.bf16.msra.mxu0 0
      %2228 = vmatprep.subr.bf16.mxu0 0
      %2229 = vmatpush1.bf16.msra.mxu0 0
      %2230 = vmatprep.subr.bf16.mxu0 0
      %2231 = vmatpush1.bf16.msra.mxu0 0
      %2232 = vmatprep.mubr.bf16.mxu0 %v2198
      %2233 = vmatmul.mubr.bf16.gmra.mrb[0].mxu0 %v2194
      %v2234 = vpop.f32.mrb[0].mxu0
      %v2235 = vadd.f32 %v2181, %v2234
      %v2236 = vpop.f32.mrb[0].mxu0
      %v2237 = vadd.f32 %v2181, %v2236
      %v2238 = vpop.f32.mrb[0].mxu0
      %v2239 = vadd.f32 %v2186, %v2238
      %v2240 = vpop.f32.mrb[0].mxu0
      %v2241 = vadd.f32 %v2186, %v2240
      %2242 = vdwg.mxu0
      %2243 = vmatprep.subr.bf16.mxu0 0
      %2244 = vmatpush1.bf16.msra.mxu0 %v2151
      %2245 = vmatprep.subr.bf16.mxu0 0
      %2246 = vmatpush1.bf16.msra.mxu0 %v2154
      %2247 = vmatprep.subr.bf16.mxu0 0
      %2248 = vmatpush1.bf16.msra.mxu0 %v2157
      %2249 = vmatprep.subr.bf16.mxu0 0
      %2250 = vmatpush1.bf16.msra.mxu0 %v2160
      %2251 = vmatprep.subr.bf16.mxu0 0
      %2252 = vmatpush1.bf16.msra.mxu0 %v2163
      %2253 = vmatprep.subr.bf16.mxu0 0
      %2254 = vmatpush1.bf16.msra.mxu0 %v2166
      %2255 = vmatprep.subr.bf16.mxu0 0
      %2256 = vmatpush1.bf16.msra.mxu0 %v2169
      %2257 = vmatprep.subr.bf16.mxu0 0
      %2258 = vmatpush1.bf16.msra.mxu0 %v2172
      %2259 = vmatprep.subr.bf16.mxu0 0
      %2260 = vmatpush1.bf16.msra.mxu0 %v2175
      %2261 = vmatprep.subr.bf16.mxu0 0
      %2262 = vmatpush1.bf16.msra.mxu0 0
      %2263 = vmatprep.subr.bf16.mxu0 0
      %2264 = vmatpush1.bf16.msra.mxu0 0
      %2265 = vmatprep.subr.bf16.mxu0 0
      %2266 = vmatpush1.bf16.msra.mxu0 0
      %2267 = vmatprep.subr.bf16.mxu0 0
      %2268 = vmatpush1.bf16.msra.mxu0 0
      %2269 = vmatprep.subr.bf16.mxu0 0
      %2270 = vmatpush1.bf16.msra.mxu0 0
      %2271 = vmatprep.subr.bf16.mxu0 0
      %2272 = vmatpush1.bf16.msra.mxu0 0
      %2273 = vmatprep.subr.bf16.mxu0 0
      %2274 = vmatpush1.bf16.msra.mxu0 0
      %2275 = vmatprep.mubr.bf16.mxu0 %v2198
      %2276 = vmatmul.mubr.bf16.gmra.mrb[0].mxu0 %v2194
      %v2277 = vpop.f32.mrb[0].mxu0
      %v2278 = vadd.f32 %v2181, %v2277
      %v2279 = vpop.f32.mrb[0].mxu0
      %v2280 = vpop.f32.mrb[0].mxu0
      %v2281 = vadd.f32 %v2186, %v2280
      %v2282 = vpop.f32.mrb[0].mxu0
      %2283 = vdwg.mxu0
      %v2284 = vmax.f32 %v2235, 0.0
      %v2285 = vmax.f32 %v2237, 0.0
      %v2286 = vmax.f32 %v2278, 0.0
      %v2287 = vmax.f32 %v2239, 0.0
      %v2288 = vmax.f32 %v2241, 0.0
      %v2289 = vmax.f32 %v2281, 0.0
      %2290 = vst [vmem:[#allocation3] sm:$0xff] %v2284
      %2291 = vst [vmem:[#allocation3 + $0x8] sm:$0xff] %v2285
      %vm2292 = vcmask 777216
      %2293 = vst.msk [vmem:[#allocation3 + $0x10] sm:$0xff] %vm2292, %v2286
      %2294 = vst [vmem:[#allocation3 + $0x28] sm:$0xff] %v2287
      %2295 = vst [vmem:[#allocation3 + $0x30] sm:$0xff] %v2288
      %2296 = vst.msk [vmem:[#allocation3 + $0x38] sm:$0xff] %vm2292, %v2289
      %v2297 = vld [vmem:[#allocation3] sm:$0xff]
      %v2298 = vld [vmem:[#allocation3 + $0x8] sm:$0xff]
      %v2299 = vld [vmem:[#allocation3 + $0x28] sm:$0xff]
      %v2300 = vld [vmem:[#allocation3 + $0x30] sm:$0xff]
      %v2301 = vld [vmem:[#allocation3 + $0x10] sm:$0xff]
      %v2302 = vld [vmem:[#allocation3 + $0x38] sm:$0xff]
      %2307 = vrot.lane.b32.xlu0 %v2297, 126
      %v2308 = vpop.permute.xlu0 %2307
      %2309 = vrot.lane.b32.xlu0 %v2298, 126
      %v2310 = vpop.permute.xlu0 %2309
      %2311 = vrot.lane.b32.xlu0 %v2299, 126
      %v2312 = vpop.permute.xlu0 %2311
      %2313 = vrot.lane.b32.xlu0 %v2300, 126
      %v2314 = vpop.permute.xlu0 %2313
      %v2315 = vsel %vm827, %v2308, %v2310
      %v2316 = vsel %vm827, %v2312, %v2314
      %2321 = vrot.lane.b32.xlu0 %v2297, 124
      %v2322 = vpop.permute.xlu0 %2321
      %2323 = vrot.lane.b32.xlu0 %v2298, 124
      %v2324 = vpop.permute.xlu0 %2323
      %2325 = vrot.lane.b32.xlu0 %v2299, 124
      %v2326 = vpop.permute.xlu0 %2325
      %2327 = vrot.lane.b32.xlu0 %v2300, 124
      %v2328 = vpop.permute.xlu0 %2327
      %v2329 = vsel %vm1962, %v2322, %v2324
      %v2330 = vsel %vm1962, %v2326, %v2328
      %2337 = vrot.lane.b32.xlu0 %v2297, 80
      %v2338 = vpop.permute.xlu0 %2337
      %2339 = vrot.lane.b32.xlu0 %v2298, 80
      %v2340 = vpop.permute.xlu0 %2339
      %2341 = vrot.lane.b32.xlu0 %v2301, 80
      %v2342 = vpop.permute.xlu0 %2341
      %2343 = vrot.lane.b32.xlu0 %v2299, 80
      %v2344 = vpop.permute.xlu0 %2343
      %2345 = vrot.lane.b32.xlu0 %v2300, 80
      %v2346 = vpop.permute.xlu0 %2345
      %2347 = vrot.lane.b32.xlu0 %v2302, 80
      %v2348 = vpop.permute.xlu0 %2347
      %v2349 = vsel %vm1135, %v2338, %v2340
      %v2350 = vsel %vm1135, %v2340, %v2342
      %v2351 = vsel %vm1135, %v2344, %v2346
      %v2352 = vsel %vm1135, %v2346, %v2348
      %2357 = vrot.lane.b32.xlu0 %v2297, 78
      %v2358 = vpop.permute.xlu0 %2357
      %2359 = vrot.lane.b32.xlu0 %v2298, 78
      %v2360 = vpop.permute.xlu0 %2359
      %2361 = vrot.lane.b32.xlu0 %v2301, 78
      %v2362 = vpop.permute.xlu0 %2361
      %2363 = vrot.lane.b32.xlu0 %v2299, 78
      %v2364 = vpop.permute.xlu0 %2363
      %2365 = vrot.lane.b32.xlu0 %v2300, 78
      %v2366 = vpop.permute.xlu0 %2365
      %2367 = vrot.lane.b32.xlu0 %v2302, 78
      %v2368 = vpop.permute.xlu0 %2367
      %v2369 = vsel %vm1289, %v2358, %v2360
      %v2370 = vsel %vm1289, %v2360, %v2362
      %v2371 = vsel %vm1289, %v2364, %v2366
      %v2372 = vsel %vm1289, %v2366, %v2368
      %2377 = vrot.lane.b32.xlu0 %v2297, 76
      %v2378 = vpop.permute.xlu0 %2377
      %2379 = vrot.lane.b32.xlu0 %v2298, 76
      %v2380 = vpop.permute.xlu0 %2379
      %2381 = vrot.lane.b32.xlu0 %v2301, 76
      %v2382 = vpop.permute.xlu0 %2381
      %2383 = vrot.lane.b32.xlu0 %v2299, 76
      %v2384 = vpop.permute.xlu0 %2383
      %2385 = vrot.lane.b32.xlu0 %v2300, 76
      %v2386 = vpop.permute.xlu0 %2385
      %2387 = vrot.lane.b32.xlu0 %v2302, 76
      %v2388 = vpop.permute.xlu0 %2387
      %v2389 = vsel %vm2047, %v2378, %v2380
      %v2390 = vsel %vm2047, %v2380, %v2382
      %v2391 = vsel %vm2047, %v2384, %v2386
      %v2392 = vsel %vm2047, %v2386, %v2388
      %2397 = vrot.lane.b32.xlu0 %v2297, 32
      %v2398 = vpop.permute.xlu0 %2397
      %2399 = vrot.lane.b32.xlu0 %v2298, 32
      %v2400 = vpop.permute.xlu0 %2399
      %2401 = vrot.lane.b32.xlu0 %v2301, 32
      %v2402 = vpop.permute.xlu0 %2401
      %2403 = vrot.lane.b32.xlu0 %v2299, 32
      %v2404 = vpop.permute.xlu0 %2403
      %2405 = vrot.lane.b32.xlu0 %v2300, 32
      %v2406 = vpop.permute.xlu0 %2405
      %2407 = vrot.lane.b32.xlu0 %v2302, 32
      %v2408 = vpop.permute.xlu0 %2407
      %v2409 = vsel %vm2076, %v2398, %v2400
      %v2410 = vsel %vm2076, %v2400, %v2402
      %v2411 = vsel %vm2076, %v2404, %v2406
      %v2412 = vsel %vm2076, %v2406, %v2408
      %2417 = vrot.lane.b32.xlu0 %v2297, 30
      %v2418 = vpop.permute.xlu0 %2417
      %2419 = vrot.lane.b32.xlu0 %v2298, 30
      %v2420 = vpop.permute.xlu0 %2419
      %2421 = vrot.lane.b32.xlu0 %v2301, 30
      %v2422 = vpop.permute.xlu0 %2421
      %2423 = vrot.lane.b32.xlu0 %v2299, 30
      %v2424 = vpop.permute.xlu0 %2423
      %2425 = vrot.lane.b32.xlu0 %v2300, 30
      %v2426 = vpop.permute.xlu0 %2425
      %2427 = vrot.lane.b32.xlu0 %v2302, 30
      %v2428 = vpop.permute.xlu0 %2427
      %v2429 = vsel %vm2105, %v2418, %v2420
      %v2430 = vsel %vm2105, %v2420, %v2422
      %v2431 = vsel %vm2105, %v2424, %v2426
      %v2432 = vsel %vm2105, %v2426, %v2428
      %2437 = vrot.lane.b32.xlu0 %v2297, 28
      %v2438 = vpop.permute.xlu0 %2437
      %2439 = vrot.lane.b32.xlu0 %v2298, 28
      %v2440 = vpop.permute.xlu0 %2439
      %2441 = vrot.lane.b32.xlu0 %v2301, 28
      %v2442 = vpop.permute.xlu0 %2441
      %2443 = vrot.lane.b32.xlu0 %v2299, 28
      %v2444 = vpop.permute.xlu0 %2443
      %2445 = vrot.lane.b32.xlu0 %v2300, 28
      %v2446 = vpop.permute.xlu0 %2445
      %2447 = vrot.lane.b32.xlu0 %v2302, 28
      %v2448 = vpop.permute.xlu0 %2447
      %v2449 = vsel %vm2134, %v2438, %v2440
      %v2450 = vsel %vm2134, %v2440, %v2442
      %v2451 = vsel %vm2134, %v2444, %v2446
      %v2452 = vsel %vm2134, %v2446, %v2448
      %v2457 = vld [vmem:[%s8] sm:$0xff]
      %v2458 = vld [vmem:[%s8 + $0x8] sm:$0xff]
      %v2459 = vpack.c.bf16 %v2299, %v2297
      %v2460 = vpack.c.bf16 %v2300, %v2298
      %v2461 = vpack.c.bf16 %v2316, %v2315
      %v2462 = vpack.c.bf16 %v2314, %v2310
      %v2463 = vpack.c.bf16 %v2330, %v2329
      %v2464 = vpack.c.bf16 %v2328, %v2324
      %v2465 = vpack.c.bf16 %v2351, %v2349
      %v2466 = vpack.c.bf16 %v2352, %v2350
      %v2467 = vpack.c.bf16 %v2371, %v2369
      %v2468 = vpack.c.bf16 %v2372, %v2370
      %v2469 = vpack.c.bf16 %v2391, %v2389
      %v2470 = vpack.c.bf16 %v2392, %v2390
      %v2471 = vpack.c.bf16 %v2411, %v2409
      %v2472 = vpack.c.bf16 %v2412, %v2410
      %v2473 = vpack.c.bf16 %v2431, %v2429
      %v2474 = vpack.c.bf16 %v2432, %v2430
      %v2475 = vpack.c.bf16 %v2451, %v2449
      %v2476 = vpack.c.bf16 %v2452, %v2450
      %v2477 = vld [vmem:[%s9] sm:$0xff]
      %v2478 = vld [vmem:[%s9 + $0x8] sm:$0xff]
      %2480 = vset.pattern.permute.xlu0 0
      %2481 = vperm.xlu0 %2480, %v2477
      %v2482 = vpop.permute.xlu0 %2481
      %2485 = vset.pattern.permute.xlu0 0
      %2486 = vperm.xlu0 %2485, %v2478
      %v2487 = vpop.permute.xlu0 %2486
      %v2491 = vunpack.c.l.b16 %v2457
      %v2492 = vunpack.c.h.b16 %v2457
      %v2493 = vunpack.c.l.b16 %v2458
      %v2494 = vunpack.c.h.b16 %v2458
      %v2495 = vpack.c.b16 %v2493, %v2491
      %v2496 = vpack.c.b16 %v2494, %v2492
      %v2499 = vsel %vm1698, %v2496, 0
      %2501 = vmatprep.subr.bf16.mxu0 %v2460
      %2502 = vmatpush1.bf16.msra.mxu0 %v2459
      %2503 = vmatprep.subr.bf16.mxu0 %v2462
      %2504 = vmatpush1.bf16.msra.mxu0 %v2461
      %2505 = vmatprep.subr.bf16.mxu0 %v2464
      %2506 = vmatpush1.bf16.msra.mxu0 %v2463
      %2507 = vmatprep.subr.bf16.mxu0 %v2466
      %2508 = vmatpush1.bf16.msra.mxu0 %v2465
      %2509 = vmatprep.subr.bf16.mxu0 %v2468
      %2510 = vmatpush1.bf16.msra.mxu0 %v2467
      %2511 = vmatprep.subr.bf16.mxu0 %v2470
      %2512 = vmatpush1.bf16.msra.mxu0 %v2469
      %2513 = vmatprep.subr.bf16.mxu0 %v2472
      %2514 = vmatpush1.bf16.msra.mxu0 %v2471
      %2515 = vmatprep.subr.bf16.mxu0 %v2474
      %2516 = vmatpush1.bf16.msra.mxu0 %v2473
      %2517 = vmatprep.subr.bf16.mxu0 %v2476
      %2518 = vmatpush1.bf16.msra.mxu0 %v2475
      %2519 = vmatprep.subr.bf16.mxu0 0
      %2520 = vmatpush1.bf16.msra.mxu0 0
      %2521 = vmatprep.subr.bf16.mxu0 0
      %2522 = vmatpush1.bf16.msra.mxu0 0
      %2523 = vmatprep.subr.bf16.mxu0 0
      %2524 = vmatpush1.bf16.msra.mxu0 0
      %2525 = vmatprep.subr.bf16.mxu0 0
      %2526 = vmatpush1.bf16.msra.mxu0 0
      %2527 = vmatprep.subr.bf16.mxu0 0
      %2528 = vmatpush1.bf16.msra.mxu0 0
      %2529 = vmatprep.subr.bf16.mxu0 0
      %2530 = vmatpush1.bf16.msra.mxu0 0
      %2531 = vmatprep.subr.bf16.mxu0 0
      %2532 = vmatpush1.bf16.msra.mxu0 0
      %2533 = vmatprep.mubr.bf16.mxu0 %v2499
      %2534 = vmatmul.mubr.bf16.gmra.mrb[0].mxu0 %v2495
      %v2535 = vpop.f32.mrb[0].mxu0
      %v2536 = vadd.f32 %v2482, %v2535
      %v2537 = vpop.f32.mrb[0].mxu0
      %v2538 = vadd.f32 %v2482, %v2537
      %v2539 = vpop.f32.mrb[0].mxu0
      %v2540 = vadd.f32 %v2487, %v2539
      %v2541 = vpop.f32.mrb[0].mxu0
      %v2542 = vadd.f32 %v2487, %v2541
      %2543 = vdwg.mxu0
      %v2544 = vmax.f32 %v2536, 0.0
      %v2545 = vmax.f32 %v2538, 0.0
      %v2546 = vmax.f32 %v2540, 0.0
      %v2547 = vmax.f32 %v2542, 0.0
      %2548 = vst [vmem:[#allocation2] sm:$0xff] %v2544
      %vm2549 = vcmask 1006592
      %2550 = vst.msk [vmem:[#allocation2 + $0x8] sm:$0xff] %vm2549, %v2545
      %2551 = vst [vmem:[#allocation2 + $0x28] sm:$0xff] %v2546
      %2552 = vst.msk [vmem:[#allocation2 + $0x30] sm:$0xff] %vm2549, %v2547
      %v2553 = vld [vmem:[#allocation2] sm:$0xff]
      %v2554 = vld [vmem:[#allocation2 + $0x8] sm:$0xff]
      %v2555 = vld [vmem:[#allocation2 + $0x28] sm:$0xff]
      %v2556 = vld [vmem:[#allocation2 + $0x30] sm:$0xff]
      %2561 = vrot.lane.b32.xlu0 %v2553, 126
      %v2562 = vpop.permute.xlu0 %2561
      %2563 = vrot.lane.b32.xlu0 %v2554, 126
      %v2564 = vpop.permute.xlu0 %2563
      %2565 = vrot.lane.b32.xlu0 %v2555, 126
      %v2566 = vpop.permute.xlu0 %2565
      %2567 = vrot.lane.b32.xlu0 %v2556, 126
      %v2568 = vpop.permute.xlu0 %2567
      %v2569 = vsel %vm827, %v2562, %v2564
      %v2570 = vsel %vm827, %v2566, %v2568
      %2575 = vrot.lane.b32.xlu0 %v2553, 124
      %v2576 = vpop.permute.xlu0 %2575
      %2577 = vrot.lane.b32.xlu0 %v2554, 124
      %v2578 = vpop.permute.xlu0 %2577
      %2579 = vrot.lane.b32.xlu0 %v2555, 124
      %v2580 = vpop.permute.xlu0 %2579
      %2581 = vrot.lane.b32.xlu0 %v2556, 124
      %v2582 = vpop.permute.xlu0 %2581
      %v2583 = vsel %vm1962, %v2576, %v2578
      %v2584 = vsel %vm1962, %v2580, %v2582
      %2589 = vrot.lane.b32.xlu0 %v2553, 80
      %v2590 = vpop.permute.xlu0 %2589
      %2591 = vrot.lane.b32.xlu0 %v2554, 80
      %v2592 = vpop.permute.xlu0 %2591
      %2593 = vrot.lane.b32.xlu0 %v2555, 80
      %v2594 = vpop.permute.xlu0 %2593
      %2595 = vrot.lane.b32.xlu0 %v2556, 80
      %v2596 = vpop.permute.xlu0 %2595
      %v2597 = vsel %vm1135, %v2590, %v2592
      %v2598 = vsel %vm1135, %v2594, %v2596
      %2603 = vrot.lane.b32.xlu0 %v2553, 78
      %v2604 = vpop.permute.xlu0 %2603
      %2605 = vrot.lane.b32.xlu0 %v2554, 78
      %v2606 = vpop.permute.xlu0 %2605
      %2607 = vrot.lane.b32.xlu0 %v2555, 78
      %v2608 = vpop.permute.xlu0 %2607
      %2609 = vrot.lane.b32.xlu0 %v2556, 78
      %v2610 = vpop.permute.xlu0 %2609
      %v2611 = vsel %vm1289, %v2604, %v2606
      %v2612 = vsel %vm1289, %v2608, %v2610
      %2617 = vrot.lane.b32.xlu0 %v2553, 76
      %v2618 = vpop.permute.xlu0 %2617
      %2619 = vrot.lane.b32.xlu0 %v2554, 76
      %v2620 = vpop.permute.xlu0 %2619
      %2621 = vrot.lane.b32.xlu0 %v2555, 76
      %v2622 = vpop.permute.xlu0 %2621
      %2623 = vrot.lane.b32.xlu0 %v2556, 76
      %v2624 = vpop.permute.xlu0 %2623
      %v2625 = vsel %vm2047, %v2618, %v2620
      %v2626 = vsel %vm2047, %v2622, %v2624
      %2631 = vrot.lane.b32.xlu0 %v2553, 32
      %v2632 = vpop.permute.xlu0 %2631
      %2633 = vrot.lane.b32.xlu0 %v2554, 32
      %v2634 = vpop.permute.xlu0 %2633
      %2635 = vrot.lane.b32.xlu0 %v2555, 32
      %v2636 = vpop.permute.xlu0 %2635
      %2637 = vrot.lane.b32.xlu0 %v2556, 32
      %v2638 = vpop.permute.xlu0 %2637
      %v2639 = vsel %vm2076, %v2632, %v2634
      %v2640 = vsel %vm2076, %v2636, %v2638
      %2645 = vrot.lane.b32.xlu0 %v2553, 30
      %v2646 = vpop.permute.xlu0 %2645
      %2647 = vrot.lane.b32.xlu0 %v2554, 30
      %v2648 = vpop.permute.xlu0 %2647
      %2649 = vrot.lane.b32.xlu0 %v2555, 30
      %v2650 = vpop.permute.xlu0 %2649
      %2651 = vrot.lane.b32.xlu0 %v2556, 30
      %v2652 = vpop.permute.xlu0 %2651
      %v2653 = vsel %vm2105, %v2646, %v2648
      %v2654 = vsel %vm2105, %v2650, %v2652
      %2659 = vrot.lane.b32.xlu0 %v2553, 28
      %v2660 = vpop.permute.xlu0 %2659
      %2661 = vrot.lane.b32.xlu0 %v2554, 28
      %v2662 = vpop.permute.xlu0 %2661
      %2663 = vrot.lane.b32.xlu0 %v2555, 28
      %v2664 = vpop.permute.xlu0 %2663
      %2665 = vrot.lane.b32.xlu0 %v2556, 28
      %v2666 = vpop.permute.xlu0 %2665
      %v2667 = vsel %vm2134, %v2660, %v2662
      %v2668 = vsel %vm2134, %v2664, %v2666
      %v2673 = vld [vmem:[%s10] sm:$0xff]
      %v2674 = vld [vmem:[%s10 + $0x8] sm:$0xff]
      %v2675 = vpack.c.bf16 %v2555, %v2553
      %v2676 = vpack.c.bf16 %v2556, %v2554
      %v2677 = vpack.c.bf16 %v2570, %v2569
      %v2678 = vpack.c.bf16 %v2568, %v2564
      %v2679 = vpack.c.bf16 %v2584, %v2583
      %v2680 = vpack.c.bf16 %v2582, %v2578
      %v2681 = vpack.c.bf16 %v2598, %v2597
      %v2682 = vpack.c.bf16 %v2596, %v2592
      %v2683 = vpack.c.bf16 %v2612, %v2611
      %v2684 = vpack.c.bf16 %v2610, %v2606
      %v2685 = vpack.c.bf16 %v2626, %v2625
      %v2686 = vpack.c.bf16 %v2624, %v2620
      %v2687 = vpack.c.bf16 %v2640, %v2639
      %v2688 = vpack.c.bf16 %v2638, %v2634
      %v2689 = vpack.c.bf16 %v2654, %v2653
      %v2690 = vpack.c.bf16 %v2652, %v2648
      %v2691 = vpack.c.bf16 %v2668, %v2667
      %v2692 = vpack.c.bf16 %v2666, %v2662
      %v2693 = vld [vmem:[%s11] sm:$0xff]
      %v2694 = vld [vmem:[%s11 + $0x8] sm:$0xff]
      %2696 = vset.pattern.permute.xlu0 0
      %2697 = vperm.xlu0 %2696, %v2693
      %v2698 = vpop.permute.xlu0 %2697
      %2701 = vset.pattern.permute.xlu0 0
      %2702 = vperm.xlu0 %2701, %v2694
      %v2703 = vpop.permute.xlu0 %2702
      %v2707 = vunpack.c.l.b16 %v2673
      %v2708 = vunpack.c.h.b16 %v2673
      %v2709 = vunpack.c.l.b16 %v2674
      %v2710 = vunpack.c.h.b16 %v2674
      %v2711 = vpack.c.b16 %v2709, %v2707
      %v2712 = vpack.c.b16 %v2710, %v2708
      %v2715 = vsel %vm1698, %v2712, 0
      %2717 = vmatprep.subr.bf16.mxu0 %v2676
      %2718 = vmatpush1.bf16.msra.mxu0 %v2675
      %2719 = vmatprep.subr.bf16.mxu0 %v2678
      %2720 = vmatpush1.bf16.msra.mxu0 %v2677
      %2721 = vmatprep.subr.bf16.mxu0 %v2680
      %2722 = vmatpush1.bf16.msra.mxu0 %v2679
      %2723 = vmatprep.subr.bf16.mxu0 %v2682
      %2724 = vmatpush1.bf16.msra.mxu0 %v2681
      %2725 = vmatprep.subr.bf16.mxu0 %v2684
      %2726 = vmatpush1.bf16.msra.mxu0 %v2683
      %2727 = vmatprep.subr.bf16.mxu0 %v2686
      %2728 = vmatpush1.bf16.msra.mxu0 %v2685
      %2729 = vmatprep.subr.bf16.mxu0 %v2688
      %2730 = vmatpush1.bf16.msra.mxu0 %v2687
      %2731 = vmatprep.subr.bf16.mxu0 %v2690
      %2732 = vmatpush1.bf16.msra.mxu0 %v2689
      %2733 = vmatprep.subr.bf16.mxu0 %v2692
      %2734 = vmatpush1.bf16.msra.mxu0 %v2691
      %2735 = vmatprep.subr.bf16.mxu0 0
      %2736 = vmatpush1.bf16.msra.mxu0 0
      %2737 = vmatprep.subr.bf16.mxu0 0
      %2738 = vmatpush1.bf16.msra.mxu0 0
      %2739 = vmatprep.subr.bf16.mxu0 0
      %2740 = vmatpush1.bf16.msra.mxu0 0
      %2741 = vmatprep.subr.bf16.mxu0 0
      %2742 = vmatpush1.bf16.msra.mxu0 0
      %2743 = vmatprep.subr.bf16.mxu0 0
      %2744 = vmatpush1.bf16.msra.mxu0 0
      %2745 = vmatprep.subr.bf16.mxu0 0
      %2746 = vmatpush1.bf16.msra.mxu0 0
      %2747 = vmatprep.subr.bf16.mxu0 0
      %2748 = vmatpush1.bf16.msra.mxu0 0
      %2749 = vmatprep.mubr.bf16.mxu0 %v2715
      %2750 = vmatmul.mubr.bf16.gmra.mrb[0].mxu0 %v2711
      %v2751 = vpop.f32.mrb[0].mxu0
      %v2752 = vadd.f32 %v2698, %v2751
      %v2753 = vpop.f32.mrb[0].mxu0
      %v2754 = vadd.f32 %v2698, %v2753
      %v2755 = vpop.f32.mrb[0].mxu0
      %v2756 = vadd.f32 %v2703, %v2755
      %v2757 = vpop.f32.mrb[0].mxu0
      %v2758 = vadd.f32 %v2703, %v2757
      %2759 = vdwg.mxu0
      %v2760 = vmax.f32 %v2752, 0.0
      %v2761 = vmax.f32 %v2754, 0.0
      %v2762 = vmax.f32 %v2756, 0.0
      %v2763 = vmax.f32 %v2758, 0.0
      %2764 = vst [vmem:[#allocation3] sm:$0xff] %v2760
      %vm2765 = vcmask 187392
      %2766 = vst.msk [vmem:[#allocation3 + $0x8] sm:$0xff] %vm2765, %v2761
      %2767 = vst [vmem:[#allocation3 + $0x28] sm:$0xff] %v2762
      %2768 = vst.msk [vmem:[#allocation3 + $0x30] sm:$0xff] %vm2765, %v2763
      %v2769 = vld [vmem:[#allocation3] sm:$0xff]
      %v2770 = vld [vmem:[#allocation3 + $0x28] sm:$0xff]
      %v2771 = vld [vmem:[#allocation3 + $0x8] sm:$0xff]
      %v2772 = vld [vmem:[#allocation3 + $0x30] sm:$0xff]
      %2775 = vrot.lane.b32.xlu0 %v2769, 126
      %v2776 = vpop.permute.xlu0 %2775
      %2777 = vrot.lane.b32.xlu0 %v2770, 126
      %v2778 = vpop.permute.xlu0 %2777
      %2781 = vrot.lane.b32.xlu0 %v2769, 124
      %v2782 = vpop.permute.xlu0 %2781
      %2783 = vrot.lane.b32.xlu0 %v2770, 124
      %v2784 = vpop.permute.xlu0 %2783
      %2787 = vrot.lane.b32.xlu0 %v2769, 80
      %v2788 = vpop.permute.xlu0 %2787
      %2789 = vrot.lane.b32.xlu0 %v2770, 80
      %v2790 = vpop.permute.xlu0 %2789
      %2793 = vrot.lane.b32.xlu0 %v2769, 78
      %v2794 = vpop.permute.xlu0 %2793
      %2795 = vrot.lane.b32.xlu0 %v2770, 78
      %v2796 = vpop.permute.xlu0 %2795
      %2799 = vrot.lane.b32.xlu0 %v2769, 76
      %v2800 = vpop.permute.xlu0 %2799
      %2801 = vrot.lane.b32.xlu0 %v2770, 76
      %v2802 = vpop.permute.xlu0 %2801
      %2807 = vrot.lane.b32.xlu0 %v2769, 32
      %v2808 = vpop.permute.xlu0 %2807
      %2809 = vrot.lane.b32.xlu0 %v2771, 32
      %v2810 = vpop.permute.xlu0 %2809
      %2811 = vrot.lane.b32.xlu0 %v2770, 32
      %v2812 = vpop.permute.xlu0 %2811
      %2813 = vrot.lane.b32.xlu0 %v2772, 32
      %v2814 = vpop.permute.xlu0 %2813
      %v2815 = vsel %vm2076, %v2808, %v2810
      %v2816 = vsel %vm2076, %v2812, %v2814
      %2819 = vrot.lane.b32.xlu0 %v2769, 30
      %v2820 = vpop.permute.xlu0 %2819
      %2821 = vrot.lane.b32.xlu0 %v2771, 30
      %v2822 = vpop.permute.xlu0 %2821
      %2823 = vrot.lane.b32.xlu0 %v2770, 30
      %v2824 = vpop.permute.xlu0 %2823
      %2825 = vrot.lane.b32.xlu0 %v2772, 30
      %v2826 = vpop.permute.xlu0 %2825
      %v2827 = vsel %vm2105, %v2820, %v2822
      %v2828 = vsel %vm2105, %v2824, %v2826
      %2831 = vrot.lane.b32.xlu0 %v2769, 28
      %v2832 = vpop.permute.xlu0 %2831
      %2833 = vrot.lane.b32.xlu0 %v2771, 28
      %v2834 = vpop.permute.xlu0 %2833
      %2835 = vrot.lane.b32.xlu0 %v2770, 28
      %v2836 = vpop.permute.xlu0 %2835
      %2837 = vrot.lane.b32.xlu0 %v2772, 28
      %v2838 = vpop.permute.xlu0 %2837
      %v2839 = vsel %vm2134, %v2832, %v2834
      %v2840 = vsel %vm2134, %v2836, %v2838
      %v2843 = vld [vmem:[%s12] sm:$0xff]
      %v2844 = vld [vmem:[%s12 + $0x8] sm:$0xff]
      %v2845 = vpack.c.bf16 %v2770, %v2769
      %v2846 = vpack.c.bf16 %v2778, %v2776
      %v2847 = vpack.c.bf16 %v2784, %v2782
      %v2848 = vpack.c.bf16 %v2790, %v2788
      %v2849 = vpack.c.bf16 %v2796, %v2794
      %v2850 = vpack.c.bf16 %v2802, %v2800
      %v2851 = vpack.c.bf16 %v2816, %v2815
      %v2852 = vpack.c.bf16 %v2828, %v2827
      %v2853 = vpack.c.bf16 %v2840, %v2839
      %v2856 = vunpack.c.l.b16 %v2843
      %v2857 = vunpack.c.h.b16 %v2843
      %v2858 = vunpack.c.l.b16 %v2844
      %v2859 = vunpack.c.h.b16 %v2844
      %v2860 = vpack.c.b16 %v2858, %v2856
      %v2861 = vpack.c.b16 %v2859, %v2857
      %v2864 = vsel %vm1698, %v2861, 0
      %2866 = vmatprep.subr.bf16.mxu0 0
      %2867 = vmatpush1.bf16.msra.mxu0 %v2845
      %2868 = vmatprep.subr.bf16.mxu0 0
      %2869 = vmatpush1.bf16.msra.mxu0 %v2846
      %2870 = vmatprep.subr.bf16.mxu0 0
      %2871 = vmatpush1.bf16.msra.mxu0 %v2847
      %2872 = vmatprep.subr.bf16.mxu0 0
      %2873 = vmatpush1.bf16.msra.mxu0 %v2848
      %2874 = vmatprep.subr.bf16.mxu0 0
      %2875 = vmatpush1.bf16.msra.mxu0 %v2849
      %2876 = vmatprep.subr.bf16.mxu0 0
      %2877 = vmatpush1.bf16.msra.mxu0 %v2850
      %2878 = vmatprep.subr.bf16.mxu0 0
      %2879 = vmatpush1.bf16.msra.mxu0 %v2851
      %2880 = vmatprep.subr.bf16.mxu0 0
      %2881 = vmatpush1.bf16.msra.mxu0 %v2852
      %2882 = vmatprep.subr.bf16.mxu0 0
      %2883 = vmatpush1.bf16.msra.mxu0 %v2853
      %2884 = vmatprep.subr.bf16.mxu0 0
      %2885 = vmatpush1.bf16.msra.mxu0 0
      %2886 = vmatprep.subr.bf16.mxu0 0
      %2887 = vmatpush1.bf16.msra.mxu0 0
      %2888 = vmatprep.subr.bf16.mxu0 0
      %2889 = vmatpush1.bf16.msra.mxu0 0
      %2890 = vmatprep.subr.bf16.mxu0 0
      %2891 = vmatpush1.bf16.msra.mxu0 0
      %2892 = vmatprep.subr.bf16.mxu0 0
      %2893 = vmatpush1.bf16.msra.mxu0 0
      %2894 = vmatprep.subr.bf16.mxu0 0
      %2895 = vmatpush1.bf16.msra.mxu0 0
      %2896 = vmatprep.subr.bf16.mxu0 0
      %2897 = vmatpush1.bf16.msra.mxu0 0
      %2898 = vmatprep.mubr.bf16.mxu0 %v2864
      %2899 = vmatmul.mubr.bf16.gmra.mrb[0].mxu0 %v2860
      %v2900 = vpop.f32.mrb[0].mxu0
      %v2901 = vadd.f32 0.0, %v2900
      %v2902 = vpop.f32.mrb[0].mxu0
      %v2903 = vpop.f32.mrb[0].mxu0
      %v2904 = vadd.f32 0.0, %v2903
      %v2905 = vpop.f32.mrb[0].mxu0
      %2906 = vdwg.mxu0
      %vm2907 = vcmask 416768
      %2908 = vst.msk [vmem:[#allocation2] sm:$0xff] %vm2907, %v2901
      %2909 = vst.msk [vmem:[#allocation2 + $0x28] sm:$0xff] %vm2907, %v2904
      %v2910 = vld [vmem:[#allocation2] sm:$0xff]
      %v2911 = vld [vmem:[#allocation2 + $0x28] sm:$0xff]
      %v2912 = vadd.f32 %v2910, 0.0
      %v2913 = vadd.f32 %v2911, 0.0
      %2916 = vrot.lane.b32.xlu0 %v2910, 126
      %v2917 = vpop.permute.xlu0 %2916
      %2918 = vrot.lane.b32.xlu0 %v2911, 126
      %v2919 = vpop.permute.xlu0 %2918
      %v2922 = vadd.f32 %v2912, %v2917
      %v2923 = vadd.f32 %v2913, %v2919
      %2924 = vrot.lane.b32.xlu0 %v2910, 80
      %v2925 = vpop.permute.xlu0 %2924
      %2926 = vrot.lane.b32.xlu0 %v2911, 80
      %v2927 = vpop.permute.xlu0 %2926
      %v2930 = vadd.f32 %v2922, %v2925
      %v2931 = vadd.f32 %v2923, %v2927
      %2932 = vrot.lane.b32.xlu0 %v2910, 78
      %v2933 = vpop.permute.xlu0 %2932
      %2934 = vrot.lane.b32.xlu0 %v2911, 78
      %v2935 = vpop.permute.xlu0 %2934
      %v2938 = vadd.f32 %v2930, %v2933
      %v2939 = vadd.f32 %v2931, %v2935
      %v2940 = vmul.f32 %v2938, 0.25
      %v2941 = vmul.f32 %v2939, 0.25
      %v2942 = vld [vmem:[%s637] sm:$0xf]
      %v2943 = vld [vmem:[%s13] sm:$0xff]
      %v2944 = vld [vmem:[%s13 + $0x8] sm:$0xff]
      %v2945 = vld [vmem:[%s13 + $0x10] sm:$0xff]
      %v2946 = vld [vmem:[%s13 + $0x18] sm:$0xff]
      %v2947 = vld [vmem:[%s13 + $0x20] sm:$0xff]
      %v2948 = vld [vmem:[%s13 + $0x28] sm:$0xff]
      %v2949 = vld [vmem:[%s13 + $0x30] sm:$0xff]
      %v2950 = vld [vmem:[%s13 + $0x38] sm:$0xff]
      %v2951 = vld [vmem:[%s13 + $0x40] sm:$0xff]
      %v2952 = vld [vmem:[%s13 + $0x48] sm:$0xff]
      %v2953 = vld [vmem:[%s13 + $0x50] sm:$0xff]
      %v2954 = vld [vmem:[%s13 + $0x58] sm:$0xff]
      %v2955 = vld [vmem:[%s13 + $0x60] sm:$0xff]
      %v2956 = vld [vmem:[%s13 + $0x68] sm:$0xff]
      %v2957 = vld [vmem:[%s13 + $0x70] sm:$0xff]
      %v2958 = vld [vmem:[%s13 + $0x78] sm:$0xff]
      %v2959 = vld [vmem:[%s13 + $0x80] sm:$0xff]
      %v2960 = vld [vmem:[%s13 + $0x88] sm:$0xff]
      %v2961 = vld [vmem:[%s13 + $0x90] sm:$0xff]
      %v2962 = vld [vmem:[%s13 + $0x98] sm:$0xff]
      %v2963 = vld [vmem:[%s13 + $0xa0] sm:$0xff]
      %v2964 = vld [vmem:[%s13 + $0xa8] sm:$0xff]
      %v2965 = vld [vmem:[%s13 + $0xb0] sm:$0xff]
      %v2966 = vld [vmem:[%s13 + $0xb8] sm:$0xff]
      %v2967 = vld [vmem:[%s13 + $0xc0] sm:$0xff]
      %v2968 = vld [vmem:[%s13 + $0xc8] sm:$0xff]
      %v2969 = vld [vmem:[%s13 + $0xd0] sm:$0xff]
      %v2970 = vld [vmem:[%s13 + $0xd8] sm:$0xff]
      %v2971 = vld [vmem:[%s13 + $0xe0] sm:$0xff]
      %v2972 = vld [vmem:[%s13 + $0xe8] sm:$0xff]
      %v2973 = vld [vmem:[%s13 + $0xf0] sm:$0xff]
      %v2974 = vld [vmem:[%s13 + $0xf8] sm:$0xff]
      %v2975 = vld [vmem:[%s13 + $0x100] sm:$0xff]
      %v2976 = vld [vmem:[%s13 + $0x108] sm:$0xff]
      %v2977 = vld [vmem:[%s13 + $0x110] sm:$0xff]
      %v2978 = vld [vmem:[%s13 + $0x118] sm:$0xff]
      %v2979 = vld [vmem:[%s13 + $0x120] sm:$0xff]
      %v2980 = vld [vmem:[%s13 + $0x128] sm:$0xff]
      %v2981 = vld [vmem:[%s13 + $0x130] sm:$0xff]
      %v2982 = vld [vmem:[%s13 + $0x138] sm:$0xff]
      %v2983 = vld [vmem:[%s13 + $0x140] sm:$0xff]
      %v2984 = vld [vmem:[%s13 + $0x148] sm:$0xff]
      %v2985 = vld [vmem:[%s13 + $0x150] sm:$0xff]
      %v2986 = vld [vmem:[%s13 + $0x158] sm:$0xff]
      %v2987 = vld [vmem:[%s13 + $0x160] sm:$0xff]
      %v2988 = vld [vmem:[%s13 + $0x168] sm:$0xff]
      %v2989 = vld [vmem:[%s13 + $0x170] sm:$0xff]
      %v2990 = vld [vmem:[%s13 + $0x178] sm:$0xff]
      %v2991 = vld [vmem:[%s13 + $0x180] sm:$0xff]
      %v2992 = vld [vmem:[%s13 + $0x188] sm:$0xff]
      %v2993 = vld [vmem:[%s14] sm:$0xff]
      %v2994 = vld [vmem:[%s14 + $0x8] sm:$0xff]
      %v2995 = vld [vmem:[%s14 + $0x10] sm:$0xff]
      %v2996 = vld [vmem:[%s14 + $0x18] sm:$0xff]
      %v2997 = vld [vmem:[%s14 + $0x20] sm:$0xff]
      %v2998 = vld [vmem:[%s14 + $0x28] sm:$0xff]
      %v2999 = vld [vmem:[%s14 + $0x30] sm:$0xff]
      %v3000 = vld [vmem:[%s14 + $0x38] sm:$0xff]
      %v3001 = vld [vmem:[%s14 + $0x40] sm:$0xff]
      %v3002 = vld [vmem:[%s14 + $0x48] sm:$0xff]
      %v3003 = vld [vmem:[%s14 + $0x50] sm:$0xff]
      %v3004 = vld [vmem:[%s14 + $0x58] sm:$0xff]
      %v3005 = vld [vmem:[%s14 + $0x60] sm:$0xff]
      %v3006 = vld [vmem:[%s14 + $0x68] sm:$0xff]
      %v3007 = vld [vmem:[%s14 + $0x70] sm:$0xff]
      %v3008 = vld [vmem:[%s14 + $0x78] sm:$0xff]
      %v3009 = vld [vmem:[%s14 + $0x80] sm:$0xff]
      %v3010 = vld [vmem:[%s14 + $0x88] sm:$0xff]
      %v3011 = vld [vmem:[%s14 + $0x90] sm:$0xff]
      %v3012 = vld [vmem:[%s14 + $0x98] sm:$0xff]
      %v3013 = vld [vmem:[%s14 + $0xa0] sm:$0xff]
      %v3014 = vld [vmem:[%s14 + $0xa8] sm:$0xff]
      %v3015 = vld [vmem:[%s14 + $0xb0] sm:$0xff]
      %v3016 = vld [vmem:[%s14 + $0xb8] sm:$0xff]
      %v3017 = vld [vmem:[%s14 + $0xc0] sm:$0xff]
      %v3018 = vld [vmem:[%s14 + $0xc8] sm:$0xff]
      %v3019 = vld [vmem:[%s14 + $0xd0] sm:$0xff]
      %v3020 = vld [vmem:[%s14 + $0xd8] sm:$0xff]
      %v3021 = vld [vmem:[%s14 + $0xe0] sm:$0xff]
      %v3022 = vld [vmem:[%s14 + $0xe8] sm:$0xff]
      %v3023 = vld [vmem:[%s14 + $0xf0] sm:$0xff]
      %v3024 = vld [vmem:[%s14 + $0xf8] sm:$0xff]
      %v3025 = vld [vmem:[%s14 + $0x100] sm:$0xff]
      %v3026 = vld [vmem:[%s14 + $0x108] sm:$0xff]
      %v3027 = vld [vmem:[%s14 + $0x110] sm:$0xff]
      %v3028 = vld [vmem:[%s14 + $0x118] sm:$0xff]
      %v3029 = vld [vmem:[%s14 + $0x120] sm:$0xff]
      %v3030 = vld [vmem:[%s14 + $0x128] sm:$0xff]
      %v3031 = vld [vmem:[%s14 + $0x130] sm:$0xff]
      %v3032 = vld [vmem:[%s14 + $0x138] sm:$0xff]
      %v3033 = vld [vmem:[%s14 + $0x140] sm:$0xff]
      %v3034 = vld [vmem:[%s14 + $0x148] sm:$0xff]
      %v3035 = vld [vmem:[%s14 + $0x150] sm:$0xff]
      %v3036 = vld [vmem:[%s14 + $0x158] sm:$0xff]
      %v3037 = vld [vmem:[%s14 + $0x160] sm:$0xff]
      %v3038 = vld [vmem:[%s14 + $0x168] sm:$0xff]
      %v3039 = vld [vmem:[%s14 + $0x170] sm:$0xff]
      %v3040 = vld [vmem:[%s14 + $0x178] sm:$0xff]
      %v3041 = vld [vmem:[%s14 + $0x180] sm:$0xff]
      %v3042 = vld [vmem:[%s14 + $0x188] sm:$0xff]
      %vm3043 = vcmask 31744
      %v3045 = vsel %vm3043, %v2993, 0
      %v3048 = vsel %vm3043, %v2994, 0
      %v3051 = vsel %vm3043, %v2995, 0
      %v3054 = vsel %vm3043, %v2996, 0
      %v3057 = vsel %vm3043, %v2997, 0
      %v3060 = vsel %vm3043, %v2998, 0
      %v3063 = vsel %vm3043, %v2999, 0
      %v3066 = vsel %vm3043, %v3000, 0
      %v3069 = vsel %vm3043, %v3001, 0
      %v3072 = vsel %vm3043, %v3002, 0
      %v3075 = vsel %vm3043, %v3003, 0
      %v3078 = vsel %vm3043, %v3004, 0
      %v3081 = vsel %vm3043, %v3005, 0
      %v3084 = vsel %vm3043, %v3006, 0
      %v3087 = vsel %vm3043, %v3007, 0
      %v3090 = vsel %vm3043, %v3008, 0
      %v3093 = vsel %vm3043, %v3009, 0
      %v3096 = vsel %vm3043, %v3010, 0
      %v3099 = vsel %vm3043, %v3011, 0
      %v3102 = vsel %vm3043, %v3012, 0
      %v3105 = vsel %vm3043, %v3013, 0
      %v3108 = vsel %vm3043, %v3014, 0
      %v3111 = vsel %vm3043, %v3015, 0
      %v3114 = vsel %vm3043, %v3016, 0
      %v3117 = vsel %vm3043, %v3017, 0
      %v3120 = vsel %vm3043, %v3018, 0
      %v3123 = vsel %vm3043, %v3019, 0
      %v3126 = vsel %vm3043, %v3020, 0
      %v3129 = vsel %vm3043, %v3021, 0
      %v3132 = vsel %vm3043, %v3022, 0
      %v3135 = vsel %vm3043, %v3023, 0
      %v3138 = vsel %vm3043, %v3024, 0
      %v3141 = vsel %vm3043, %v3025, 0
      %v3144 = vsel %vm3043, %v3026, 0
      %v3147 = vsel %vm3043, %v3027, 0
      %v3150 = vsel %vm3043, %v3028, 0
      %v3153 = vsel %vm3043, %v3029, 0
      %v3156 = vsel %vm3043, %v3030, 0
      %v3159 = vsel %vm3043, %v3031, 0
      %v3162 = vsel %vm3043, %v3032, 0
      %v3165 = vsel %vm3043, %v3033, 0
      %v3168 = vsel %vm3043, %v3034, 0
      %v3171 = vsel %vm3043, %v3035, 0
      %v3174 = vsel %vm3043, %v3036, 0
      %v3177 = vsel %vm3043, %v3037, 0
      %v3180 = vsel %vm3043, %v3038, 0
      %v3183 = vsel %vm3043, %v3039, 0
      %v3186 = vsel %vm3043, %v3040, 0
      %v3189 = vsel %vm3043, %v3041, 0
      %v3192 = vsel %vm3043, %v3042, 0
      %vm3194 = vcmask 1043456
      %v3196 = vsel %vm3194, %v2942, 0
      %3198 = vmatprep.subr.mxu0 0.0
      %3199 = vmatpush1.msra.mxu0 %v3196
      %3200 = vmatprep.subr.mxu0 0.0
      %3201 = vmatpush1.msra.mxu0 0.0
      %3202 = vmatprep.subr.mxu0 0.0
      %3203 = vmatpush1.msra.mxu0 0.0
      %3204 = vmatprep.subr.mxu0 0.0
      %3205 = vmatpush1.msra.mxu0 0.0
      %3206 = vmatprep.subr.mxu0 0.0
      %3207 = vmatpush1.msra.mxu0 0.0
      %3208 = vmatprep.subr.mxu0 0.0
      %3209 = vmatpush1.msra.mxu0 0.0
      %3210 = vmatprep.subr.mxu0 0.0
      %3211 = vmatpush1.msra.mxu0 0.0
      %3212 = vmatprep.subr.mxu0 0.0
      %3213 = vmatpush1.msra.mxu0 0.0
      %3214 = vmatprep.subr.mxu0 0.0
      %3215 = vmatpush1.msra.mxu0 0.0
      %3216 = vmatprep.subr.mxu0 0.0
      %3217 = vmatpush1.msra.mxu0 0.0
      %3218 = vmatprep.subr.mxu0 0.0
      %3219 = vmatpush1.msra.mxu0 0.0
      %3220 = vmatprep.subr.mxu0 0.0
      %3221 = vmatpush1.msra.mxu0 0.0
      %3222 = vmatprep.subr.mxu0 0.0
      %3223 = vmatpush1.msra.mxu0 0.0
      %3224 = vmatprep.subr.mxu0 0.0
      %3225 = vmatpush1.msra.mxu0 0.0
      %3226 = vmatprep.subr.mxu0 0.0
      %3227 = vmatpush1.msra.mxu0 0.0
      %3228 = vmatprep.subr.mxu0 0.0
      %3229 = vmatpush1.msra.mxu0 0.0
      %3230 = vmatprep.subr.mxu0 0.0
      %3231 = vmatpush1.msra.mxu0 0.0
      %3232 = vmatprep.subr.mxu0 0.0
      %3233 = vmatpush1.msra.mxu0 0.0
      %3234 = vmatprep.subr.mxu0 0.0
      %3235 = vmatpush1.msra.mxu0 0.0
      %3236 = vmatprep.subr.mxu0 0.0
      %3237 = vmatpush1.msra.mxu0 0.0
      %3238 = vmatprep.subr.mxu0 0.0
      %3239 = vmatpush1.msra.mxu0 0.0
      %3240 = vmatprep.subr.mxu0 0.0
      %3241 = vmatpush1.msra.mxu0 0.0
      %3242 = vmatprep.subr.mxu0 0.0
      %3243 = vmatpush1.msra.mxu0 0.0
      %3244 = vmatprep.subr.mxu0 0.0
      %3245 = vmatpush1.msra.mxu0 0.0
      %3246 = vmatprep.subr.mxu0 0.0
      %3247 = vmatpush1.msra.mxu0 0.0
      %3248 = vmatprep.subr.mxu0 0.0
      %3249 = vmatpush1.msra.mxu0 0.0
      %3250 = vmatprep.subr.mxu0 0.0
      %3251 = vmatpush1.msra.mxu0 0.0
      %3252 = vmatprep.subr.mxu0 0.0
      %3253 = vmatpush1.msra.mxu0 0.0
      %3254 = vmatprep.subr.mxu0 0.0
      %3255 = vmatpush1.msra.mxu0 0.0
      %3256 = vmatprep.subr.mxu0 0.0
      %3257 = vmatpush1.msra.mxu0 0.0
      %3258 = vmatprep.subr.mxu0 0.0
      %3259 = vmatpush1.msra.mxu0 0.0
      %3260 = vmatprep.subr.mxu0 0.0
      %3261 = vmatpush1.msra.mxu0 0.0
      %3262 = vmatprep.mubr.f32.mxu0 0.0
      %3263 = vmatmul.mubr.f32.gmra.mrb[0].mxu0 %v3045
      %v3264 = vpop.f32.mrb[0].mxu0
      %v3265 = vadd.f32 0.0, %v3264
      %v3266 = vpop.f32.mrb[0].mxu0
      %3267 = vmatprep.mubr.f32.mxu0 0.0
      %3268 = vmatmul.mubr.f32.gmra.mrb[0].mxu0 %v3048
      %v3269 = vpop.f32.mrb[0].mxu0
      %v3270 = vadd.f32 0.0, %v3269
      %v3271 = vpop.f32.mrb[0].mxu0
      %3272 = vmatprep.mubr.f32.mxu0 0.0
      %3273 = vmatmul.mubr.f32.gmra.mrb[0].mxu0 %v3051
      %v3274 = vpop.f32.mrb[0].mxu0
      %v3275 = vadd.f32 0.0, %v3274
      %v3276 = vpop.f32.mrb[0].mxu0
      %3277 = vmatprep.mubr.f32.mxu0 0.0
      %3278 = vmatmul.mubr.f32.gmra.mrb[0].mxu0 %v3054
      %v3279 = vpop.f32.mrb[0].mxu0
      %v3280 = vadd.f32 0.0, %v3279
      %v3281 = vpop.f32.mrb[0].mxu0
      %3282 = vmatprep.mubr.f32.mxu0 0.0
      %3283 = vmatmul.mubr.f32.gmra.mrb[0].mxu0 %v3057
      %v3284 = vpop.f32.mrb[0].mxu0
      %v3285 = vadd.f32 0.0, %v3284
      %v3286 = vpop.f32.mrb[0].mxu0
      %3287 = vmatprep.mubr.f32.mxu0 0.0
      %3288 = vmatmul.mubr.f32.gmra.mrb[0].mxu0 %v3060
      %v3289 = vpop.f32.mrb[0].mxu0
      %v3290 = vadd.f32 0.0, %v3289
      %v3291 = vpop.f32.mrb[0].mxu0
      %3292 = vmatprep.mubr.f32.mxu0 0.0
      %3293 = vmatmul.mubr.f32.gmra.mrb[0].mxu0 %v3063
      %v3294 = vpop.f32.mrb[0].mxu0
      %v3295 = vadd.f32 0.0, %v3294
      %v3296 = vpop.f32.mrb[0].mxu0
      %3297 = vmatprep.mubr.f32.mxu0 0.0
      %3298 = vmatmul.mubr.f32.gmra.mrb[0].mxu0 %v3066
      %v3299 = vpop.f32.mrb[0].mxu0
      %v3300 = vadd.f32 0.0, %v3299
      %v3301 = vpop.f32.mrb[0].mxu0
      %3302 = vmatprep.mubr.f32.mxu0 0.0
      %3303 = vmatmul.mubr.f32.gmra.mrb[0].mxu0 %v3069
      %v3304 = vpop.f32.mrb[0].mxu0
      %v3305 = vadd.f32 0.0, %v3304
      %v3306 = vpop.f32.mrb[0].mxu0
      %3307 = vmatprep.mubr.f32.mxu0 0.0
      %3308 = vmatmul.mubr.f32.gmra.mrb[0].mxu0 %v3072
      %v3309 = vpop.f32.mrb[0].mxu0
      %v3310 = vadd.f32 0.0, %v3309
      %v3311 = vpop.f32.mrb[0].mxu0
      %3312 = vmatprep.mubr.f32.mxu0 0.0
      %3313 = vmatmul.mubr.f32.gmra.mrb[0].mxu0 %v3075
      %v3314 = vpop.f32.mrb[0].mxu0
      %v3315 = vadd.f32 0.0, %v3314
      %v3316 = vpop.f32.mrb[0].mxu0
      %3317 = vmatprep.mubr.f32.mxu0 0.0
      %3318 = vmatmul.mubr.f32.gmra.mrb[0].mxu0 %v3078
      %v3319 = vpop.f32.mrb[0].mxu0
      %v3320 = vadd.f32 0.0, %v3319
      %v3321 = vpop.f32.mrb[0].mxu0
      %3322 = vmatprep.mubr.f32.mxu0 0.0
      %3323 = vmatmul.mubr.f32.gmra.mrb[0].mxu0 %v3081
      %v3324 = vpop.f32.mrb[0].mxu0
      %v3325 = vadd.f32 0.0, %v3324
      %v3326 = vpop.f32.mrb[0].mxu0
      %3327 = vmatprep.mubr.f32.mxu0 0.0
      %3328 = vmatmul.mubr.f32.gmra.mrb[0].mxu0 %v3084
      %v3329 = vpop.f32.mrb[0].mxu0
      %v3330 = vadd.f32 0.0, %v3329
      %v3331 = vpop.f32.mrb[0].mxu0
      %3332 = vmatprep.mubr.f32.mxu0 0.0
      %3333 = vmatmul.mubr.f32.gmra.mrb[0].mxu0 %v3087
      %v3334 = vpop.f32.mrb[0].mxu0
      %v3335 = vadd.f32 0.0, %v3334
      %v3336 = vpop.f32.mrb[0].mxu0
      %3337 = vmatprep.mubr.f32.mxu0 0.0
      %3338 = vmatmul.mubr.f32.gmra.mrb[0].mxu0 %v3090
      %v3339 = vpop.f32.mrb[0].mxu0
      %v3340 = vadd.f32 0.0, %v3339
      %v3341 = vpop.f32.mrb[0].mxu0
      %3342 = vmatprep.mubr.f32.mxu0 0.0
      %3343 = vmatmul.mubr.f32.gmra.mrb[0].mxu0 %v3093
      %v3344 = vpop.f32.mrb[0].mxu0
      %v3345 = vadd.f32 0.0, %v3344
      %v3346 = vpop.f32.mrb[0].mxu0
      %3347 = vmatprep.mubr.f32.mxu0 0.0
      %3348 = vmatmul.mubr.f32.gmra.mrb[0].mxu0 %v3096
      %v3349 = vpop.f32.mrb[0].mxu0
      %v3350 = vadd.f32 0.0, %v3349
      %v3351 = vpop.f32.mrb[0].mxu0
      %3352 = vmatprep.mubr.f32.mxu0 0.0
      %3353 = vmatmul.mubr.f32.gmra.mrb[0].mxu0 %v3099
      %v3354 = vpop.f32.mrb[0].mxu0
      %v3355 = vadd.f32 0.0, %v3354
      %v3356 = vpop.f32.mrb[0].mxu0
      %3357 = vmatprep.mubr.f32.mxu0 0.0
      %3358 = vmatmul.mubr.f32.gmra.mrb[0].mxu0 %v3102
      %v3359 = vpop.f32.mrb[0].mxu0
      %v3360 = vadd.f32 0.0, %v3359
      %v3361 = vpop.f32.mrb[0].mxu0
      %3362 = vmatprep.mubr.f32.mxu0 0.0
      %3363 = vmatmul.mubr.f32.gmra.mrb[0].mxu0 %v3105
      %v3364 = vpop.f32.mrb[0].mxu0
      %v3365 = vadd.f32 0.0, %v3364
      %v3366 = vpop.f32.mrb[0].mxu0
      %3367 = vmatprep.mubr.f32.mxu0 0.0
      %3368 = vmatmul.mubr.f32.gmra.mrb[0].mxu0 %v3108
      %v3369 = vpop.f32.mrb[0].mxu0
      %v3370 = vadd.f32 0.0, %v3369
      %v3371 = vpop.f32.mrb[0].mxu0
      %3372 = vmatprep.mubr.f32.mxu0 0.0
      %3373 = vmatmul.mubr.f32.gmra.mrb[0].mxu0 %v3111
      %v3374 = vpop.f32.mrb[0].mxu0
      %v3375 = vadd.f32 0.0, %v3374
      %v3376 = vpop.f32.mrb[0].mxu0
      %3377 = vmatprep.mubr.f32.mxu0 0.0
      %3378 = vmatmul.mubr.f32.gmra.mrb[0].mxu0 %v3114
      %v3379 = vpop.f32.mrb[0].mxu0
      %v3380 = vadd.f32 0.0, %v3379
      %v3381 = vpop.f32.mrb[0].mxu0
      %3382 = vmatprep.mubr.f32.mxu0 0.0
      %3383 = vmatmul.mubr.f32.gmra.mrb[0].mxu0 %v3117
      %v3384 = vpop.f32.mrb[0].mxu0
      %v3385 = vadd.f32 0.0, %v3384
      %v3386 = vpop.f32.mrb[0].mxu0
      %3387 = vmatprep.mubr.f32.mxu0 0.0
      %3388 = vmatmul.mubr.f32.gmra.mrb[0].mxu0 %v3120
      %v3389 = vpop.f32.mrb[0].mxu0
      %v3390 = vadd.f32 0.0, %v3389
      %v3391 = vpop.f32.mrb[0].mxu0
      %3392 = vmatprep.mubr.f32.mxu0 0.0
      %3393 = vmatmul.mubr.f32.gmra.mrb[0].mxu0 %v3123
      %v3394 = vpop.f32.mrb[0].mxu0
      %v3395 = vadd.f32 0.0, %v3394
      %v3396 = vpop.f32.mrb[0].mxu0
      %3397 = vmatprep.mubr.f32.mxu0 0.0
      %3398 = vmatmul.mubr.f32.gmra.mrb[0].mxu0 %v3126
      %v3399 = vpop.f32.mrb[0].mxu0
      %v3400 = vadd.f32 0.0, %v3399
      %v3401 = vpop.f32.mrb[0].mxu0
      %3402 = vmatprep.mubr.f32.mxu0 0.0
      %3403 = vmatmul.mubr.f32.gmra.mrb[0].mxu0 %v3129
      %v3404 = vpop.f32.mrb[0].mxu0
      %v3405 = vadd.f32 0.0, %v3404
      %v3406 = vpop.f32.mrb[0].mxu0
      %3407 = vmatprep.mubr.f32.mxu0 0.0
      %3408 = vmatmul.mubr.f32.gmra.mrb[0].mxu0 %v3132
      %v3409 = vpop.f32.mrb[0].mxu0
      %v3410 = vadd.f32 0.0, %v3409
      %v3411 = vpop.f32.mrb[0].mxu0
      %3412 = vmatprep.mubr.f32.mxu0 0.0
      %3413 = vmatmul.mubr.f32.gmra.mrb[0].mxu0 %v3135
      %v3414 = vpop.f32.mrb[0].mxu0
      %v3415 = vadd.f32 0.0, %v3414
      %v3416 = vpop.f32.mrb[0].mxu0
      %3417 = vmatprep.mubr.f32.mxu0 0.0
      %3418 = vmatmul.mubr.f32.gmra.mrb[0].mxu0 %v3138
      %v3419 = vpop.f32.mrb[0].mxu0
      %v3420 = vadd.f32 0.0, %v3419
      %v3421 = vpop.f32.mrb[0].mxu0
      %3422 = vmatprep.mubr.f32.mxu0 0.0
      %3423 = vmatmul.mubr.f32.gmra.mrb[0].mxu0 %v3141
      %v3424 = vpop.f32.mrb[0].mxu0
      %v3425 = vadd.f32 0.0, %v3424
      %v3426 = vpop.f32.mrb[0].mxu0
      %3427 = vmatprep.mubr.f32.mxu0 0.0
      %3428 = vmatmul.mubr.f32.gmra.mrb[0].mxu0 %v3144
      %v3429 = vpop.f32.mrb[0].mxu0
      %v3430 = vadd.f32 0.0, %v3429
      %v3431 = vpop.f32.mrb[0].mxu0
      %3432 = vmatprep.mubr.f32.mxu0 0.0
      %3433 = vmatmul.mubr.f32.gmra.mrb[0].mxu0 %v3147
      %v3434 = vpop.f32.mrb[0].mxu0
      %v3435 = vadd.f32 0.0, %v3434
      %v3436 = vpop.f32.mrb[0].mxu0
      %3437 = vmatprep.mubr.f32.mxu0 0.0
      %3438 = vmatmul.mubr.f32.gmra.mrb[0].mxu0 %v3150
      %v3439 = vpop.f32.mrb[0].mxu0
      %v3440 = vadd.f32 0.0, %v3439
      %v3441 = vpop.f32.mrb[0].mxu0
      %3442 = vmatprep.mubr.f32.mxu0 0.0
      %3443 = vmatmul.mubr.f32.gmra.mrb[0].mxu0 %v3153
      %v3444 = vpop.f32.mrb[0].mxu0
      %v3445 = vadd.f32 0.0, %v3444
      %v3446 = vpop.f32.mrb[0].mxu0
      %3447 = vmatprep.mubr.f32.mxu0 0.0
      %3448 = vmatmul.mubr.f32.gmra.mrb[0].mxu0 %v3156
      %v3449 = vpop.f32.mrb[0].mxu0
      %v3450 = vadd.f32 0.0, %v3449
      %v3451 = vpop.f32.mrb[0].mxu0
      %3452 = vmatprep.mubr.f32.mxu0 0.0
      %3453 = vmatmul.mubr.f32.gmra.mrb[0].mxu0 %v3159
      %v3454 = vpop.f32.mrb[0].mxu0
      %v3455 = vadd.f32 0.0, %v3454
      %v3456 = vpop.f32.mrb[0].mxu0
      %3457 = vmatprep.mubr.f32.mxu0 0.0
      %3458 = vmatmul.mubr.f32.gmra.mrb[0].mxu0 %v3162
      %v3459 = vpop.f32.mrb[0].mxu0
      %v3460 = vadd.f32 0.0, %v3459
      %v3461 = vpop.f32.mrb[0].mxu0
      %3462 = vmatprep.mubr.f32.mxu0 0.0
      %3463 = vmatmul.mubr.f32.gmra.mrb[0].mxu0 %v3165
      %v3464 = vpop.f32.mrb[0].mxu0
      %v3465 = vadd.f32 0.0, %v3464
      %v3466 = vpop.f32.mrb[0].mxu0
      %3467 = vmatprep.mubr.f32.mxu0 0.0
      %3468 = vmatmul.mubr.f32.gmra.mrb[0].mxu0 %v3168
      %v3469 = vpop.f32.mrb[0].mxu0
      %v3470 = vadd.f32 0.0, %v3469
      %v3471 = vpop.f32.mrb[0].mxu0
      %3472 = vmatprep.mubr.f32.mxu0 0.0
      %3473 = vmatmul.mubr.f32.gmra.mrb[0].mxu0 %v3171
      %v3474 = vpop.f32.mrb[0].mxu0
      %v3475 = vadd.f32 0.0, %v3474
      %v3476 = vpop.f32.mrb[0].mxu0
      %3477 = vmatprep.mubr.f32.mxu0 0.0
      %3478 = vmatmul.mubr.f32.gmra.mrb[0].mxu0 %v3174
      %v3479 = vpop.f32.mrb[0].mxu0
      %v3480 = vadd.f32 0.0, %v3479
      %v3481 = vpop.f32.mrb[0].mxu0
      %3482 = vmatprep.mubr.f32.mxu0 0.0
      %3483 = vmatmul.mubr.f32.gmra.mrb[0].mxu0 %v3177
      %v3484 = vpop.f32.mrb[0].mxu0
      %v3485 = vadd.f32 0.0, %v3484
      %v3486 = vpop.f32.mrb[0].mxu0
      %3487 = vmatprep.mubr.f32.mxu0 0.0
      %3488 = vmatmul.mubr.f32.gmra.mrb[0].mxu0 %v3180
      %v3489 = vpop.f32.mrb[0].mxu0
      %v3490 = vadd.f32 0.0, %v3489
      %v3491 = vpop.f32.mrb[0].mxu0
      %3492 = vmatprep.mubr.f32.mxu0 0.0
      %3493 = vmatmul.mubr.f32.gmra.mrb[0].mxu0 %v3183
      %v3494 = vpop.f32.mrb[0].mxu0
      %v3495 = vadd.f32 0.0, %v3494
      %v3496 = vpop.f32.mrb[0].mxu0
      %3497 = vmatprep.mubr.f32.mxu0 0.0
      %3498 = vmatmul.mubr.f32.gmra.mrb[0].mxu0 %v3186
      %v3499 = vpop.f32.mrb[0].mxu0
      %v3500 = vadd.f32 0.0, %v3499
      %v3501 = vpop.f32.mrb[0].mxu0
      %3502 = vmatprep.mubr.f32.mxu0 0.0
      %3503 = vmatmul.mubr.f32.gmra.mrb[0].mxu0 %v3189
      %v3504 = vpop.f32.mrb[0].mxu0
      %v3505 = vadd.f32 0.0, %v3504
      %v3506 = vpop.f32.mrb[0].mxu0
      %3507 = vmatprep.mubr.f32.mxu0 0.0
      %3508 = vmatmul.mubr.f32.gmra.mrb[0].mxu0 %v3192
      %v3509 = vpop.f32.mrb[0].mxu0
      %v3510 = vadd.f32 0.0, %v3509
      %v3511 = vpop.f32.mrb[0].mxu0
      %3512 = vdwg.mxu0
      %v3514 = vsel %vm1698, %v2943, 0
      %v3517 = vsel %vm1698, %v2944, 0
      %v3520 = vsel %vm1698, %v2945, 0
      %v3523 = vsel %vm1698, %v2946, 0
      %v3526 = vsel %vm1698, %v2947, 0
      %v3529 = vsel %vm1698, %v2948, 0
      %v3532 = vsel %vm1698, %v2949, 0
      %v3535 = vsel %vm1698, %v2950, 0
      %v3538 = vsel %vm1698, %v2951, 0
      %v3541 = vsel %vm1698, %v2952, 0
      %v3544 = vsel %vm1698, %v2953, 0
      %v3547 = vsel %vm1698, %v2954, 0
      %v3550 = vsel %vm1698, %v2955, 0
      %v3553 = vsel %vm1698, %v2956, 0
      %v3556 = vsel %vm1698, %v2957, 0
      %v3559 = vsel %vm1698, %v2958, 0
      %v3562 = vsel %vm1698, %v2959, 0
      %v3565 = vsel %vm1698, %v2960, 0
      %v3568 = vsel %vm1698, %v2961, 0
      %v3571 = vsel %vm1698, %v2962, 0
      %v3574 = vsel %vm1698, %v2963, 0
      %v3577 = vsel %vm1698, %v2964, 0
      %v3580 = vsel %vm1698, %v2965, 0
      %v3583 = vsel %vm1698, %v2966, 0
      %v3586 = vsel %vm1698, %v2967, 0
      %v3589 = vsel %vm1698, %v2968, 0
      %v3592 = vsel %vm1698, %v2969, 0
      %v3595 = vsel %vm1698, %v2970, 0
      %v3598 = vsel %vm1698, %v2971, 0
      %v3601 = vsel %vm1698, %v2972, 0
      %v3604 = vsel %vm1698, %v2973, 0
      %v3607 = vsel %vm1698, %v2974, 0
      %v3610 = vsel %vm1698, %v2975, 0
      %v3613 = vsel %vm1698, %v2976, 0
      %v3616 = vsel %vm1698, %v2977, 0
      %v3619 = vsel %vm1698, %v2978, 0
      %v3622 = vsel %vm1698, %v2979, 0
      %v3625 = vsel %vm1698, %v2980, 0
      %v3628 = vsel %vm1698, %v2981, 0
      %v3631 = vsel %vm1698, %v2982, 0
      %v3634 = vsel %vm1698, %v2983, 0
      %v3637 = vsel %vm1698, %v2984, 0
      %v3640 = vsel %vm1698, %v2985, 0
      %v3643 = vsel %vm1698, %v2986, 0
      %v3646 = vsel %vm1698, %v2987, 0
      %v3649 = vsel %vm1698, %v2988, 0
      %v3652 = vsel %vm1698, %v2989, 0
      %v3655 = vsel %vm1698, %v2990, 0
      %v3658 = vsel %vm1698, %v2991, 0
      %v3661 = vsel %vm1698, %v2992, 0
      %3663 = vmatprep.subr.mxu0 0.0
      %3664 = vmatpush1.msra.mxu0 %v2940
      %3665 = vmatprep.subr.mxu0 0.0
      %3666 = vmatpush1.msra.mxu0 %v2941
      %3667 = vmatprep.subr.mxu0 0.0
      %3668 = vmatpush1.msra.mxu0 0.0
      %3669 = vmatprep.subr.mxu0 0.0
      %3670 = vmatpush1.msra.mxu0 0.0
      %3671 = vmatprep.subr.mxu0 0.0
      %3672 = vmatpush1.msra.mxu0 0.0
      %3673 = vmatprep.subr.mxu0 0.0
      %3674 = vmatpush1.msra.mxu0 0.0
      %3675 = vmatprep.subr.mxu0 0.0
      %3676 = vmatpush1.msra.mxu0 0.0
      %3677 = vmatprep.subr.mxu0 0.0
      %3678 = vmatpush1.msra.mxu0 0.0
      %3679 = vmatprep.subr.mxu0 0.0
      %3680 = vmatpush1.msra.mxu0 0.0
      %3681 = vmatprep.subr.mxu0 0.0
      %3682 = vmatpush1.msra.mxu0 0.0
      %3683 = vmatprep.subr.mxu0 0.0
      %3684 = vmatpush1.msra.mxu0 0.0
      %3685 = vmatprep.subr.mxu0 0.0
      %3686 = vmatpush1.msra.mxu0 0.0
      %3687 = vmatprep.subr.mxu0 0.0
      %3688 = vmatpush1.msra.mxu0 0.0
      %3689 = vmatprep.subr.mxu0 0.0
      %3690 = vmatpush1.msra.mxu0 0.0
      %3691 = vmatprep.subr.mxu0 0.0
      %3692 = vmatpush1.msra.mxu0 0.0
      %3693 = vmatprep.subr.mxu0 0.0
      %3694 = vmatpush1.msra.mxu0 0.0
      %3695 = vmatprep.subr.mxu0 0.0
      %3696 = vmatpush1.msra.mxu0 0.0
      %3697 = vmatprep.subr.mxu0 0.0
      %3698 = vmatpush1.msra.mxu0 0.0
      %3699 = vmatprep.subr.mxu0 0.0
      %3700 = vmatpush1.msra.mxu0 0.0
      %3701 = vmatprep.subr.mxu0 0.0
      %3702 = vmatpush1.msra.mxu0 0.0
      %3703 = vmatprep.subr.mxu0 0.0
      %3704 = vmatpush1.msra.mxu0 0.0
      %3705 = vmatprep.subr.mxu0 0.0
      %3706 = vmatpush1.msra.mxu0 0.0
      %3707 = vmatprep.subr.mxu0 0.0
      %3708 = vmatpush1.msra.mxu0 0.0
      %3709 = vmatprep.subr.mxu0 0.0
      %3710 = vmatpush1.msra.mxu0 0.0
      %3711 = vmatprep.subr.mxu0 0.0
      %3712 = vmatpush1.msra.mxu0 0.0
      %3713 = vmatprep.subr.mxu0 0.0
      %3714 = vmatpush1.msra.mxu0 0.0
      %3715 = vmatprep.subr.mxu0 0.0
      %3716 = vmatpush1.msra.mxu0 0.0
      %3717 = vmatprep.subr.mxu0 0.0
      %3718 = vmatpush1.msra.mxu0 0.0
      %3719 = vmatprep.subr.mxu0 0.0
      %3720 = vmatpush1.msra.mxu0 0.0
      %3721 = vmatprep.subr.mxu0 0.0
      %3722 = vmatpush1.msra.mxu0 0.0
      %3723 = vmatprep.subr.mxu0 0.0
      %3724 = vmatpush1.msra.mxu0 0.0
      %3725 = vmatprep.subr.mxu0 0.0
      %3726 = vmatpush1.msra.mxu0 0.0
      %3727 = vmatprep.mubr.f32.mxu0 0.0
      %3728 = vmatmul.mubr.f32.gmra.mrb[0].mxu0 %v3514
      %v3729 = vpop.f32.mrb[0].mxu0
      %v3730 = vadd.f32 %v3265, %v3729
      %v3731 = vpop.f32.mrb[0].mxu0
      %3732 = vmatprep.mubr.f32.mxu0 0.0
      %3733 = vmatmul.mubr.f32.gmra.mrb[0].mxu0 %v3517
      %v3734 = vpop.f32.mrb[0].mxu0
      %v3735 = vadd.f32 %v3270, %v3734
      %v3736 = vpop.f32.mrb[0].mxu0
      %3737 = vmatprep.mubr.f32.mxu0 0.0
      %3738 = vmatmul.mubr.f32.gmra.mrb[0].mxu0 %v3520
      %v3739 = vpop.f32.mrb[0].mxu0
      %v3740 = vadd.f32 %v3275, %v3739
      %v3741 = vpop.f32.mrb[0].mxu0
      %3742 = vmatprep.mubr.f32.mxu0 0.0
      %3743 = vmatmul.mubr.f32.gmra.mrb[0].mxu0 %v3523
      %v3744 = vpop.f32.mrb[0].mxu0
      %v3745 = vadd.f32 %v3280, %v3744
      %v3746 = vpop.f32.mrb[0].mxu0
      %3747 = vmatprep.mubr.f32.mxu0 0.0
      %3748 = vmatmul.mubr.f32.gmra.mrb[0].mxu0 %v3526
      %v3749 = vpop.f32.mrb[0].mxu0
      %v3750 = vadd.f32 %v3285, %v3749
      %v3751 = vpop.f32.mrb[0].mxu0
      %3752 = vmatprep.mubr.f32.mxu0 0.0
      %3753 = vmatmul.mubr.f32.gmra.mrb[0].mxu0 %v3529
      %v3754 = vpop.f32.mrb[0].mxu0
      %v3755 = vadd.f32 %v3290, %v3754
      %v3756 = vpop.f32.mrb[0].mxu0
      %3757 = vmatprep.mubr.f32.mxu0 0.0
      %3758 = vmatmul.mubr.f32.gmra.mrb[0].mxu0 %v3532
      %v3759 = vpop.f32.mrb[0].mxu0
      %v3760 = vadd.f32 %v3295, %v3759
      %v3761 = vpop.f32.mrb[0].mxu0
      %3762 = vmatprep.mubr.f32.mxu0 0.0
      %3763 = vmatmul.mubr.f32.gmra.mrb[0].mxu0 %v3535
      %v3764 = vpop.f32.mrb[0].mxu0
      %v3765 = vadd.f32 %v3300, %v3764
      %v3766 = vpop.f32.mrb[0].mxu0
      %3767 = vmatprep.mubr.f32.mxu0 0.0
      %3768 = vmatmul.mubr.f32.gmra.mrb[0].mxu0 %v3538
      %v3769 = vpop.f32.mrb[0].mxu0
      %v3770 = vadd.f32 %v3305, %v3769
      %v3771 = vpop.f32.mrb[0].mxu0
      %3772 = vmatprep.mubr.f32.mxu0 0.0
      %3773 = vmatmul.mubr.f32.gmra.mrb[0].mxu0 %v3541
      %v3774 = vpop.f32.mrb[0].mxu0
      %v3775 = vadd.f32 %v3310, %v3774
      %v3776 = vpop.f32.mrb[0].mxu0
      %3777 = vmatprep.mubr.f32.mxu0 0.0
      %3778 = vmatmul.mubr.f32.gmra.mrb[0].mxu0 %v3544
      %v3779 = vpop.f32.mrb[0].mxu0
      %v3780 = vadd.f32 %v3315, %v3779
      %v3781 = vpop.f32.mrb[0].mxu0
      %3782 = vmatprep.mubr.f32.mxu0 0.0
      %3783 = vmatmul.mubr.f32.gmra.mrb[0].mxu0 %v3547
      %v3784 = vpop.f32.mrb[0].mxu0
      %v3785 = vadd.f32 %v3320, %v3784
      %v3786 = vpop.f32.mrb[0].mxu0
      %3787 = vmatprep.mubr.f32.mxu0 0.0
      %3788 = vmatmul.mubr.f32.gmra.mrb[0].mxu0 %v3550
      %v3789 = vpop.f32.mrb[0].mxu0
      %v3790 = vadd.f32 %v3325, %v3789
      %v3791 = vpop.f32.mrb[0].mxu0
      %3792 = vmatprep.mubr.f32.mxu0 0.0
      %3793 = vmatmul.mubr.f32.gmra.mrb[0].mxu0 %v3553
      %v3794 = vpop.f32.mrb[0].mxu0
      %v3795 = vadd.f32 %v3330, %v3794
      %v3796 = vpop.f32.mrb[0].mxu0
      %3797 = vmatprep.mubr.f32.mxu0 0.0
      %3798 = vmatmul.mubr.f32.gmra.mrb[0].mxu0 %v3556
      %v3799 = vpop.f32.mrb[0].mxu0
      %v3800 = vadd.f32 %v3335, %v3799
      %v3801 = vpop.f32.mrb[0].mxu0
      %3802 = vmatprep.mubr.f32.mxu0 0.0
      %3803 = vmatmul.mubr.f32.gmra.mrb[0].mxu0 %v3559
      %v3804 = vpop.f32.mrb[0].mxu0
      %v3805 = vadd.f32 %v3340, %v3804
      %v3806 = vpop.f32.mrb[0].mxu0
      %3807 = vmatprep.mubr.f32.mxu0 0.0
      %3808 = vmatmul.mubr.f32.gmra.mrb[0].mxu0 %v3562
      %v3809 = vpop.f32.mrb[0].mxu0
      %v3810 = vadd.f32 %v3345, %v3809
      %v3811 = vpop.f32.mrb[0].mxu0
      %3812 = vmatprep.mubr.f32.mxu0 0.0
      %3813 = vmatmul.mubr.f32.gmra.mrb[0].mxu0 %v3565
      %v3814 = vpop.f32.mrb[0].mxu0
      %v3815 = vadd.f32 %v3350, %v3814
      %v3816 = vpop.f32.mrb[0].mxu0
      %3817 = vmatprep.mubr.f32.mxu0 0.0
      %3818 = vmatmul.mubr.f32.gmra.mrb[0].mxu0 %v3568
      %v3819 = vpop.f32.mrb[0].mxu0
      %v3820 = vadd.f32 %v3355, %v3819
      %v3821 = vpop.f32.mrb[0].mxu0
      %3822 = vmatprep.mubr.f32.mxu0 0.0
      %3823 = vmatmul.mubr.f32.gmra.mrb[0].mxu0 %v3571
      %v3824 = vpop.f32.mrb[0].mxu0
      %v3825 = vadd.f32 %v3360, %v3824
      %v3826 = vpop.f32.mrb[0].mxu0
      %3827 = vmatprep.mubr.f32.mxu0 0.0
      %3828 = vmatmul.mubr.f32.gmra.mrb[0].mxu0 %v3574
      %v3829 = vpop.f32.mrb[0].mxu0
      %v3830 = vadd.f32 %v3365, %v3829
      %v3831 = vpop.f32.mrb[0].mxu0
      %3832 = vmatprep.mubr.f32.mxu0 0.0
      %3833 = vmatmul.mubr.f32.gmra.mrb[0].mxu0 %v3577
      %v3834 = vpop.f32.mrb[0].mxu0
      %v3835 = vadd.f32 %v3370, %v3834
      %v3836 = vpop.f32.mrb[0].mxu0
      %3837 = vmatprep.mubr.f32.mxu0 0.0
      %3838 = vmatmul.mubr.f32.gmra.mrb[0].mxu0 %v3580
      %v3839 = vpop.f32.mrb[0].mxu0
      %v3840 = vadd.f32 %v3375, %v3839
      %v3841 = vpop.f32.mrb[0].mxu0
      %3842 = vmatprep.mubr.f32.mxu0 0.0
      %3843 = vmatmul.mubr.f32.gmra.mrb[0].mxu0 %v3583
      %v3844 = vpop.f32.mrb[0].mxu0
      %v3845 = vadd.f32 %v3380, %v3844
      %v3846 = vpop.f32.mrb[0].mxu0
      %3847 = vmatprep.mubr.f32.mxu0 0.0
      %3848 = vmatmul.mubr.f32.gmra.mrb[0].mxu0 %v3586
      %v3849 = vpop.f32.mrb[0].mxu0
      %v3850 = vadd.f32 %v3385, %v3849
      %v3851 = vpop.f32.mrb[0].mxu0
      %3852 = vmatprep.mubr.f32.mxu0 0.0
      %3853 = vmatmul.mubr.f32.gmra.mrb[0].mxu0 %v3589
      %v3854 = vpop.f32.mrb[0].mxu0
      %v3855 = vadd.f32 %v3390, %v3854
      %v3856 = vpop.f32.mrb[0].mxu0
      %3857 = vmatprep.mubr.f32.mxu0 0.0
      %3858 = vmatmul.mubr.f32.gmra.mrb[0].mxu0 %v3592
      %v3859 = vpop.f32.mrb[0].mxu0
      %v3860 = vadd.f32 %v3395, %v3859
      %v3861 = vpop.f32.mrb[0].mxu0
      %3862 = vmatprep.mubr.f32.mxu0 0.0
      %3863 = vmatmul.mubr.f32.gmra.mrb[0].mxu0 %v3595
      %v3864 = vpop.f32.mrb[0].mxu0
      %v3865 = vadd.f32 %v3400, %v3864
      %v3866 = vpop.f32.mrb[0].mxu0
      %3867 = vmatprep.mubr.f32.mxu0 0.0
      %3868 = vmatmul.mubr.f32.gmra.mrb[0].mxu0 %v3598
      %v3869 = vpop.f32.mrb[0].mxu0
      %v3870 = vadd.f32 %v3405, %v3869
      %v3871 = vpop.f32.mrb[0].mxu0
      %3872 = vmatprep.mubr.f32.mxu0 0.0
      %3873 = vmatmul.mubr.f32.gmra.mrb[0].mxu0 %v3601
      %v3874 = vpop.f32.mrb[0].mxu0
      %v3875 = vadd.f32 %v3410, %v3874
      %v3876 = vpop.f32.mrb[0].mxu0
      %3877 = vmatprep.mubr.f32.mxu0 0.0
      %3878 = vmatmul.mubr.f32.gmra.mrb[0].mxu0 %v3604
      %v3879 = vpop.f32.mrb[0].mxu0
      %v3880 = vadd.f32 %v3415, %v3879
      %v3881 = vpop.f32.mrb[0].mxu0
      %3882 = vmatprep.mubr.f32.mxu0 0.0
      %3883 = vmatmul.mubr.f32.gmra.mrb[0].mxu0 %v3607
      %v3884 = vpop.f32.mrb[0].mxu0
      %v3885 = vadd.f32 %v3420, %v3884
      %v3886 = vpop.f32.mrb[0].mxu0
      %3887 = vmatprep.mubr.f32.mxu0 0.0
      %3888 = vmatmul.mubr.f32.gmra.mrb[0].mxu0 %v3610
      %v3889 = vpop.f32.mrb[0].mxu0
      %v3890 = vadd.f32 %v3425, %v3889
      %v3891 = vpop.f32.mrb[0].mxu0
      %3892 = vmatprep.mubr.f32.mxu0 0.0
      %3893 = vmatmul.mubr.f32.gmra.mrb[0].mxu0 %v3613
      %v3894 = vpop.f32.mrb[0].mxu0
      %v3895 = vadd.f32 %v3430, %v3894
      %v3896 = vpop.f32.mrb[0].mxu0
      %3897 = vmatprep.mubr.f32.mxu0 0.0
      %3898 = vmatmul.mubr.f32.gmra.mrb[0].mxu0 %v3616
      %v3899 = vpop.f32.mrb[0].mxu0
      %v3900 = vadd.f32 %v3435, %v3899
      %v3901 = vpop.f32.mrb[0].mxu0
      %3902 = vmatprep.mubr.f32.mxu0 0.0
      %3903 = vmatmul.mubr.f32.gmra.mrb[0].mxu0 %v3619
      %v3904 = vpop.f32.mrb[0].mxu0
      %v3905 = vadd.f32 %v3440, %v3904
      %v3906 = vpop.f32.mrb[0].mxu0
      %3907 = vmatprep.mubr.f32.mxu0 0.0
      %3908 = vmatmul.mubr.f32.gmra.mrb[0].mxu0 %v3622
      %v3909 = vpop.f32.mrb[0].mxu0
      %v3910 = vadd.f32 %v3445, %v3909
      %v3911 = vpop.f32.mrb[0].mxu0
      %3912 = vmatprep.mubr.f32.mxu0 0.0
      %3913 = vmatmul.mubr.f32.gmra.mrb[0].mxu0 %v3625
      %v3914 = vpop.f32.mrb[0].mxu0
      %v3915 = vadd.f32 %v3450, %v3914
      %v3916 = vpop.f32.mrb[0].mxu0
      %3917 = vmatprep.mubr.f32.mxu0 0.0
      %3918 = vmatmul.mubr.f32.gmra.mrb[0].mxu0 %v3628
      %v3919 = vpop.f32.mrb[0].mxu0
      %v3920 = vadd.f32 %v3455, %v3919
      %v3921 = vpop.f32.mrb[0].mxu0
      %3922 = vmatprep.mubr.f32.mxu0 0.0
      %3923 = vmatmul.mubr.f32.gmra.mrb[0].mxu0 %v3631
      %v3924 = vpop.f32.mrb[0].mxu0
      %v3925 = vadd.f32 %v3460, %v3924
      %v3926 = vpop.f32.mrb[0].mxu0
      %3927 = vmatprep.mubr.f32.mxu0 0.0
      %3928 = vmatmul.mubr.f32.gmra.mrb[0].mxu0 %v3634
      %v3929 = vpop.f32.mrb[0].mxu0
      %v3930 = vadd.f32 %v3465, %v3929
      %v3931 = vpop.f32.mrb[0].mxu0
      %3932 = vmatprep.mubr.f32.mxu0 0.0
      %3933 = vmatmul.mubr.f32.gmra.mrb[0].mxu0 %v3637
      %v3934 = vpop.f32.mrb[0].mxu0
      %v3935 = vadd.f32 %v3470, %v3934
      %v3936 = vpop.f32.mrb[0].mxu0
      %3937 = vmatprep.mubr.f32.mxu0 0.0
      %3938 = vmatmul.mubr.f32.gmra.mrb[0].mxu0 %v3640
      %v3939 = vpop.f32.mrb[0].mxu0
      %v3940 = vadd.f32 %v3475, %v3939
      %v3941 = vpop.f32.mrb[0].mxu0
      %3942 = vmatprep.mubr.f32.mxu0 0.0
      %3943 = vmatmul.mubr.f32.gmra.mrb[0].mxu0 %v3643
      %v3944 = vpop.f32.mrb[0].mxu0
      %v3945 = vadd.f32 %v3480, %v3944
      %v3946 = vpop.f32.mrb[0].mxu0
      %3947 = vmatprep.mubr.f32.mxu0 0.0
      %3948 = vmatmul.mubr.f32.gmra.mrb[0].mxu0 %v3646
      %v3949 = vpop.f32.mrb[0].mxu0
      %v3950 = vadd.f32 %v3485, %v3949
      %v3951 = vpop.f32.mrb[0].mxu0
      %3952 = vmatprep.mubr.f32.mxu0 0.0
      %3953 = vmatmul.mubr.f32.gmra.mrb[0].mxu0 %v3649
      %v3954 = vpop.f32.mrb[0].mxu0
      %v3955 = vadd.f32 %v3490, %v3954
      %v3956 = vpop.f32.mrb[0].mxu0
      %3957 = vmatprep.mubr.f32.mxu0 0.0
      %3958 = vmatmul.mubr.f32.gmra.mrb[0].mxu0 %v3652
      %v3959 = vpop.f32.mrb[0].mxu0
      %v3960 = vadd.f32 %v3495, %v3959
      %v3961 = vpop.f32.mrb[0].mxu0
      %3962 = vmatprep.mubr.f32.mxu0 0.0
      %3963 = vmatmul.mubr.f32.gmra.mrb[0].mxu0 %v3655
      %v3964 = vpop.f32.mrb[0].mxu0
      %v3965 = vadd.f32 %v3500, %v3964
      %v3966 = vpop.f32.mrb[0].mxu0
      %3967 = vmatprep.mubr.f32.mxu0 0.0
      %3968 = vmatmul.mubr.f32.gmra.mrb[0].mxu0 %v3658
      %v3969 = vpop.f32.mrb[0].mxu0
      %v3970 = vadd.f32 %v3505, %v3969
      %v3971 = vpop.f32.mrb[0].mxu0
      %3972 = vmatprep.mubr.f32.mxu0 0.0
      %3973 = vmatmul.mubr.f32.gmra.mrb[0].mxu0 %v3661
      %v3974 = vpop.f32.mrb[0].mxu0
      %v3975 = vadd.f32 %v3510, %v3974
      %v3976 = vpop.f32.mrb[0].mxu0
      %3977 = vdwg.mxu0
      %v3978 = vld [vmem:[%s15] sm:$0xff]
      %v3979 = vld [vmem:[%s15 + $0x8] sm:$0xff]
      %v3980 = vld [vmem:[%s15 + $0x10] sm:$0xff]
      %v3981 = vld [vmem:[%s15 + $0x18] sm:$0xff]
      %v3982 = vld [vmem:[%s15 + $0x20] sm:$0xff]
      %v3983 = vld [vmem:[%s15 + $0x28] sm:$0xff]
      %v3984 = vld [vmem:[%s15 + $0x30] sm:$0xff]
      %v3985 = vld [vmem:[%s15 + $0x38] sm:$0xff]
      %v3986 = vld [vmem:[%s15 + $0x40] sm:$0xff]
      %v3987 = vld [vmem:[%s15 + $0x48] sm:$0xff]
      %v3988 = vld [vmem:[%s15 + $0x50] sm:$0xff]
      %v3989 = vld [vmem:[%s15 + $0x58] sm:$0xff]
      %v3990 = vld [vmem:[%s15 + $0x60] sm:$0xff]
      %v3991 = vld [vmem:[%s15 + $0x68] sm:$0xff]
      %v3992 = vld [vmem:[%s15 + $0x70] sm:$0xff]
      %v3993 = vld [vmem:[%s15 + $0x78] sm:$0xff]
      %v3994 = vld [vmem:[%s15 + $0x80] sm:$0xff]
      %v3995 = vld [vmem:[%s15 + $0x88] sm:$0xff]
      %v3996 = vld [vmem:[%s15 + $0x90] sm:$0xff]
      %v3997 = vld [vmem:[%s15 + $0x98] sm:$0xff]
      %v3998 = vld [vmem:[%s15 + $0xa0] sm:$0xff]
      %v3999 = vld [vmem:[%s15 + $0xa8] sm:$0xff]
      %v4000 = vld [vmem:[%s15 + $0xb0] sm:$0xff]
      %v4001 = vld [vmem:[%s15 + $0xb8] sm:$0xff]
      %v4002 = vld [vmem:[%s15 + $0xc0] sm:$0xff]
      %v4003 = vld [vmem:[%s15 + $0xc8] sm:$0xff]
      %v4004 = vld [vmem:[%s15 + $0xd0] sm:$0xff]
      %v4005 = vld [vmem:[%s15 + $0xd8] sm:$0xff]
      %v4006 = vld [vmem:[%s15 + $0xe0] sm:$0xff]
      %v4007 = vld [vmem:[%s15 + $0xe8] sm:$0xff]
      %v4008 = vld [vmem:[%s15 + $0xf0] sm:$0xff]
      %v4009 = vld [vmem:[%s15 + $0xf8] sm:$0xff]
      %v4010 = vld [vmem:[%s15 + $0x100] sm:$0xff]
      %v4011 = vld [vmem:[%s15 + $0x108] sm:$0xff]
      %v4012 = vld [vmem:[%s15 + $0x110] sm:$0xff]
      %v4013 = vld [vmem:[%s15 + $0x118] sm:$0xff]
      %v4014 = vld [vmem:[%s15 + $0x120] sm:$0xff]
      %v4015 = vld [vmem:[%s15 + $0x128] sm:$0xff]
      %v4016 = vld [vmem:[%s15 + $0x130] sm:$0xff]
      %v4017 = vld [vmem:[%s15 + $0x138] sm:$0xff]
      %v4018 = vld [vmem:[%s15 + $0x140] sm:$0xff]
      %v4019 = vld [vmem:[%s15 + $0x148] sm:$0xff]
      %v4020 = vld [vmem:[%s15 + $0x150] sm:$0xff]
      %v4021 = vld [vmem:[%s15 + $0x158] sm:$0xff]
      %v4022 = vld [vmem:[%s15 + $0x160] sm:$0xff]
      %v4023 = vld [vmem:[%s15 + $0x168] sm:$0xff]
      %v4024 = vld [vmem:[%s15 + $0x170] sm:$0xff]
      %v4025 = vld [vmem:[%s15 + $0x178] sm:$0xff]
      %v4026 = vld [vmem:[%s15 + $0x180] sm:$0xff]
      %v4027 = vld [vmem:[%s15 + $0x188] sm:$0xff]
      %v4028 = vadd.f32 %v3730, %v3978
      %v4029 = vadd.f32 %v3735, %v3979
      %v4030 = vadd.f32 %v3740, %v3980
      %v4031 = vadd.f32 %v3745, %v3981
      %v4032 = vadd.f32 %v3750, %v3982
      %v4033 = vadd.f32 %v3755, %v3983
      %v4034 = vadd.f32 %v3760, %v3984
      %v4035 = vadd.f32 %v3765, %v3985
      %v4036 = vadd.f32 %v3770, %v3986
      %v4037 = vadd.f32 %v3775, %v3987
      %v4038 = vadd.f32 %v3780, %v3988
      %v4039 = vadd.f32 %v3785, %v3989
      %v4040 = vadd.f32 %v3790, %v3990
      %v4041 = vadd.f32 %v3795, %v3991
      %v4042 = vadd.f32 %v3800, %v3992
      %v4043 = vadd.f32 %v3805, %v3993
      %v4044 = vadd.f32 %v3810, %v3994
      %v4045 = vadd.f32 %v3815, %v3995
      %v4046 = vadd.f32 %v3820, %v3996
      %v4047 = vadd.f32 %v3825, %v3997
      %v4048 = vadd.f32 %v3830, %v3998
      %v4049 = vadd.f32 %v3835, %v3999
      %v4050 = vadd.f32 %v3840, %v4000
      %v4051 = vadd.f32 %v3845, %v4001
      %v4052 = vadd.f32 %v3850, %v4002
      %v4053 = vadd.f32 %v3855, %v4003
      %v4054 = vadd.f32 %v3860, %v4004
      %v4055 = vadd.f32 %v3865, %v4005
      %v4056 = vadd.f32 %v3870, %v4006
      %v4057 = vadd.f32 %v3875, %v4007
      %v4058 = vadd.f32 %v3880, %v4008
      %v4059 = vadd.f32 %v3885, %v4009
      %v4060 = vadd.f32 %v3890, %v4010
      %v4061 = vadd.f32 %v3895, %v4011
      %v4062 = vadd.f32 %v3900, %v4012
      %v4063 = vadd.f32 %v3905, %v4013
      %v4064 = vadd.f32 %v3910, %v4014
      %v4065 = vadd.f32 %v3915, %v4015
      %v4066 = vadd.f32 %v3920, %v4016
      %v4067 = vadd.f32 %v3925, %v4017
      %v4068 = vadd.f32 %v3930, %v4018
      %v4069 = vadd.f32 %v3935, %v4019
      %v4070 = vadd.f32 %v3940, %v4020
      %v4071 = vadd.f32 %v3945, %v4021
      %v4072 = vadd.f32 %v3950, %v4022
      %v4073 = vadd.f32 %v3955, %v4023
      %v4074 = vadd.f32 %v3960, %v4024
      %v4075 = vadd.f32 %v3965, %v4025
      %v4076 = vadd.f32 %v3970, %v4026
      %v4077 = vadd.f32 %v3975, %v4027
      %v4078 = vmax.f32 %v4028, 0.0
      %v4079 = vmax.f32 %v4029, 0.0
      %v4080 = vmax.f32 %v4030, 0.0
      %v4081 = vmax.f32 %v4031, 0.0
      %v4082 = vmax.f32 %v4032, 0.0
      %v4083 = vmax.f32 %v4033, 0.0
      %v4084 = vmax.f32 %v4034, 0.0
      %v4085 = vmax.f32 %v4035, 0.0
      %v4086 = vmax.f32 %v4036, 0.0
      %v4087 = vmax.f32 %v4037, 0.0
      %v4088 = vmax.f32 %v4038, 0.0
      %v4089 = vmax.f32 %v4039, 0.0
      %v4090 = vmax.f32 %v4040, 0.0
      %v4091 = vmax.f32 %v4041, 0.0
      %v4092 = vmax.f32 %v4042, 0.0
      %v4093 = vmax.f32 %v4043, 0.0
      %v4094 = vmax.f32 %v4044, 0.0
      %v4095 = vmax.f32 %v4045, 0.0
      %v4096 = vmax.f32 %v4046, 0.0
      %v4097 = vmax.f32 %v4047, 0.0
      %v4098 = vmax.f32 %v4048, 0.0
      %v4099 = vmax.f32 %v4049, 0.0
      %v4100 = vmax.f32 %v4050, 0.0
      %v4101 = vmax.f32 %v4051, 0.0
      %v4102 = vmax.f32 %v4052, 0.0
      %v4103 = vmax.f32 %v4053, 0.0
      %v4104 = vmax.f32 %v4054, 0.0
      %v4105 = vmax.f32 %v4055, 0.0
      %v4106 = vmax.f32 %v4056, 0.0
      %v4107 = vmax.f32 %v4057, 0.0
      %v4108 = vmax.f32 %v4058, 0.0
      %v4109 = vmax.f32 %v4059, 0.0
      %v4110 = vmax.f32 %v4060, 0.0
      %v4111 = vmax.f32 %v4061, 0.0
      %v4112 = vmax.f32 %v4062, 0.0
      %v4113 = vmax.f32 %v4063, 0.0
      %v4114 = vmax.f32 %v4064, 0.0
      %v4115 = vmax.f32 %v4065, 0.0
      %v4116 = vmax.f32 %v4066, 0.0
      %v4117 = vmax.f32 %v4067, 0.0
      %v4118 = vmax.f32 %v4068, 0.0
      %v4119 = vmax.f32 %v4069, 0.0
      %v4120 = vmax.f32 %v4070, 0.0
      %v4121 = vmax.f32 %v4071, 0.0
      %v4122 = vmax.f32 %v4072, 0.0
      %v4123 = vmax.f32 %v4073, 0.0
      %v4124 = vmax.f32 %v4074, 0.0
      %v4125 = vmax.f32 %v4075, 0.0
      %v4126 = vmax.f32 %v4076, 0.0
      %v4127 = vmax.f32 %v4077, 0.0
      %v4128 = vld [vmem:[%s16] sm:$0xff]
      %v4129 = vld [vmem:[%s16 + $0x8] sm:$0xff]
      %v4130 = vld [vmem:[%s16 + $0x10] sm:$0xff]
      %v4131 = vld [vmem:[%s16 + $0x18] sm:$0xff]
      %v4132 = vld [vmem:[%s16 + $0x20] sm:$0xff]
      %v4133 = vld [vmem:[%s16 + $0x28] sm:$0xff]
      %v4134 = vld [vmem:[%s16 + $0x30] sm:$0xff]
      %v4135 = vld [vmem:[%s16 + $0x38] sm:$0xff]
      %v4136 = vld [vmem:[%s16 + $0x40] sm:$0xff]
      %v4137 = vld [vmem:[%s16 + $0x48] sm:$0xff]
      %v4138 = vld [vmem:[%s16 + $0x50] sm:$0xff]
      %v4139 = vld [vmem:[%s16 + $0x58] sm:$0xff]
      %v4140 = vld [vmem:[%s16 + $0x60] sm:$0xff]
      %v4141 = vld [vmem:[%s16 + $0x68] sm:$0xff]
      %v4142 = vld [vmem:[%s16 + $0x70] sm:$0xff]
      %v4143 = vld [vmem:[%s16 + $0x78] sm:$0xff]
      %v4144 = vld [vmem:[%s16 + $0x80] sm:$0xff]
      %v4145 = vld [vmem:[%s16 + $0x88] sm:$0xff]
      %v4146 = vld [vmem:[%s16 + $0x90] sm:$0xff]
      %v4147 = vld [vmem:[%s16 + $0x98] sm:$0xff]
      %v4148 = vld [vmem:[%s16 + $0xa0] sm:$0xff]
      %v4149 = vld [vmem:[%s16 + $0xa8] sm:$0xff]
      %v4150 = vld [vmem:[%s16 + $0xb0] sm:$0xff]
      %v4151 = vld [vmem:[%s16 + $0xb8] sm:$0xff]
      %v4152 = vld [vmem:[%s16 + $0xc0] sm:$0xff]
      %v4153 = vld [vmem:[%s16 + $0xc8] sm:$0xff]
      %v4154 = vld [vmem:[%s16 + $0xd0] sm:$0xff]
      %v4155 = vld [vmem:[%s16 + $0xd8] sm:$0xff]
      %v4156 = vld [vmem:[%s16 + $0xe0] sm:$0xff]
      %v4157 = vld [vmem:[%s16 + $0xe8] sm:$0xff]
      %v4158 = vld [vmem:[%s16 + $0xf0] sm:$0xff]
      %v4159 = vld [vmem:[%s16 + $0xf8] sm:$0xff]
      %v4160 = vld [vmem:[%s16 + $0x100] sm:$0xff]
      %v4161 = vld [vmem:[%s16 + $0x108] sm:$0xff]
      %v4162 = vld [vmem:[%s16 + $0x110] sm:$0xff]
      %v4163 = vld [vmem:[%s16 + $0x118] sm:$0xff]
      %v4164 = vld [vmem:[%s16 + $0x120] sm:$0xff]
      %v4165 = vld [vmem:[%s16 + $0x128] sm:$0xff]
      %v4166 = vld [vmem:[%s16 + $0x130] sm:$0xff]
      %v4167 = vld [vmem:[%s16 + $0x138] sm:$0xff]
      %v4168 = vld [vmem:[%s16 + $0x140] sm:$0xff]
      %v4169 = vld [vmem:[%s16 + $0x148] sm:$0xff]
      %v4170 = vld [vmem:[%s16 + $0x150] sm:$0xff]
      %v4171 = vld [vmem:[%s16 + $0x158] sm:$0xff]
      %v4172 = vld [vmem:[%s16 + $0x160] sm:$0xff]
      %v4173 = vld [vmem:[%s16 + $0x168] sm:$0xff]
      %v4174 = vld [vmem:[%s16 + $0x170] sm:$0xff]
      %v4175 = vld [vmem:[%s16 + $0x178] sm:$0xff]
      %v4176 = vld [vmem:[%s16 + $0x180] sm:$0xff]
      %v4177 = vld [vmem:[%s16 + $0x188] sm:$0xff]
      %v4178 = vld [vmem:[%s16 + $0x190] sm:$0xff]
      %v4179 = vld [vmem:[%s16 + $0x198] sm:$0xff]
      %v4180 = vld [vmem:[%s16 + $0x1a0] sm:$0xff]
      %v4181 = vld [vmem:[%s16 + $0x1a8] sm:$0xff]
      %v4182 = vld [vmem:[%s16 + $0x1b0] sm:$0xff]
      %v4183 = vld [vmem:[%s16 + $0x1b8] sm:$0xff]
      %v4184 = vld [vmem:[%s16 + $0x1c0] sm:$0xff]
      %v4185 = vld [vmem:[%s16 + $0x1c8] sm:$0xff]
      %v4186 = vld [vmem:[%s16 + $0x1d0] sm:$0xff]
      %v4187 = vld [vmem:[%s16 + $0x1d8] sm:$0xff]
      %v4188 = vld [vmem:[%s16 + $0x1e0] sm:$0xff]
      %v4189 = vld [vmem:[%s16 + $0x1e8] sm:$0xff]
      %v4190 = vld [vmem:[%s16 + $0x1f0] sm:$0xff]
      %v4191 = vld [vmem:[%s16 + $0x1f8] sm:$0xff]
      %v4192 = vld [vmem:[%s16 + $0x200] sm:$0xff]
      %v4193 = vld [vmem:[%s16 + $0x208] sm:$0xff]
      %v4194 = vld [vmem:[%s16 + $0x210] sm:$0xff]
      %v4195 = vld [vmem:[%s16 + $0x218] sm:$0xff]
      %v4196 = vld [vmem:[%s16 + $0x220] sm:$0xff]
      %v4197 = vld [vmem:[%s16 + $0x228] sm:$0xff]
      %v4198 = vld [vmem:[%s16 + $0x230] sm:$0xff]
      %v4199 = vld [vmem:[%s16 + $0x238] sm:$0xff]
      %v4200 = vld [vmem:[%s16 + $0x240] sm:$0xff]
      %v4201 = vld [vmem:[%s16 + $0x248] sm:$0xff]
      %v4202 = vld [vmem:[%s16 + $0x250] sm:$0xff]
      %v4203 = vld [vmem:[%s16 + $0x258] sm:$0xff]
      %v4204 = vld [vmem:[%s16 + $0x260] sm:$0xff]
      %v4205 = vld [vmem:[%s16 + $0x268] sm:$0xff]
      %v4206 = vld [vmem:[%s16 + $0x270] sm:$0xff]
      %v4207 = vld [vmem:[%s16 + $0x278] sm:$0xff]
      %v4208 = vld [vmem:[%s16 + $0x280] sm:$0xff]
      %v4209 = vld [vmem:[%s16 + $0x288] sm:$0xff]
      %v4210 = vld [vmem:[%s16 + $0x290] sm:$0xff]
      %v4211 = vld [vmem:[%s16 + $0x298] sm:$0xff]
      %v4212 = vld [vmem:[%s16 + $0x2a0] sm:$0xff]
      %v4213 = vld [vmem:[%s16 + $0x2a8] sm:$0xff]
      %v4214 = vld [vmem:[%s16 + $0x2b0] sm:$0xff]
      %v4215 = vld [vmem:[%s16 + $0x2b8] sm:$0xff]
      %v4216 = vld [vmem:[%s16 + $0x2c0] sm:$0xff]
      %v4217 = vld [vmem:[%s16 + $0x2c8] sm:$0xff]
      %v4218 = vld [vmem:[%s16 + $0x2d0] sm:$0xff]
      %v4219 = vld [vmem:[%s16 + $0x2d8] sm:$0xff]
      %v4220 = vld [vmem:[%s16 + $0x2e0] sm:$0xff]
      %v4221 = vld [vmem:[%s16 + $0x2e8] sm:$0xff]
      %v4222 = vld [vmem:[%s16 + $0x2f0] sm:$0xff]
      %v4223 = vld [vmem:[%s16 + $0x2f8] sm:$0xff]
      %v4224 = vld [vmem:[%s16 + $0x300] sm:$0xff]
      %v4225 = vld [vmem:[%s16 + $0x308] sm:$0xff]
      %v4226 = vld [vmem:[%s16 + $0x310] sm:$0xff]
      %v4227 = vld [vmem:[%s16 + $0x318] sm:$0xff]
      %v4228 = vld [vmem:[%s16 + $0x320] sm:$0xff]
      %v4229 = vld [vmem:[%s16 + $0x328] sm:$0xff]
      %v4230 = vld [vmem:[%s16 + $0x330] sm:$0xff]
      %v4231 = vld [vmem:[%s16 + $0x338] sm:$0xff]
      %v4232 = vld [vmem:[%s16 + $0x340] sm:$0xff]
      %v4233 = vld [vmem:[%s16 + $0x348] sm:$0xff]
      %v4234 = vld [vmem:[%s16 + $0x350] sm:$0xff]
      %v4235 = vld [vmem:[%s16 + $0x358] sm:$0xff]
      %v4236 = vld [vmem:[%s16 + $0x360] sm:$0xff]
      %v4237 = vld [vmem:[%s16 + $0x368] sm:$0xff]
      %v4238 = vld [vmem:[%s16 + $0x370] sm:$0xff]
      %v4239 = vld [vmem:[%s16 + $0x378] sm:$0xff]
      %v4240 = vld [vmem:[%s16 + $0x380] sm:$0xff]
      %v4241 = vld [vmem:[%s16 + $0x388] sm:$0xff]
      %v4242 = vld [vmem:[%s16 + $0x390] sm:$0xff]
      %v4243 = vld [vmem:[%s16 + $0x398] sm:$0xff]
      %v4244 = vld [vmem:[%s16 + $0x3a0] sm:$0xff]
      %v4245 = vld [vmem:[%s16 + $0x3a8] sm:$0xff]
      %v4246 = vld [vmem:[%s16 + $0x3b0] sm:$0xff]
      %v4247 = vld [vmem:[%s16 + $0x3b8] sm:$0xff]
      %v4248 = vld [vmem:[%s16 + $0x3c0] sm:$0xff]
      %v4249 = vld [vmem:[%s16 + $0x3c8] sm:$0xff]
      %v4250 = vld [vmem:[%s16 + $0x3d0] sm:$0xff]
      %v4251 = vld [vmem:[%s16 + $0x3d8] sm:$0xff]
      %v4252 = vld [vmem:[%s16 + $0x3e0] sm:$0xff]
      %v4253 = vld [vmem:[%s16 + $0x3e8] sm:$0xff]
      %v4254 = vld [vmem:[%s16 + $0x3f0] sm:$0xff]
      %v4255 = vld [vmem:[%s16 + $0x3f8] sm:$0xff]
      %v4256 = vld [vmem:[%s16 + $0x400] sm:$0xff]
      %v4257 = vld [vmem:[%s16 + $0x408] sm:$0xff]
      %v4258 = vld [vmem:[%s16 + $0x410] sm:$0xff]
      %v4259 = vld [vmem:[%s16 + $0x418] sm:$0xff]
      %v4260 = vld [vmem:[%s16 + $0x420] sm:$0xff]
      %v4261 = vld [vmem:[%s16 + $0x428] sm:$0xff]
      %v4262 = vld [vmem:[%s16 + $0x430] sm:$0xff]
      %v4263 = vld [vmem:[%s16 + $0x438] sm:$0xff]
      %v4264 = vld [vmem:[%s16 + $0x440] sm:$0xff]
      %v4265 = vld [vmem:[%s16 + $0x448] sm:$0xff]
      %v4266 = vld [vmem:[%s16 + $0x450] sm:$0xff]
      %v4267 = vld [vmem:[%s16 + $0x458] sm:$0xff]
      %v4268 = vld [vmem:[%s16 + $0x460] sm:$0xff]
      %v4269 = vld [vmem:[%s16 + $0x468] sm:$0xff]
      %v4270 = vld [vmem:[%s16 + $0x470] sm:$0xff]
      %v4271 = vld [vmem:[%s16 + $0x478] sm:$0xff]
      %v4272 = vld [vmem:[%s16 + $0x480] sm:$0xff]
      %v4273 = vld [vmem:[%s16 + $0x488] sm:$0xff]
      %v4274 = vld [vmem:[%s16 + $0x490] sm:$0xff]
      %v4275 = vld [vmem:[%s16 + $0x498] sm:$0xff]
      %v4276 = vld [vmem:[%s16 + $0x4a0] sm:$0xf]
      %v4277 = vld [vmem:[%s16 + $0x4a8] sm:$0xf]
      %v4278 = vld [vmem:[%s16 + $0x4b0] sm:$0xf]
      %v4279 = vld [vmem:[%s16 + $0x4b8] sm:$0xf]
      %v4280 = vld [vmem:[%s17] sm:$0xff]
      %v4281 = vld [vmem:[%s17 + $0x8] sm:$0xff]
      %v4282 = vld [vmem:[%s17 + $0x10] sm:$0xff]
      %v4283 = vld [vmem:[%s17 + $0x18] sm:$0xff]
      %v4284 = vld [vmem:[%s17 + $0x20] sm:$0xff]
      %v4285 = vld [vmem:[%s17 + $0x28] sm:$0xff]
      %v4286 = vld [vmem:[%s17 + $0x30] sm:$0xff]
      %v4287 = vld [vmem:[%s17 + $0x38] sm:$0xff]
      %v4288 = vld [vmem:[%s17 + $0x40] sm:$0xff]
      %v4289 = vld [vmem:[%s17 + $0x48] sm:$0xff]
      %v4290 = vld [vmem:[%s17 + $0x50] sm:$0xff]
      %v4291 = vld [vmem:[%s17 + $0x58] sm:$0xff]
      %v4292 = vld [vmem:[%s17 + $0x60] sm:$0xff]
      %v4293 = vld [vmem:[%s17 + $0x68] sm:$0xff]
      %v4294 = vld [vmem:[%s17 + $0x70] sm:$0xff]
      %v4295 = vld [vmem:[%s17 + $0x78] sm:$0xff]
      %v4296 = vld [vmem:[%s17 + $0x80] sm:$0xff]
      %v4297 = vld [vmem:[%s17 + $0x88] sm:$0xff]
      %v4298 = vld [vmem:[%s17 + $0x90] sm:$0xff]
      %v4299 = vld [vmem:[%s17 + $0x98] sm:$0xff]
      %v4300 = vld [vmem:[%s17 + $0xa0] sm:$0xff]
      %v4301 = vld [vmem:[%s17 + $0xa8] sm:$0xff]
      %v4302 = vld [vmem:[%s17 + $0xb0] sm:$0xff]
      %v4303 = vld [vmem:[%s17 + $0xb8] sm:$0xff]
      %v4304 = vld [vmem:[%s17 + $0xc0] sm:$0xff]
      %v4305 = vld [vmem:[%s17 + $0xc8] sm:$0xff]
      %v4306 = vld [vmem:[%s17 + $0xd0] sm:$0xff]
      %v4307 = vld [vmem:[%s17 + $0xd8] sm:$0xff]
      %v4308 = vld [vmem:[%s17 + $0xe0] sm:$0xff]
      %v4309 = vld [vmem:[%s17 + $0xe8] sm:$0xff]
      %v4310 = vld [vmem:[%s17 + $0xf0] sm:$0xff]
      %v4311 = vld [vmem:[%s17 + $0xf8] sm:$0xff]
      %v4312 = vld [vmem:[%s17 + $0x100] sm:$0xff]
      %v4313 = vld [vmem:[%s17 + $0x108] sm:$0xff]
      %v4314 = vld [vmem:[%s17 + $0x110] sm:$0xff]
      %v4315 = vld [vmem:[%s17 + $0x118] sm:$0xff]
      %v4316 = vld [vmem:[%s17 + $0x120] sm:$0xff]
      %v4317 = vld [vmem:[%s17 + $0x128] sm:$0xf]
      %v4319 = vsel %vm1698, %v4131, 0
      %v4322 = vsel %vm1698, %v4135, 0
      %v4325 = vsel %vm1698, %v4139, 0
      %v4328 = vsel %vm1698, %v4143, 0
      %v4331 = vsel %vm1698, %v4147, 0
      %v4334 = vsel %vm1698, %v4151, 0
      %v4337 = vsel %vm1698, %v4155, 0
      %v4340 = vsel %vm1698, %v4159, 0
      %v4343 = vsel %vm1698, %v4163, 0
      %v4346 = vsel %vm1698, %v4167, 0
      %v4349 = vsel %vm1698, %v4171, 0
      %v4352 = vsel %vm1698, %v4175, 0
      %v4355 = vsel %vm1698, %v4179, 0
      %v4358 = vsel %vm1698, %v4183, 0
      %v4361 = vsel %vm1698, %v4187, 0
      %v4364 = vsel %vm1698, %v4191, 0
      %v4367 = vsel %vm1698, %v4195, 0
      %v4370 = vsel %vm1698, %v4199, 0
      %v4373 = vsel %vm1698, %v4203, 0
      %v4376 = vsel %vm1698, %v4207, 0
      %v4379 = vsel %vm1698, %v4211, 0
      %v4382 = vsel %vm1698, %v4215, 0
      %v4385 = vsel %vm1698, %v4219, 0
      %v4388 = vsel %vm1698, %v4223, 0
      %v4391 = vsel %vm1698, %v4227, 0
      %v4394 = vsel %vm1698, %v4231, 0
      %v4397 = vsel %vm1698, %v4235, 0
      %v4400 = vsel %vm1698, %v4239, 0
      %v4403 = vsel %vm1698, %v4243, 0
      %v4406 = vsel %vm1698, %v4247, 0
      %v4409 = vsel %vm1698, %v4251, 0
      %v4412 = vsel %vm1698, %v4255, 0
      %v4415 = vsel %vm1698, %v4259, 0
      %v4418 = vsel %vm1698, %v4263, 0
      %v4421 = vsel %vm1698, %v4267, 0
      %v4424 = vsel %vm1698, %v4271, 0
      %v4427 = vsel %vm1698, %v4275, 0
      %v4430 = vsel %vm1698, %v4279, 0
      %4432 = vmatprep.subr.mxu0 0.0
      %4433 = vmatpush1.msra.mxu0 %v4078
      %4434 = vmatprep.subr.mxu0 0.0
      %4435 = vmatpush1.msra.mxu0 %v4079
      %4436 = vmatprep.subr.mxu0 0.0
      %4437 = vmatpush1.msra.mxu0 %v4080
      %4438 = vmatprep.subr.mxu0 0.0
      %4439 = vmatpush1.msra.mxu0 %v4081
      %4440 = vmatprep.subr.mxu0 0.0
      %4441 = vmatpush1.msra.mxu0 %v4082
      %4442 = vmatprep.subr.mxu0 0.0
      %4443 = vmatpush1.msra.mxu0 %v4083
      %4444 = vmatprep.subr.mxu0 0.0
      %4445 = vmatpush1.msra.mxu0 %v4084
      %4446 = vmatprep.subr.mxu0 0.0
      %4447 = vmatpush1.msra.mxu0 %v4085
      %4448 = vmatprep.subr.mxu0 0.0
      %4449 = vmatpush1.msra.mxu0 %v4086
      %4450 = vmatprep.subr.mxu0 0.0
      %4451 = vmatpush1.msra.mxu0 %v4087
      %4452 = vmatprep.subr.mxu0 0.0
      %4453 = vmatpush1.msra.mxu0 %v4088
      %4454 = vmatprep.subr.mxu0 0.0
      %4455 = vmatpush1.msra.mxu0 %v4089
      %4456 = vmatprep.subr.mxu0 0.0
      %4457 = vmatpush1.msra.mxu0 %v4090
      %4458 = vmatprep.subr.mxu0 0.0
      %4459 = vmatpush1.msra.mxu0 %v4091
      %4460 = vmatprep.subr.mxu0 0.0
      %4461 = vmatpush1.msra.mxu0 %v4092
      %4462 = vmatprep.subr.mxu0 0.0
      %4463 = vmatpush1.msra.mxu0 %v4093
      %4464 = vmatprep.subr.mxu0 0.0
      %4465 = vmatpush1.msra.mxu0 %v4094
      %4466 = vmatprep.subr.mxu0 0.0
      %4467 = vmatpush1.msra.mxu0 %v4095
      %4468 = vmatprep.subr.mxu0 0.0
      %4469 = vmatpush1.msra.mxu0 %v4096
      %4470 = vmatprep.subr.mxu0 0.0
      %4471 = vmatpush1.msra.mxu0 %v4097
      %4472 = vmatprep.subr.mxu0 0.0
      %4473 = vmatpush1.msra.mxu0 %v4098
      %4474 = vmatprep.subr.mxu0 0.0
      %4475 = vmatpush1.msra.mxu0 %v4099
      %4476 = vmatprep.subr.mxu0 0.0
      %4477 = vmatpush1.msra.mxu0 %v4100
      %4478 = vmatprep.subr.mxu0 0.0
      %4479 = vmatpush1.msra.mxu0 %v4101
      %4480 = vmatprep.subr.mxu0 0.0
      %4481 = vmatpush1.msra.mxu0 %v4102
      %4482 = vmatprep.subr.mxu0 0.0
      %4483 = vmatpush1.msra.mxu0 %v4103
      %4484 = vmatprep.subr.mxu0 0.0
      %4485 = vmatpush1.msra.mxu0 %v4104
      %4486 = vmatprep.subr.mxu0 0.0
      %4487 = vmatpush1.msra.mxu0 %v4105
      %4488 = vmatprep.subr.mxu0 0.0
      %4489 = vmatpush1.msra.mxu0 %v4106
      %4490 = vmatprep.subr.mxu0 0.0
      %4491 = vmatpush1.msra.mxu0 %v4107
      %4492 = vmatprep.subr.mxu0 0.0
      %4493 = vmatpush1.msra.mxu0 %v4108
      %4494 = vmatprep.subr.mxu0 0.0
      %4495 = vmatpush1.msra.mxu0 %v4109
      %4496 = vmatprep.mubr.f32.mxu0 %v4129
      %4497 = vmatmul.mubr.f32.gmra.mrb[0].mxu0 %v4128
      %v4498 = vpop.f32.mrb[0].mxu0
      %v4499 = vadd.f32 %v4280, %v4498
      %v4500 = vpop.f32.mrb[0].mxu0
      %4501 = vmatprep.mubr.f32.mxu0 %v4133
      %4502 = vmatmul.mubr.f32.gmra.mrb[0].mxu0 %v4132
      %v4503 = vpop.f32.mrb[0].mxu0
      %v4504 = vadd.f32 %v4281, %v4503
      %v4505 = vpop.f32.mrb[0].mxu0
      %4506 = vmatprep.mubr.f32.mxu0 %v4137
      %4507 = vmatmul.mubr.f32.gmra.mrb[0].mxu0 %v4136
      %v4508 = vpop.f32.mrb[0].mxu0
      %v4509 = vadd.f32 %v4282, %v4508
      %v4510 = vpop.f32.mrb[0].mxu0
      %4511 = vmatprep.mubr.f32.mxu0 %v4141
      %4512 = vmatmul.mubr.f32.gmra.mrb[0].mxu0 %v4140
      %v4513 = vpop.f32.mrb[0].mxu0
      %v4514 = vadd.f32 %v4283, %v4513
      %v4515 = vpop.f32.mrb[0].mxu0
      %4516 = vmatprep.mubr.f32.mxu0 %v4145
      %4517 = vmatmul.mubr.f32.gmra.mrb[0].mxu0 %v4144
      %v4518 = vpop.f32.mrb[0].mxu0
      %v4519 = vadd.f32 %v4284, %v4518
      %v4520 = vpop.f32.mrb[0].mxu0
      %4521 = vmatprep.mubr.f32.mxu0 %v4149
      %4522 = vmatmul.mubr.f32.gmra.mrb[0].mxu0 %v4148
      %v4523 = vpop.f32.mrb[0].mxu0
      %v4524 = vadd.f32 %v4285, %v4523
      %v4525 = vpop.f32.mrb[0].mxu0
      %4526 = vmatprep.mubr.f32.mxu0 %v4153
      %4527 = vmatmul.mubr.f32.gmra.mrb[0].mxu0 %v4152
      %v4528 = vpop.f32.mrb[0].mxu0
      %v4529 = vadd.f32 %v4286, %v4528
      %v4530 = vpop.f32.mrb[0].mxu0
      %4531 = vmatprep.mubr.f32.mxu0 %v4157
      %4532 = vmatmul.mubr.f32.gmra.mrb[0].mxu0 %v4156
      %v4533 = vpop.f32.mrb[0].mxu0
      %v4534 = vadd.f32 %v4287, %v4533
      %v4535 = vpop.f32.mrb[0].mxu0
      %4536 = vmatprep.mubr.f32.mxu0 %v4161
      %4537 = vmatmul.mubr.f32.gmra.mrb[0].mxu0 %v4160
      %v4538 = vpop.f32.mrb[0].mxu0
      %v4539 = vadd.f32 %v4288, %v4538
      %v4540 = vpop.f32.mrb[0].mxu0
      %4541 = vmatprep.mubr.f32.mxu0 %v4165
      %4542 = vmatmul.mubr.f32.gmra.mrb[0].mxu0 %v4164
      %v4543 = vpop.f32.mrb[0].mxu0
      %v4544 = vadd.f32 %v4289, %v4543
      %v4545 = vpop.f32.mrb[0].mxu0
      %4546 = vmatprep.mubr.f32.mxu0 %v4169
      %4547 = vmatmul.mubr.f32.gmra.mrb[0].mxu0 %v4168
      %v4548 = vpop.f32.mrb[0].mxu0
      %v4549 = vadd.f32 %v4290, %v4548
      %v4550 = vpop.f32.mrb[0].mxu0
      %4551 = vmatprep.mubr.f32.mxu0 %v4173
      %4552 = vmatmul.mubr.f32.gmra.mrb[0].mxu0 %v4172
      %v4553 = vpop.f32.mrb[0].mxu0
      %v4554 = vadd.f32 %v4291, %v4553
      %v4555 = vpop.f32.mrb[0].mxu0
      %4556 = vmatprep.mubr.f32.mxu0 %v4177
      %4557 = vmatmul.mubr.f32.gmra.mrb[0].mxu0 %v4176
      %v4558 = vpop.f32.mrb[0].mxu0
      %v4559 = vadd.f32 %v4292, %v4558
      %v4560 = vpop.f32.mrb[0].mxu0
      %4561 = vmatprep.mubr.f32.mxu0 %v4181
      %4562 = vmatmul.mubr.f32.gmra.mrb[0].mxu0 %v4180
      %v4563 = vpop.f32.mrb[0].mxu0
      %v4564 = vadd.f32 %v4293, %v4563
      %v4565 = vpop.f32.mrb[0].mxu0
      %4566 = vmatprep.mubr.f32.mxu0 %v4185
      %4567 = vmatmul.mubr.f32.gmra.mrb[0].mxu0 %v4184
      %v4568 = vpop.f32.mrb[0].mxu0
      %v4569 = vadd.f32 %v4294, %v4568
      %v4570 = vpop.f32.mrb[0].mxu0
      %4571 = vmatprep.mubr.f32.mxu0 %v4189
      %4572 = vmatmul.mubr.f32.gmra.mrb[0].mxu0 %v4188
      %v4573 = vpop.f32.mrb[0].mxu0
      %v4574 = vadd.f32 %v4295, %v4573
      %v4575 = vpop.f32.mrb[0].mxu0
      %4576 = vmatprep.mubr.f32.mxu0 %v4193
      %4577 = vmatmul.mubr.f32.gmra.mrb[0].mxu0 %v4192
      %v4578 = vpop.f32.mrb[0].mxu0
      %v4579 = vadd.f32 %v4296, %v4578
      %v4580 = vpop.f32.mrb[0].mxu0
      %4581 = vmatprep.mubr.f32.mxu0 %v4197
      %4582 = vmatmul.mubr.f32.gmra.mrb[0].mxu0 %v4196
      %v4583 = vpop.f32.mrb[0].mxu0
      %v4584 = vadd.f32 %v4297, %v4583
      %v4585 = vpop.f32.mrb[0].mxu0
      %4586 = vmatprep.mubr.f32.mxu0 %v4201
      %4587 = vmatmul.mubr.f32.gmra.mrb[0].mxu0 %v4200
      %v4588 = vpop.f32.mrb[0].mxu0
      %v4589 = vadd.f32 %v4298, %v4588
      %v4590 = vpop.f32.mrb[0].mxu0
      %4591 = vmatprep.mubr.f32.mxu0 %v4205
      %4592 = vmatmul.mubr.f32.gmra.mrb[0].mxu0 %v4204
      %v4593 = vpop.f32.mrb[0].mxu0
      %v4594 = vadd.f32 %v4299, %v4593
      %v4595 = vpop.f32.mrb[0].mxu0
      %4596 = vmatprep.mubr.f32.mxu0 %v4209
      %4597 = vmatmul.mubr.f32.gmra.mrb[0].mxu0 %v4208
      %v4598 = vpop.f32.mrb[0].mxu0
      %v4599 = vadd.f32 %v4300, %v4598
      %v4600 = vpop.f32.mrb[0].mxu0
      %4601 = vmatprep.mubr.f32.mxu0 %v4213
      %4602 = vmatmul.mubr.f32.gmra.mrb[0].mxu0 %v4212
      %v4603 = vpop.f32.mrb[0].mxu0
      %v4604 = vadd.f32 %v4301, %v4603
      %v4605 = vpop.f32.mrb[0].mxu0
      %4606 = vmatprep.mubr.f32.mxu0 %v4217
      %4607 = vmatmul.mubr.f32.gmra.mrb[0].mxu0 %v4216
      %v4608 = vpop.f32.mrb[0].mxu0
      %v4609 = vadd.f32 %v4302, %v4608
      %v4610 = vpop.f32.mrb[0].mxu0
      %4611 = vmatprep.mubr.f32.mxu0 %v4221
      %4612 = vmatmul.mubr.f32.gmra.mrb[0].mxu0 %v4220
      %v4613 = vpop.f32.mrb[0].mxu0
      %v4614 = vadd.f32 %v4303, %v4613
      %v4615 = vpop.f32.mrb[0].mxu0
      %4616 = vmatprep.mubr.f32.mxu0 %v4225
      %4617 = vmatmul.mubr.f32.gmra.mrb[0].mxu0 %v4224
      %v4618 = vpop.f32.mrb[0].mxu0
      %v4619 = vadd.f32 %v4304, %v4618
      %v4620 = vpop.f32.mrb[0].mxu0
      %4621 = vmatprep.mubr.f32.mxu0 %v4229
      %4622 = vmatmul.mubr.f32.gmra.mrb[0].mxu0 %v4228
      %v4623 = vpop.f32.mrb[0].mxu0
      %v4624 = vadd.f32 %v4305, %v4623
      %v4625 = vpop.f32.mrb[0].mxu0
      %4626 = vmatprep.mubr.f32.mxu0 %v4233
      %4627 = vmatmul.mubr.f32.gmra.mrb[0].mxu0 %v4232
      %v4628 = vpop.f32.mrb[0].mxu0
      %v4629 = vadd.f32 %v4306, %v4628
      %v4630 = vpop.f32.mrb[0].mxu0
      %4631 = vmatprep.mubr.f32.mxu0 %v4237
      %4632 = vmatmul.mubr.f32.gmra.mrb[0].mxu0 %v4236
      %v4633 = vpop.f32.mrb[0].mxu0
      %v4634 = vadd.f32 %v4307, %v4633
      %v4635 = vpop.f32.mrb[0].mxu0
      %4636 = vmatprep.mubr.f32.mxu0 %v4241
      %4637 = vmatmul.mubr.f32.gmra.mrb[0].mxu0 %v4240
      %v4638 = vpop.f32.mrb[0].mxu0
      %v4639 = vadd.f32 %v4308, %v4638
      %v4640 = vpop.f32.mrb[0].mxu0
      %4641 = vmatprep.mubr.f32.mxu0 %v4245
      %4642 = vmatmul.mubr.f32.gmra.mrb[0].mxu0 %v4244
      %v4643 = vpop.f32.mrb[0].mxu0
      %v4644 = vadd.f32 %v4309, %v4643
      %v4645 = vpop.f32.mrb[0].mxu0
      %4646 = vmatprep.mubr.f32.mxu0 %v4249
      %4647 = vmatmul.mubr.f32.gmra.mrb[0].mxu0 %v4248
      %v4648 = vpop.f32.mrb[0].mxu0
      %v4649 = vadd.f32 %v4310, %v4648
      %v4650 = vpop.f32.mrb[0].mxu0
      %4651 = vmatprep.mubr.f32.mxu0 %v4253
      %4652 = vmatmul.mubr.f32.gmra.mrb[0].mxu0 %v4252
      %v4653 = vpop.f32.mrb[0].mxu0
      %v4654 = vadd.f32 %v4311, %v4653
      %v4655 = vpop.f32.mrb[0].mxu0
      %4656 = vmatprep.mubr.f32.mxu0 %v4257
      %4657 = vmatmul.mubr.f32.gmra.mrb[0].mxu0 %v4256
      %v4658 = vpop.f32.mrb[0].mxu0
      %v4659 = vadd.f32 %v4312, %v4658
      %v4660 = vpop.f32.mrb[0].mxu0
      %4661 = vmatprep.mubr.f32.mxu0 %v4261
      %4662 = vmatmul.mubr.f32.gmra.mrb[0].mxu0 %v4260
      %v4663 = vpop.f32.mrb[0].mxu0
      %v4664 = vadd.f32 %v4313, %v4663
      %v4665 = vpop.f32.mrb[0].mxu0
      %4666 = vmatprep.mubr.f32.mxu0 %v4265
      %4667 = vmatmul.mubr.f32.gmra.mrb[0].mxu0 %v4264
      %v4668 = vpop.f32.mrb[0].mxu0
      %v4669 = vadd.f32 %v4314, %v4668
      %v4670 = vpop.f32.mrb[0].mxu0
      %4671 = vmatprep.mubr.f32.mxu0 %v4269
      %4672 = vmatmul.mubr.f32.gmra.mrb[0].mxu0 %v4268
      %v4673 = vpop.f32.mrb[0].mxu0
      %v4674 = vadd.f32 %v4315, %v4673
      %v4675 = vpop.f32.mrb[0].mxu0
      %4676 = vmatprep.mubr.f32.mxu0 %v4273
      %4677 = vmatmul.mubr.f32.gmra.mrb[0].mxu0 %v4272
      %v4678 = vpop.f32.mrb[0].mxu0
      %v4679 = vadd.f32 %v4316, %v4678
      %v4680 = vpop.f32.mrb[0].mxu0
      %4681 = vmatprep.mubr.f32.mxu0 %v4277
      %4682 = vmatmul.mubr.f32.gmra.mrb[0].mxu0 %v4276
      %v4683 = vpop.f32.mrb[0].mxu0
      %v4684 = vadd.f32 %v4317, %v4683
      %v4685 = vpop.f32.mrb[0].mxu0
      %4686 = vdwg.mxu0
      %4687 = vmatprep.subr.mxu0 0.0
      %4688 = vmatpush1.msra.mxu0 %v4110
      %4689 = vmatprep.subr.mxu0 0.0
      %4690 = vmatpush1.msra.mxu0 %v4111
      %4691 = vmatprep.subr.mxu0 0.0
      %4692 = vmatpush1.msra.mxu0 %v4112
      %4693 = vmatprep.subr.mxu0 0.0
      %4694 = vmatpush1.msra.mxu0 %v4113
      %4695 = vmatprep.subr.mxu0 0.0
      %4696 = vmatpush1.msra.mxu0 %v4114
      %4697 = vmatprep.subr.mxu0 0.0
      %4698 = vmatpush1.msra.mxu0 %v4115
      %4699 = vmatprep.subr.mxu0 0.0
      %4700 = vmatpush1.msra.mxu0 %v4116
      %4701 = vmatprep.subr.mxu0 0.0
      %4702 = vmatpush1.msra.mxu0 %v4117
      %4703 = vmatprep.subr.mxu0 0.0
      %4704 = vmatpush1.msra.mxu0 %v4118
      %4705 = vmatprep.subr.mxu0 0.0
      %4706 = vmatpush1.msra.mxu0 %v4119
      %4707 = vmatprep.subr.mxu0 0.0
      %4708 = vmatpush1.msra.mxu0 %v4120
      %4709 = vmatprep.subr.mxu0 0.0
      %4710 = vmatpush1.msra.mxu0 %v4121
      %4711 = vmatprep.subr.mxu0 0.0
      %4712 = vmatpush1.msra.mxu0 %v4122
      %4713 = vmatprep.subr.mxu0 0.0
      %4714 = vmatpush1.msra.mxu0 %v4123
      %4715 = vmatprep.subr.mxu0 0.0
      %4716 = vmatpush1.msra.mxu0 %v4124
      %4717 = vmatprep.subr.mxu0 0.0
      %4718 = vmatpush1.msra.mxu0 %v4125
      %4719 = vmatprep.subr.mxu0 0.0
      %4720 = vmatpush1.msra.mxu0 %v4126
      %4721 = vmatprep.subr.mxu0 0.0
      %4722 = vmatpush1.msra.mxu0 %v4127
      %4723 = vmatprep.subr.mxu0 0.0
      %4724 = vmatpush1.msra.mxu0 0.0
      %4725 = vmatprep.subr.mxu0 0.0
      %4726 = vmatpush1.msra.mxu0 0.0
      %4727 = vmatprep.subr.mxu0 0.0
      %4728 = vmatpush1.msra.mxu0 0.0
      %4729 = vmatprep.subr.mxu0 0.0
      %4730 = vmatpush1.msra.mxu0 0.0
      %4731 = vmatprep.subr.mxu0 0.0
      %4732 = vmatpush1.msra.mxu0 0.0
      %4733 = vmatprep.subr.mxu0 0.0
      %4734 = vmatpush1.msra.mxu0 0.0
      %4735 = vmatprep.subr.mxu0 0.0
      %4736 = vmatpush1.msra.mxu0 0.0
      %4737 = vmatprep.subr.mxu0 0.0
      %4738 = vmatpush1.msra.mxu0 0.0
      %4739 = vmatprep.subr.mxu0 0.0
      %4740 = vmatpush1.msra.mxu0 0.0
      %4741 = vmatprep.subr.mxu0 0.0
      %4742 = vmatpush1.msra.mxu0 0.0
      %4743 = vmatprep.subr.mxu0 0.0
      %4744 = vmatpush1.msra.mxu0 0.0
      %4745 = vmatprep.subr.mxu0 0.0
      %4746 = vmatpush1.msra.mxu0 0.0
      %4747 = vmatprep.subr.mxu0 0.0
      %4748 = vmatpush1.msra.mxu0 0.0
      %4749 = vmatprep.subr.mxu0 0.0
      %4750 = vmatpush1.msra.mxu0 0.0
      %4751 = vmatprep.mubr.f32.mxu0 %v4319
      %4752 = vmatmul.mubr.f32.gmra.mrb[0].mxu0 %v4130
      %v4753 = vpop.f32.mrb[0].mxu0
      %v4754 = vadd.f32 %v4499, %v4753
      %v4755 = vpop.f32.mrb[0].mxu0
      %4756 = vmatprep.mubr.f32.mxu0 %v4322
      %4757 = vmatmul.mubr.f32.gmra.mrb[0].mxu0 %v4134
      %v4758 = vpop.f32.mrb[0].mxu0
      %v4759 = vadd.f32 %v4504, %v4758
      %v4760 = vpop.f32.mrb[0].mxu0
      %4761 = vmatprep.mubr.f32.mxu0 %v4325
      %4762 = vmatmul.mubr.f32.gmra.mrb[0].mxu0 %v4138
      %v4763 = vpop.f32.mrb[0].mxu0
      %v4764 = vadd.f32 %v4509, %v4763
      %v4765 = vpop.f32.mrb[0].mxu0
      %4766 = vmatprep.mubr.f32.mxu0 %v4328
      %4767 = vmatmul.mubr.f32.gmra.mrb[0].mxu0 %v4142
      %v4768 = vpop.f32.mrb[0].mxu0
      %v4769 = vadd.f32 %v4514, %v4768
      %v4770 = vpop.f32.mrb[0].mxu0
      %4771 = vmatprep.mubr.f32.mxu0 %v4331
      %4772 = vmatmul.mubr.f32.gmra.mrb[0].mxu0 %v4146
      %v4773 = vpop.f32.mrb[0].mxu0
      %v4774 = vadd.f32 %v4519, %v4773
      %v4775 = vpop.f32.mrb[0].mxu0
      %4776 = vmatprep.mubr.f32.mxu0 %v4334
      %4777 = vmatmul.mubr.f32.gmra.mrb[0].mxu0 %v4150
      %v4778 = vpop.f32.mrb[0].mxu0
      %v4779 = vadd.f32 %v4524, %v4778
      %v4780 = vpop.f32.mrb[0].mxu0
      %4781 = vmatprep.mubr.f32.mxu0 %v4337
      %4782 = vmatmul.mubr.f32.gmra.mrb[0].mxu0 %v4154
      %v4783 = vpop.f32.mrb[0].mxu0
      %v4784 = vadd.f32 %v4529, %v4783
      %v4785 = vpop.f32.mrb[0].mxu0
      %4786 = vmatprep.mubr.f32.mxu0 %v4340
      %4787 = vmatmul.mubr.f32.gmra.mrb[0].mxu0 %v4158
      %v4788 = vpop.f32.mrb[0].mxu0
      %v4789 = vadd.f32 %v4534, %v4788
      %v4790 = vpop.f32.mrb[0].mxu0
      %4791 = vmatprep.mubr.f32.mxu0 %v4343
      %4792 = vmatmul.mubr.f32.gmra.mrb[0].mxu0 %v4162
      %v4793 = vpop.f32.mrb[0].mxu0
      %v4794 = vadd.f32 %v4539, %v4793
      %v4795 = vpop.f32.mrb[0].mxu0
      %4796 = vmatprep.mubr.f32.mxu0 %v4346
      %4797 = vmatmul.mubr.f32.gmra.mrb[0].mxu0 %v4166
      %v4798 = vpop.f32.mrb[0].mxu0
      %v4799 = vadd.f32 %v4544, %v4798
      %v4800 = vpop.f32.mrb[0].mxu0
      %4801 = vmatprep.mubr.f32.mxu0 %v4349
      %4802 = vmatmul.mubr.f32.gmra.mrb[0].mxu0 %v4170
      %v4803 = vpop.f32.mrb[0].mxu0
      %v4804 = vadd.f32 %v4549, %v4803
      %v4805 = vpop.f32.mrb[0].mxu0
      %4806 = vmatprep.mubr.f32.mxu0 %v4352
      %4807 = vmatmul.mubr.f32.gmra.mrb[0].mxu0 %v4174
      %v4808 = vpop.f32.mrb[0].mxu0
      %v4809 = vadd.f32 %v4554, %v4808
      %v4810 = vpop.f32.mrb[0].mxu0
      %4811 = vmatprep.mubr.f32.mxu0 %v4355
      %4812 = vmatmul.mubr.f32.gmra.mrb[0].mxu0 %v4178
      %v4813 = vpop.f32.mrb[0].mxu0
      %v4814 = vadd.f32 %v4559, %v4813
      %v4815 = vpop.f32.mrb[0].mxu0
      %4816 = vmatprep.mubr.f32.mxu0 %v4358
      %4817 = vmatmul.mubr.f32.gmra.mrb[0].mxu0 %v4182
      %v4818 = vpop.f32.mrb[0].mxu0
      %v4819 = vadd.f32 %v4564, %v4818
      %v4820 = vpop.f32.mrb[0].mxu0
      %4821 = vmatprep.mubr.f32.mxu0 %v4361
      %4822 = vmatmul.mubr.f32.gmra.mrb[0].mxu0 %v4186
      %v4823 = vpop.f32.mrb[0].mxu0
      %v4824 = vadd.f32 %v4569, %v4823
      %v4825 = vpop.f32.mrb[0].mxu0
      %4826 = vmatprep.mubr.f32.mxu0 %v4364
      %4827 = vmatmul.mubr.f32.gmra.mrb[0].mxu0 %v4190
      %v4828 = vpop.f32.mrb[0].mxu0
      %v4829 = vadd.f32 %v4574, %v4828
      %v4830 = vpop.f32.mrb[0].mxu0
      %4831 = vmatprep.mubr.f32.mxu0 %v4367
      %4832 = vmatmul.mubr.f32.gmra.mrb[0].mxu0 %v4194
      %v4833 = vpop.f32.mrb[0].mxu0
      %v4834 = vadd.f32 %v4579, %v4833
      %v4835 = vpop.f32.mrb[0].mxu0
      %4836 = vmatprep.mubr.f32.mxu0 %v4370
      %4837 = vmatmul.mubr.f32.gmra.mrb[0].mxu0 %v4198
      %v4838 = vpop.f32.mrb[0].mxu0
      %v4839 = vadd.f32 %v4584, %v4838
      %v4840 = vpop.f32.mrb[0].mxu0
      %4841 = vmatprep.mubr.f32.mxu0 %v4373
      %4842 = vmatmul.mubr.f32.gmra.mrb[0].mxu0 %v4202
      %v4843 = vpop.f32.mrb[0].mxu0
      %v4844 = vadd.f32 %v4589, %v4843
      %v4845 = vpop.f32.mrb[0].mxu0
      %4846 = vmatprep.mubr.f32.mxu0 %v4376
      %4847 = vmatmul.mubr.f32.gmra.mrb[0].mxu0 %v4206
      %v4848 = vpop.f32.mrb[0].mxu0
      %v4849 = vadd.f32 %v4594, %v4848
      %v4850 = vpop.f32.mrb[0].mxu0
      %4851 = vmatprep.mubr.f32.mxu0 %v4379
      %4852 = vmatmul.mubr.f32.gmra.mrb[0].mxu0 %v4210
      %v4853 = vpop.f32.mrb[0].mxu0
      %v4854 = vadd.f32 %v4599, %v4853
      %v4855 = vpop.f32.mrb[0].mxu0
      %4856 = vmatprep.mubr.f32.mxu0 %v4382
      %4857 = vmatmul.mubr.f32.gmra.mrb[0].mxu0 %v4214
      %v4858 = vpop.f32.mrb[0].mxu0
      %v4859 = vadd.f32 %v4604, %v4858
      %v4860 = vpop.f32.mrb[0].mxu0
      %4861 = vmatprep.mubr.f32.mxu0 %v4385
      %4862 = vmatmul.mubr.f32.gmra.mrb[0].mxu0 %v4218
      %v4863 = vpop.f32.mrb[0].mxu0
      %v4864 = vadd.f32 %v4609, %v4863
      %v4865 = vpop.f32.mrb[0].mxu0
      %4866 = vmatprep.mubr.f32.mxu0 %v4388
      %4867 = vmatmul.mubr.f32.gmra.mrb[0].mxu0 %v4222
      %v4868 = vpop.f32.mrb[0].mxu0
      %v4869 = vadd.f32 %v4614, %v4868
      %v4870 = vpop.f32.mrb[0].mxu0
      %4871 = vmatprep.mubr.f32.mxu0 %v4391
      %4872 = vmatmul.mubr.f32.gmra.mrb[0].mxu0 %v4226
      %v4873 = vpop.f32.mrb[0].mxu0
      %v4874 = vadd.f32 %v4619, %v4873
      %v4875 = vpop.f32.mrb[0].mxu0
      %4876 = vmatprep.mubr.f32.mxu0 %v4394
      %4877 = vmatmul.mubr.f32.gmra.mrb[0].mxu0 %v4230
      %v4878 = vpop.f32.mrb[0].mxu0
      %v4879 = vadd.f32 %v4624, %v4878
      %v4880 = vpop.f32.mrb[0].mxu0
      %4881 = vmatprep.mubr.f32.mxu0 %v4397
      %4882 = vmatmul.mubr.f32.gmra.mrb[0].mxu0 %v4234
      %v4883 = vpop.f32.mrb[0].mxu0
      %v4884 = vadd.f32 %v4629, %v4883
      %v4885 = vpop.f32.mrb[0].mxu0
      %4886 = vmatprep.mubr.f32.mxu0 %v4400
      %4887 = vmatmul.mubr.f32.gmra.mrb[0].mxu0 %v4238
      %v4888 = vpop.f32.mrb[0].mxu0
      %v4889 = vadd.f32 %v4634, %v4888
      %v4890 = vpop.f32.mrb[0].mxu0
      %4891 = vmatprep.mubr.f32.mxu0 %v4403
      %4892 = vmatmul.mubr.f32.gmra.mrb[0].mxu0 %v4242
      %v4893 = vpop.f32.mrb[0].mxu0
      %v4894 = vadd.f32 %v4639, %v4893
      %v4895 = vpop.f32.mrb[0].mxu0
      %4896 = vmatprep.mubr.f32.mxu0 %v4406
      %4897 = vmatmul.mubr.f32.gmra.mrb[0].mxu0 %v4246
      %v4898 = vpop.f32.mrb[0].mxu0
      %v4899 = vadd.f32 %v4644, %v4898
      %v4900 = vpop.f32.mrb[0].mxu0
      %4901 = vmatprep.mubr.f32.mxu0 %v4409
      %4902 = vmatmul.mubr.f32.gmra.mrb[0].mxu0 %v4250
      %v4903 = vpop.f32.mrb[0].mxu0
      %v4904 = vadd.f32 %v4649, %v4903
      %v4905 = vpop.f32.mrb[0].mxu0
      %4906 = vmatprep.mubr.f32.mxu0 %v4412
      %4907 = vmatmul.mubr.f32.gmra.mrb[0].mxu0 %v4254
      %v4908 = vpop.f32.mrb[0].mxu0
      %v4909 = vadd.f32 %v4654, %v4908
      %v4910 = vpop.f32.mrb[0].mxu0
      %4911 = vmatprep.mubr.f32.mxu0 %v4415
      %4912 = vmatmul.mubr.f32.gmra.mrb[0].mxu0 %v4258
      %v4913 = vpop.f32.mrb[0].mxu0
      %v4914 = vadd.f32 %v4659, %v4913
      %v4915 = vpop.f32.mrb[0].mxu0
      %4916 = vmatprep.mubr.f32.mxu0 %v4418
      %4917 = vmatmul.mubr.f32.gmra.mrb[0].mxu0 %v4262
      %v4918 = vpop.f32.mrb[0].mxu0
      %v4919 = vadd.f32 %v4664, %v4918
      %v4920 = vpop.f32.mrb[0].mxu0
      %4921 = vmatprep.mubr.f32.mxu0 %v4421
      %4922 = vmatmul.mubr.f32.gmra.mrb[0].mxu0 %v4266
      %v4923 = vpop.f32.mrb[0].mxu0
      %v4924 = vadd.f32 %v4669, %v4923
      %v4925 = vpop.f32.mrb[0].mxu0
      %4926 = vmatprep.mubr.f32.mxu0 %v4424
      %4927 = vmatmul.mubr.f32.gmra.mrb[0].mxu0 %v4270
      %v4928 = vpop.f32.mrb[0].mxu0
      %v4929 = vadd.f32 %v4674, %v4928
      %v4930 = vpop.f32.mrb[0].mxu0
      %4931 = vmatprep.mubr.f32.mxu0 %v4427
      %4932 = vmatmul.mubr.f32.gmra.mrb[0].mxu0 %v4274
      %v4933 = vpop.f32.mrb[0].mxu0
      %v4934 = vadd.f32 %v4679, %v4933
      %v4935 = vpop.f32.mrb[0].mxu0
      %4936 = vmatprep.mubr.f32.mxu0 %v4430
      %4937 = vmatmul.mubr.f32.gmra.mrb[0].mxu0 %v4278
      %v4938 = vpop.f32.mrb[0].mxu0
      %v4939 = vadd.f32 %v4684, %v4938
      %v4940 = vpop.f32.mrb[0].mxu0
      %4941 = vdwg.mxu0
      %v4942 = vmax.f32 %v4754, 0.0
      %v4943 = vmax.f32 %v4759, 0.0
      %v4944 = vmax.f32 %v4764, 0.0
      %v4945 = vmax.f32 %v4769, 0.0
      %v4946 = vmax.f32 %v4774, 0.0
      %v4947 = vmax.f32 %v4779, 0.0
      %v4948 = vmax.f32 %v4784, 0.0
      %v4949 = vmax.f32 %v4789, 0.0
      %v4950 = vmax.f32 %v4794, 0.0
      %v4951 = vmax.f32 %v4799, 0.0
      %v4952 = vmax.f32 %v4804, 0.0
      %v4953 = vmax.f32 %v4809, 0.0
      %v4954 = vmax.f32 %v4814, 0.0
      %v4955 = vmax.f32 %v4819, 0.0
      %v4956 = vmax.f32 %v4824, 0.0
      %v4957 = vmax.f32 %v4829, 0.0
      %v4958 = vmax.f32 %v4834, 0.0
      %v4959 = vmax.f32 %v4839, 0.0
      %v4960 = vmax.f32 %v4844, 0.0
      %v4961 = vmax.f32 %v4849, 0.0
      %v4962 = vmax.f32 %v4854, 0.0
      %v4963 = vmax.f32 %v4859, 0.0
      %v4964 = vmax.f32 %v4864, 0.0
      %v4965 = vmax.f32 %v4869, 0.0
      %v4966 = vmax.f32 %v4874, 0.0
      %v4967 = vmax.f32 %v4879, 0.0
      %v4968 = vmax.f32 %v4884, 0.0
      %v4969 = vmax.f32 %v4889, 0.0
      %v4970 = vmax.f32 %v4894, 0.0
      %v4971 = vmax.f32 %v4899, 0.0
      %v4972 = vmax.f32 %v4904, 0.0
      %v4973 = vmax.f32 %v4909, 0.0
      %v4974 = vmax.f32 %v4914, 0.0
      %v4975 = vmax.f32 %v4919, 0.0
      %v4976 = vmax.f32 %v4924, 0.0
      %v4977 = vmax.f32 %v4929, 0.0
      %v4978 = vmax.f32 %v4934, 0.0
      %v4979 = vmax.f32 %v4939, 0.0
      %v4980 = vld [vmem:[%s18] sm:$0x3f]
      %v4981 = vld [vmem:[%s19] sm:$0x3]
      %v4983 = vcombine.high %v4980, %v4980
      %v4985 = vunpack.c.l.s4 1983009808
      %v4986 = vunpack.c.0.s8 %v4985
      %v4987 = vlaneseq
      %v4988 = vshrl.u32 %v4987, 7
      %v4989 = vsub.s32 %v4986, %v4988
      %v4990 = vrot.slane %v4980, %v4989
      %v4992 = vunpack.c.l.s4 1983009808
      %v4993 = vunpack.c.0.s8 %v4992
      %v4994 = vlaneseq
      %v4995 = vshrl.u32 %v4994, 7
      %v4996 = vsub.s32 %v4993, %v4995
      %v4997 = vrot.slane %v4983, %v4996
      %v4998 = vcombine.high %v4990, %v4990
      %vm5001 = vcmask 359424
      %v5002 = vsel %vm5001, %v4997, 0
      %v5005 = vsel %vm3194, %v4979, 0
      %5007 = vmatprep.subr.mxu0 0.0
      %5008 = vmatpush1.msra.mxu0 %v4942
      %5009 = vmatprep.subr.mxu0 0.0
      %5010 = vmatpush1.msra.mxu0 %v4943
      %5011 = vmatprep.subr.mxu0 0.0
      %5012 = vmatpush1.msra.mxu0 %v4944
      %5013 = vmatprep.subr.mxu0 0.0
      %5014 = vmatpush1.msra.mxu0 %v4945
      %5015 = vmatprep.subr.mxu0 0.0
      %5016 = vmatpush1.msra.mxu0 %v4946
      %5017 = vmatprep.subr.mxu0 0.0
      %5018 = vmatpush1.msra.mxu0 %v4947
      %5019 = vmatprep.subr.mxu0 0.0
      %5020 = vmatpush1.msra.mxu0 %v4948
      %5021 = vmatprep.subr.mxu0 0.0
      %5022 = vmatpush1.msra.mxu0 %v4949
      %5023 = vmatprep.subr.mxu0 0.0
      %5024 = vmatpush1.msra.mxu0 %v4950
      %5025 = vmatprep.subr.mxu0 0.0
      %5026 = vmatpush1.msra.mxu0 %v4951
      %5027 = vmatprep.subr.mxu0 0.0
      %5028 = vmatpush1.msra.mxu0 %v4952
      %5029 = vmatprep.subr.mxu0 0.0
      %5030 = vmatpush1.msra.mxu0 %v4953
      %5031 = vmatprep.subr.mxu0 0.0
      %5032 = vmatpush1.msra.mxu0 %v4954
      %5033 = vmatprep.subr.mxu0 0.0
      %5034 = vmatpush1.msra.mxu0 %v4955
      %5035 = vmatprep.subr.mxu0 0.0
      %5036 = vmatpush1.msra.mxu0 %v4956
      %5037 = vmatprep.subr.mxu0 0.0
      %5038 = vmatpush1.msra.mxu0 %v4957
      %5039 = vmatprep.subr.mxu0 0.0
      %5040 = vmatpush1.msra.mxu0 %v4958
      %5041 = vmatprep.subr.mxu0 0.0
      %5042 = vmatpush1.msra.mxu0 %v4959
      %5043 = vmatprep.subr.mxu0 0.0
      %5044 = vmatpush1.msra.mxu0 %v4960
      %5045 = vmatprep.subr.mxu0 0.0
      %5046 = vmatpush1.msra.mxu0 %v4961
      %5047 = vmatprep.subr.mxu0 0.0
      %5048 = vmatpush1.msra.mxu0 %v4962
      %5049 = vmatprep.subr.mxu0 0.0
      %5050 = vmatpush1.msra.mxu0 %v4963
      %5051 = vmatprep.subr.mxu0 0.0
      %5052 = vmatpush1.msra.mxu0 %v4964
      %5053 = vmatprep.subr.mxu0 0.0
      %5054 = vmatpush1.msra.mxu0 %v4965
      %5055 = vmatprep.subr.mxu0 0.0
      %5056 = vmatpush1.msra.mxu0 %v4966
      %5057 = vmatprep.subr.mxu0 0.0
      %5058 = vmatpush1.msra.mxu0 %v4967
      %5059 = vmatprep.subr.mxu0 0.0
      %5060 = vmatpush1.msra.mxu0 %v4968
      %5061 = vmatprep.subr.mxu0 0.0
      %5062 = vmatpush1.msra.mxu0 %v4969
      %5063 = vmatprep.subr.mxu0 0.0
      %5064 = vmatpush1.msra.mxu0 %v4970
      %5065 = vmatprep.subr.mxu0 0.0
      %5066 = vmatpush1.msra.mxu0 %v4971
      %5067 = vmatprep.subr.mxu0 0.0
      %5068 = vmatpush1.msra.mxu0 %v4972
      %5069 = vmatprep.subr.mxu0 0.0
      %5070 = vmatpush1.msra.mxu0 %v4973
      %5071 = vmatprep.mubr.f32.mxu0 %v4998
      %5072 = vmatmul.mubr.f32.gmra.mrb[0].mxu0 %v4990
      %v5073 = vpop.f32.mrb[0].mxu0
      %v5074 = vadd.f32 %v4981, %v5073
      %v5075 = vpop.f32.mrb[0].mxu0
      %5076 = vdwg.mxu0
      %5077 = vmatprep.subr.mxu0 0.0
      %5078 = vmatpush1.msra.mxu0 %v4974
      %5079 = vmatprep.subr.mxu0 0.0
      %5080 = vmatpush1.msra.mxu0 %v4975
      %5081 = vmatprep.subr.mxu0 0.0
      %5082 = vmatpush1.msra.mxu0 %v4976
      %5083 = vmatprep.subr.mxu0 0.0
      %5084 = vmatpush1.msra.mxu0 %v4977
      %5085 = vmatprep.subr.mxu0 0.0
      %5086 = vmatpush1.msra.mxu0 %v4978
      %5087 = vmatprep.subr.mxu0 0.0
      %5088 = vmatpush1.msra.mxu0 %v5005
      %5089 = vmatprep.subr.mxu0 0.0
      %5090 = vmatpush1.msra.mxu0 0.0
      %5091 = vmatprep.subr.mxu0 0.0
      %5092 = vmatpush1.msra.mxu0 0.0
      %5093 = vmatprep.subr.mxu0 0.0
      %5094 = vmatpush1.msra.mxu0 0.0
      %5095 = vmatprep.subr.mxu0 0.0
      %5096 = vmatpush1.msra.mxu0 0.0
      %5097 = vmatprep.subr.mxu0 0.0
      %5098 = vmatpush1.msra.mxu0 0.0
      %5099 = vmatprep.subr.mxu0 0.0
      %5100 = vmatpush1.msra.mxu0 0.0
      %5101 = vmatprep.subr.mxu0 0.0
      %5102 = vmatpush1.msra.mxu0 0.0
      %5103 = vmatprep.subr.mxu0 0.0
      %5104 = vmatpush1.msra.mxu0 0.0
      %5105 = vmatprep.subr.mxu0 0.0
      %5106 = vmatpush1.msra.mxu0 0.0
      %5107 = vmatprep.subr.mxu0 0.0
      %5108 = vmatpush1.msra.mxu0 0.0
      %5109 = vmatprep.subr.mxu0 0.0
      %5110 = vmatpush1.msra.mxu0 0.0
      %5111 = vmatprep.subr.mxu0 0.0
      %5112 = vmatpush1.msra.mxu0 0.0
      %5113 = vmatprep.subr.mxu0 0.0
      %5114 = vmatpush1.msra.mxu0 0.0
      %5115 = vmatprep.subr.mxu0 0.0
      %5116 = vmatpush1.msra.mxu0 0.0
      %5117 = vmatprep.subr.mxu0 0.0
      %5118 = vmatpush1.msra.mxu0 0.0
      %5119 = vmatprep.subr.mxu0 0.0
      %5120 = vmatpush1.msra.mxu0 0.0
      %5121 = vmatprep.subr.mxu0 0.0
      %5122 = vmatpush1.msra.mxu0 0.0
      %5123 = vmatprep.subr.mxu0 0.0
      %5124 = vmatpush1.msra.mxu0 0.0
      %5125 = vmatprep.subr.mxu0 0.0
      %5126 = vmatpush1.msra.mxu0 0.0
      %5127 = vmatprep.subr.mxu0 0.0
      %5128 = vmatpush1.msra.mxu0 0.0
      %5129 = vmatprep.subr.mxu0 0.0
      %5130 = vmatpush1.msra.mxu0 0.0
      %5131 = vmatprep.subr.mxu0 0.0
      %5132 = vmatpush1.msra.mxu0 0.0
      %5133 = vmatprep.subr.mxu0 0.0
      %5134 = vmatpush1.msra.mxu0 0.0
      %5135 = vmatprep.subr.mxu0 0.0
      %5136 = vmatpush1.msra.mxu0 0.0
      %5137 = vmatprep.subr.mxu0 0.0
      %5138 = vmatpush1.msra.mxu0 0.0
      %5139 = vmatprep.subr.mxu0 0.0
      %5140 = vmatpush1.msra.mxu0 0.0
      %5141 = vmatprep.mubr.f32.mxu0 0.0
      %5142 = vmatmul.mubr.f32.gmra.mrb[0].mxu0 %v5002
      %v5143 = vpop.f32.mrb[0].mxu0
      %v5144 = vadd.f32 %v5074, %v5143
      %v5145 = vpop.f32.mrb[0].mxu0
      %5146 = vdwg.mxu0
      %v5147 = vtanh.pop %v5144
      %v5148 = vmul.f32 %v5147, 2.0
      %vm5149 = vcmask 1024
      %5150 = vst.msk [vmem:[%s641] sm:$0x3] %vm5149, %v5148
      %p5151 = scmp.lt.s32.totalorder %s31, 1
      %s5152 = scalar_select %p5151, %s31, 1
      %s5153 = smul.addr %s5152, 2
      %s5154 = scalar_lea.vmem %s20, %s5153
      // Predicated region
      $region101: #{_lambda_.1} parent=99 // pred_check
        %p5155 = pneg %p479
      $region102: #{_lambda_.1} parent=99 // pred_check_branch
        %5157 = sbr.rel (%p5155) target = $region104
      $region103: #{_lambda_.1} parent=99 // pred_region
        _
      $region104: #{_lambda_.1} parent=99 // pred_fallthru
        _
    $region100: #{_lambda_.1} parent=5 // pred_fallthru
      _
    %p5158 = scmp.le.s32.totalorder 2, %s26
    // Predicated region
    $region105: #{_lambda_.1} parent=5 // pred_check
      %p5159 = pneg %p5158
    $region106: #{_lambda_.1} parent=5 // pred_check_branch
      %5161 = sbr.rel (%p5159) target = $region108
    $region107: #{_lambda_.1} parent=5 // pred_region
      %s5162 = ssub.s32 %s26, 2
      // Predicated region
      $region109: #{_lambda_.1} parent=107 // pred_check
        %p5163 = pneg %p485
      $region110: #{_lambda_.1} parent=107 // pred_check_branch
        %5165 = sbr.rel (%p5163) target = $region112
      $region111: #{_lambda_.1} parent=107 // pred_region
        %p5166 = scmp.lt.s32.totalorder %s32, 1
        %s5167 = scalar_select %p5166, %s32, 1
        %s5168 = smul.addr %s5167, 2
        %s5169 = scalar_lea.vmem %s20, %s5168
      $region112: #{_lambda_.1} parent=107 // pred_fallthru
        _
    $region108: #{_lambda_.1} parent=5 // pred_fallthru
      _
  $region6: #{_lambda_.1} parent=0 // loop_footer
    %s30 = sadd.s32 1, %s26
  $region7: #{_lambda_.1} parent=0 // loop_footer_branch
    %25 = sbr.rel target = $region3
  $region8: #{_lambda_.1} parent=0 // loop_exit
    _

</llo_original>
